<compile_context>
chip_gen: v5e
topology: v5e:2x2
jax: 0.10.0
libtpu: 0.0.40
codegen_flags: <defaults>
</compile_context>

<pallas_src>
import jax
import jax.numpy as jnp
from jax.experimental import pallas as pl
from jax.experimental.pallas import tpu as pltpu


_LANE = 128                       # vreg lane width
_SUBLANE = 8                      # f32 sublane grain
_VMEM_LIMIT = 32 * 1024 * 1024    # conservative scoped-VMEM cap (safe on v7x)


def _round_up(x, m):
    return (x + m - 1) // m * m


# ---------------------------------------------------------------------------
# Kernel 1: conv-as-GEMM + fused 2x2 max-pool + bias + ReLU epilogue.
# x_ref: (4*Mp, Kp), pool-position-major rows: rows [p*Mp, (p+1)*Mp) hold the
# im2col patches of pool-window position p.  One MXU dot, then a sublane-slice
# max over the 4 position slabs, then a single bias-add + ReLU.
# ---------------------------------------------------------------------------
def _conv_gemm_pool_kernel(x_ref, w_ref, b_ref, o_ref):
    mp = o_ref.shape[0]
    r = jnp.dot(x_ref[...], w_ref[...], preferred_element_type=jnp.float32)
    m = jnp.maximum(jnp.maximum(r[0:mp], r[mp:2 * mp]),
                    jnp.maximum(r[2 * mp:3 * mp], r[3 * mp:4 * mp]))
    o_ref[...] = jnp.maximum(m + b_ref[...], 0.0).astype(o_ref.dtype)


def _im2col_pool_major(x_nhwc, k):
    """im2col patches, pool-position-major.

    Returns (4, B*Hp*Wp, k*k*C): patches[2*dh+dw, g, :] is the conv patch of
    output position (2*hp+dh, 2*wp+dw) for pool group g = b*Hp*Wp + hp*Wp + wp.
    Feature order is (kh, kw, C) -- matches the transposed conv weight.
    """
    B, H, W, C = x_nhwc.shape
    Ho, Wo = H - k + 1, W - k + 1
    Hp, Wp = Ho // 2, Wo // 2
    patches = jnp.stack(
        [x_nhwc[:, i:i + Ho, j:j + Wo, :] for i in range(k) for j in range(k)],
        axis=3)                                            # (B, Ho, Wo, kk, C)
    patches = (patches.reshape(B, Hp, 2, Wp, 2, k * k, C)
               .transpose(2, 4, 0, 1, 3, 5, 6))            # (dh,dw,B,Hp,Wp,kk,C)
    return patches.reshape(4, B * Hp * Wp, k * k * C), (B, Hp, Wp)


def conv_relu_pool(x_nhwc, w2d, b2d, k, *, group_pad=None):
    """VALID conv (stride 1) + bias + ReLU + 2x2 max-pool in one pallas_call.

    w2d: prepared weight (Kp, 128) (padded cols are zero); b2d: (1, 128).
    group_pad=None  -> output (round_up(B*Hp*Wp, 8), 128), rows (b, hp, wp).
    group_pad=G     -> per-batch pool-group padding to G: output (B*G, 128);
                       padded rows are relu(bias) but multiply zero fc1 rows.
    Padded output channels are exactly zero (zero weight cols + zero bias).
    """
    patches, (B, Hp, Wp) = _im2col_pool_major(x_nhwc, k)
    _, Mg, K = patches.shape
    Kp, Np = w2d.shape

    if group_pad is None:
        Mp = _round_up(Mg, _SUBLANE)
        patches = jnp.pad(patches, ((0, 0), (0, Mp - Mg), (0, Kp - K)))
    else:
        gpb = Hp * Wp
        Mp = B * group_pad
        patches = patches.reshape(4, B, gpb, K)
        patches = jnp.pad(
            patches, ((0, 0), (0, 0), (0, group_pad - gpb), (0, Kp - K)))
        patches = patches.reshape(4, Mp, Kp)

    lhs = patches.reshape(4 * Mp, Kp).astype(w2d.dtype)

    # Single grid step: whole problem is a few hundred KB, far under VMEM on
    # every generation.  (For large batches, tile M and mark it "parallel".)
    out = pl.pallas_call(
        _conv_gemm_pool_kernel,
        out_shape=jax.ShapeDtypeStruct((Mp, Np), jnp.float32),
        grid_spec=pltpu.PrefetchScalarGridSpec(
            num_scalar_prefetch=0,
            grid=(1,),
            in_specs=[
                pl.BlockSpec((4 * Mp, Kp), lambda i: (0, 0)),   # im2col LHS
                pl.BlockSpec((Kp, Np), lambda i: (0, 0)),       # resident W
                pl.BlockSpec((1, Np), lambda i: (0, 0)),        # resident bias
            ],
            out_specs=pl.BlockSpec((Mp, Np), lambda i: (0, 0)),
        ),
        compiler_params=pltpu.CompilerParams(
            dimension_semantics=("arbitrary",),
            vmem_limit_bytes=_VMEM_LIMIT),
    )(lhs, w2d, b2d)
    return out, (B, Hp, Wp, Mg)


# ---------------------------------------------------------------------------
# Kernel 2: fused fc1 -> ReLU -> fc2 -> ReLU -> fc3 (weights VMEM-resident).
# ---------------------------------------------------------------------------
def _mlp_kernel(x_ref, w1_ref, b1_ref, w2_ref, b2_ref, w3_ref, b3_ref, o_ref):
    h = jnp.dot(x_ref[...], w1_ref[...], preferred_element_type=jnp.float32)
    h = jnp.maximum(h + b1_ref[...], 0.0)
    h = jnp.dot(h.astype(w2_ref.dtype), w2_ref[...],
                preferred_element_type=jnp.float32)
    h = jnp.maximum(h + b2_ref[...], 0.0)
    o = jnp.dot(h.astype(w3_ref.dtype), w3_ref[...],
                preferred_element_type=jnp.float32) + b3_ref[...]
    o_ref[...] = o.astype(o_ref.dtype)


def mlp_head(x2d, prep):
    B, K1 = x2d.shape
    H = _LANE
    return pl.pallas_call(
        _mlp_kernel,
        out_shape=jax.ShapeDtypeStruct((B, H), jnp.float32),
        grid_spec=pltpu.PrefetchScalarGridSpec(
            num_scalar_prefetch=0,
            grid=(1,),
            in_specs=[pl.BlockSpec((B, K1), lambda i: (0, 0)),
                      pl.BlockSpec((K1, H), lambda i: (0, 0)),
                      pl.BlockSpec((1, H), lambda i: (0, 0)),
                      pl.BlockSpec((H, H), lambda i: (0, 0)),
                      pl.BlockSpec((1, H), lambda i: (0, 0)),
                      pl.BlockSpec((H, H), lambda i: (0, 0)),
                      pl.BlockSpec((1, H), lambda i: (0, 0))],
            out_specs=pl.BlockSpec((B, H), lambda i: (0, 0)),
        ),
        compiler_params=pltpu.CompilerParams(
            dimension_semantics=("arbitrary",),
            vmem_limit_bytes=_VMEM_LIMIT),
    )(x2d.astype(prep["w_fc1"].dtype), prep["w_fc1"], prep["b_fc1"],
      prep["w_fc2"], prep["b_fc2"], prep["w_fc3"], prep["b_fc3"])


# ---------------------------------------------------------------------------
# One-time parameter preparation (transpose / pad / permute / cast).
# compute_dtype=jnp.bfloat16 halves GEMM operand DMA/VMEM on v6e/v7x
# (f32 accumulation and f32 bias/ReLU epilogue are kept in the kernels).
# ---------------------------------------------------------------------------
def prepare_params(p, *, group_pad, compute_dtype=jnp.float32):
    def conv_w(w_oihw):
        O, I, kh, kw = w_oihw.shape
        K = kh * kw * I
        Kp = _round_up(K, _SUBLANE)
        w2d = jnp.transpose(w_oihw, (2, 3, 1, 0)).reshape(K, O)   # (kh,kw,I)->O
        return jnp.pad(w2d, ((0, Kp - K), (0, _LANE - O))).astype(compute_dtype)

    def vec(b):
        return (jnp.pad(b, (0, _LANE - b.shape[0]))
                .astype(jnp.float32).reshape(1, _LANE))

    def fc_w(w, kp):
        wt = w.T
        return jnp.pad(wt, ((0, kp - wt.shape[0]),
                            (0, _LANE - wt.shape[1]))).astype(compute_dtype)

    # fc1 expanded/permuted to consume the conv2 kernel's pooled output
    # directly: input index = g*128 + c (g = hp*5 + wp padded to group_pad,
    # c = conv2 out channel padded to 128); torch index = c*25 + g.
    c2 = p["w_conv2"].shape[0]
    hid1 = p["w_fc1"].shape[0]
    spatial = p["w_fc1"].shape[1] // c2
    w1_csj = p["w_fc1"].T.reshape(c2, spatial, hid1)              # [c, s, j]
    w1p = jnp.zeros((group_pad, _LANE, _LANE), jnp.float32)
    w1p = w1p.at[:spatial, :c2, :hid1].set(jnp.transpose(w1_csj, (1, 0, 2)))
    w1p = w1p.reshape(group_pad * _LANE, _LANE).astype(compute_dtype)

    return dict(
        w_conv1=conv_w(p["w_conv1"]), b_conv1=vec(p["b_conv1"]),
        w_conv2=conv_w(p["w_conv2"]), b_conv2=vec(p["b_conv2"]),
        w_fc1=w1p, b_fc1=vec(p["b_fc1"]),
        w_fc2=fc_w(p["w_fc2"], _LANE), b_fc2=vec(p["b_fc2"]),
        w_fc3=fc_w(p["w_fc3"], _LANE), b_fc3=vec(p["b_fc3"]),
    )


# ---------------------------------------------------------------------------
# Full forward (PyTorch-style NCHW input).  `cfg` holds static ints.
# ---------------------------------------------------------------------------
def lenet5_forward(x_nchw, prep, cfg):
    c1 = cfg["c1"]
    n_classes = cfg["n_classes"]
    group_pad = cfg["group_pad"]

    x = jnp.transpose(x_nchw, (0, 2, 3, 1))                        # -> NHWC
    y1, (B, Hp1, Wp1, Mg1) = conv_relu_pool(
        x, prep["w_conv1"], prep["b_conv1"], 5)                    # (392,128)
    y1 = y1[:Mg1].reshape(B, Hp1, Wp1, _LANE)[..., :c1]            # (B,14,14,6)

    y2, _ = conv_relu_pool(
        y1, prep["w_conv2"], prep["b_conv2"], 5, group_pad=group_pad)
    # (B*group_pad, 128) -> (B, group_pad*128): free reshape; fc1's prepared
    # weight is already permuted to this layout (no NCHW transpose/flatten).
    feats = y2.reshape(B, group_pad * _LANE)                       # (B, 4096)

    logits = mlp_head(feats, prep)                                 # (B, 128)
    return logits[:, :n_classes]


# ---------------------------------------------------------------------------
# Deterministic parameter init (PyTorch default-style uniform).
# ---------------------------------------------------------------------------
def init_params(key, n_classes):
    ks = jax.random.split(key, 10)

    def u(k, shape, fan_in):
        bound = 1.0 / jnp.sqrt(jnp.float32(fan_in))
        return jax.random.uniform(k, shape, jnp.float32, -bound, bound)

    return dict(
        w_conv1=u(ks[0], (6, 1, 5, 5), 25),    b_conv1=u(ks[1], (6,), 25),
        w_conv2=u(ks[2], (16, 6, 5, 5), 150),  b_conv2=u(ks[3], (16,), 150),
        w_fc1=u(ks[4], (120, 400), 400),       b_fc1=u(ks[5], (120,), 400),
        w_fc2=u(ks[6], (84, 120), 120),        b_fc2=u(ks[7], (84,), 120),
        w_fc3=u(ks[8], (n_classes, 84), 84),   b_fc3=u(ks[9], (n_classes,), 84),
    )


# ---------------------------------------------------------------------------
# Pure-JAX reference (silent correctness check, full-precision math).
# ---------------------------------------------------------------------------
def ref_forward(x, p):
    hp = jax.lax.Precision.HIGHEST

    def conv(x, w, b):
        y = jax.lax.conv_general_dilated(
            x, w, (1, 1), "VALID",
            dimension_numbers=("NCHW", "OIHW", "NCHW"), precision=hp)
        return jax.nn.relu(y + b[None, :, None, None])

    def pool(x):
        return jax.lax.reduce_window(x, -jnp.inf, jax.lax.max,
                                     (1, 1, 2, 2), (1, 1, 2, 2), "VALID")

    y = pool(conv(x, p["w_conv1"], p["b_conv1"]))
    y = pool(conv(y, p["w_conv2"], p["b_conv2"]))
    y = y.reshape(y.shape[0], -1)
    y = jax.nn.relu(jnp.dot(y, p["w_fc1"].T, precision=hp) + p["b_fc1"])
    y = jax.nn.relu(jnp.dot(y, p["w_fc2"].T, precision=hp) + p["b_fc2"])
    return jnp.dot(y, p["w_fc3"].T, precision=hp) + p["b_fc3"]


if __name__ == "__main__":
    key = jax.random.PRNGKey(0)
    kx, kp = jax.random.split(key)
    n_classes = 10
    batch = 2
    # LeNet-5 requires 32x32 single-channel input (flatten is 16*5*5 = 400).
    x = jax.random.normal(kx, (batch, 1, 32, 32), jnp.float32)
    params = init_params(kp, n_classes)

    # conv2 pooled spatial groups per image (5*5=25), padded to sublane grain.
    spatial2 = params["w_fc1"].shape[1] // params["w_conv2"].shape[0]
    group_pad = _round_up(spatial2, _SUBLANE)                       # 32

    prep = prepare_params(params, group_pad=group_pad)              # one-time
    cfg = dict(c1=params["w_conv1"].shape[0],
               n_classes=n_classes, group_pad=group_pad)
    fwd = jax.jit(lambda xb, pr: lenet5_forward(xb, pr, cfg))

    out = jax.block_until_ready(fwd(x, prep))

    ref = ref_forward(x, params)
    assert out.shape == (batch, n_classes)
    assert jnp.allclose(out, ref, atol=2e-4, rtol=2e-4)
    print("KERNEL_OK")
</pallas_src>

<mosaic_0001>
module attributes {stable_mosaic.version = 11 : i64} {
  func.func @_conv_gemm_pool_kernel(%arg0: i32, %arg1: memref<1568x32xf32, #tpu.memory_space<vmem>>, %arg2: memref<32x128xf32, #tpu.memory_space<vmem>>, %arg3: memref<1x128xf32, #tpu.memory_space<vmem>>, %arg4: memref<392x128xf32, #tpu.memory_space<vmem>>) attributes {dimension_semantics = [#tpu.dimension_semantics<arbitrary>], iteration_bounds = array<i64: 1>, scalar_prefetch = 0 : i64, scratch_operands = 0 : i64, tpu.core_type = #tpu.core_type<tc>, window_params = [{pipeline_mode = #tpu.pipeline_mode<synchronous>, transform_indices = @transform_0, window_bounds = array<i64: 1568, 32>}, {pipeline_mode = #tpu.pipeline_mode<synchronous>, transform_indices = @transform_1, window_bounds = array<i64: 32, 128>}, {pipeline_mode = #tpu.pipeline_mode<synchronous>, transform_indices = @transform_2, window_bounds = array<i64: 1, 128>}, {pipeline_mode = #tpu.pipeline_mode<synchronous>, transform_indices = @transform_3, window_bounds = array<i64: 392, 128>}]} {
    %c0 = arith.constant 0 : index
    %c0_0 = arith.constant 0 : index
    %0 = vector.load %arg1[%c0, %c0_0] : memref<1568x32xf32, #tpu.memory_space<vmem>>, vector<1568x32xf32>
    %c0_1 = arith.constant 0 : index
    %c0_2 = arith.constant 0 : index
    %1 = vector.load %arg2[%c0_1, %c0_2] : memref<32x128xf32, #tpu.memory_space<vmem>>, vector<32x128xf32>
    %cst = arith.constant dense<0.000000e+00> : vector<1568x128xf32>
    %2 = tpu.matmul %0, %1, %cst {dimension_numbers = #tpu.dot_dimension_numbers<[1], [0], [0], [1], [0, 0, 1, 1], [], []>} : vector<1568x32xf32>, vector<32x128xf32>, vector<1568x128xf32> -> vector<1568x128xf32>
    %3 = vector.extract_strided_slice %2 {offsets = [0, 0], sizes = [392, 128], strides = [1, 1]} : vector<1568x128xf32> to vector<392x128xf32>
    %4 = vector.extract_strided_slice %2 {offsets = [392, 0], sizes = [392, 128], strides = [1, 1]} : vector<1568x128xf32> to vector<392x128xf32>
    %5 = arith.maximumf %3, %4 : vector<392x128xf32>
    %6 = vector.extract_strided_slice %2 {offsets = [784, 0], sizes = [392, 128], strides = [1, 1]} : vector<1568x128xf32> to vector<392x128xf32>
    %7 = vector.extract_strided_slice %2 {offsets = [1176, 0], sizes = [392, 128], strides = [1, 1]} : vector<1568x128xf32> to vector<392x128xf32>
    %8 = arith.maximumf %6, %7 : vector<392x128xf32>
    %9 = arith.maximumf %5, %8 : vector<392x128xf32>
    %c0_3 = arith.constant 0 : index
    %c0_4 = arith.constant 0 : index
    %10 = vector.load %arg3[%c0_3, %c0_4] : memref<1x128xf32, #tpu.memory_space<vmem>>, vector<1x128xf32>
    %11 = vector.broadcast %10 : vector<1x128xf32> to vector<392x128xf32>
    %12 = arith.addf %9, %11 : vector<392x128xf32>
    %cst_5 = arith.constant 0.000000e+00 : f32
    %13 = vector.broadcast %cst_5 : f32 to vector<392x128xf32>
    %14 = arith.maximumf %12, %13 : vector<392x128xf32>
    %c0_6 = arith.constant 0 : index
    %c0_7 = arith.constant 0 : index
    %15 = vector.load %arg4[%c0_6, %c0_7] : memref<392x128xf32, #tpu.memory_space<vmem>>, vector<392x128xf32>
    tpu.vector_store %arg4[%c0_6, %c0_7], %14 {strides = array<i32>} : memref<392x128xf32, #tpu.memory_space<vmem>>, vector<392x128xf32>,
    return
  }
  func.func @transform_0(%arg0: i32) -> (i32, i32) {
    %c0_i32 = arith.constant 0 : i32
    %c0_i32_0 = arith.constant 0 : i32
    %c0_i32_1 = arith.constant 0 : i32
    return %c0_i32, %c0_i32_0 : i32, i32
  }
  func.func @transform_1(%arg0: i32) -> (i32, i32) {
    %c0_i32 = arith.constant 0 : i32
    %c0_i32_0 = arith.constant 0 : i32
    %c0_i32_1 = arith.constant 0 : i32
    return %c0_i32, %c0_i32_0 : i32, i32
  }
  func.func @transform_2(%arg0: i32) -> (i32, i32) {
    %c0_i32 = arith.constant 0 : i32
    %c0_i32_0 = arith.constant 0 : i32
    %c0_i32_1 = arith.constant 0 : i32
    return %c0_i32, %c0_i32_0 : i32, i32
  }
  func.func @transform_3(%arg0: i32) -> (i32, i32) {
    %c0_i32 = arith.constant 0 : i32
    %c0_i32_0 = arith.constant 0 : i32
    %c0_i32_1 = arith.constant 0 : i32
    return %c0_i32, %c0_i32_0 : i32, i32
  }
}

module attributes {stable_mosaic.version = 11 : i64} {
  func.func @_conv_gemm_pool_kernel(%arg0: i32, %arg1: memref<256x152xf32, #tpu.memory_space<vmem>>, %arg2: memref<152x128xf32, #tpu.memory_space<vmem>>, %arg3: memref<1x128xf32, #tpu.memory_space<vmem>>, %arg4: memref<64x128xf32, #tpu.memory_space<vmem>>) attributes {dimension_semantics = [#tpu.dimension_semantics<arbitrary>], iteration_bounds = array<i64: 1>, scalar_prefetch = 0 : i64, scratch_operands = 0 : i64, tpu.core_type = #tpu.core_type<tc>, window_params = [{pipeline_mode = #tpu.pipeline_mode<synchronous>, transform_indices = @transform_0, window_bounds = array<i64: 256, 152>}, {pipeline_mode = #tpu.pipeline_mode<synchronous>, transform_indices = @transform_1, window_bounds = array<i64: 152, 128>}, {pipeline_mode = #tpu.pipeline_mode<synchronous>, transform_indices = @transform_2, window_bounds = array<i64: 1, 128>}, {pipeline_mode = #tpu.pipeline_mode<synchronous>, transform_indices = @transform_3, window_bounds = array<i64: 64, 128>}]} {
    %c0 = arith.constant 0 : index
    %c0_0 = arith.constant 0 : index
    %0 = vector.load %arg1[%c0, %c0_0] : memref<256x152xf32, #tpu.memory_space<vmem>>, vector<256x152xf32>
    %c0_1 = arith.constant 0 : index
    %c0_2 = arith.constant 0 : index
    %1 = vector.load %arg2[%c0_1, %c0_2] : memref<152x128xf32, #tpu.memory_space<vmem>>, vector<152x128xf32>
    %cst = arith.constant dense<0.000000e+00> : vector<256x128xf32>
    %2 = tpu.matmul %0, %1, %cst {dimension_numbers = #tpu.dot_dimension_numbers<[1], [0], [0], [1], [0, 0, 1, 1], [], []>} : vector<256x152xf32>, vector<152x128xf32>, vector<256x128xf32> -> vector<256x128xf32>
    %3 = vector.extract_strided_slice %2 {offsets = [0, 0], sizes = [64, 128], strides = [1, 1]} : vector<256x128xf32> to vector<64x128xf32>
    %4 = vector.extract_strided_slice %2 {offsets = [64, 0], sizes = [64, 128], strides = [1, 1]} : vector<256x128xf32> to vector<64x128xf32>
    %5 = arith.maximumf %3, %4 : vector<64x128xf32>
    %6 = vector.extract_strided_slice %2 {offsets = [128, 0], sizes = [64, 128], strides = [1, 1]} : vector<256x128xf32> to vector<64x128xf32>
    %7 = vector.extract_strided_slice %2 {offsets = [192, 0], sizes = [64, 128], strides = [1, 1]} : vector<256x128xf32> to vector<64x128xf32>
    %8 = arith.maximumf %6, %7 : vector<64x128xf32>
    %9 = arith.maximumf %5, %8 : vector<64x128xf32>
    %c0_3 = arith.constant 0 : index
    %c0_4 = arith.constant 0 : index
    %10 = vector.load %arg3[%c0_3, %c0_4] : memref<1x128xf32, #tpu.memory_space<vmem>>, vector<1x128xf32>
    %11 = vector.broadcast %10 : vector<1x128xf32> to vector<64x128xf32>
    %12 = arith.addf %9, %11 : vector<64x128xf32>
    %cst_5 = arith.constant 0.000000e+00 : f32
    %13 = vector.broadcast %cst_5 : f32 to vector<64x128xf32>
    %14 = arith.maximumf %12, %13 : vector<64x128xf32>
    %c0_6 = arith.constant 0 : index
    %c0_7 = arith.constant 0 : index
    %15 = vector.load %arg4[%c0_6, %c0_7] : memref<64x128xf32, #tpu.memory_space<vmem>>, vector<64x128xf32>
    tpu.vector_store %arg4[%c0_6, %c0_7], %14 {strides = array<i32>} : memref<64x128xf32, #tpu.memory_space<vmem>>, vector<64x128xf32>,
    return
  }
  func.func @transform_0(%arg0: i32) -> (i32, i32) {
    %c0_i32 = arith.constant 0 : i32
    %c0_i32_0 = arith.constant 0 : i32
    %c0_i32_1 = arith.constant 0 : i32
    return %c0_i32, %c0_i32_0 : i32, i32
  }
  func.func @transform_1(%arg0: i32) -> (i32, i32) {
    %c0_i32 = arith.constant 0 : i32
    %c0_i32_0 = arith.constant 0 : i32
    %c0_i32_1 = arith.constant 0 : i32
    return %c0_i32, %c0_i32_0 : i32, i32
  }
  func.func @transform_2(%arg0: i32) -> (i32, i32) {
    %c0_i32 = arith.constant 0 : i32
    %c0_i32_0 = arith.constant 0 : i32
    %c0_i32_1 = arith.constant 0 : i32
    return %c0_i32, %c0_i32_0 : i32, i32
  }
  func.func @transform_3(%arg0: i32) -> (i32, i32) {
    %c0_i32 = arith.constant 0 : i32
    %c0_i32_0 = arith.constant 0 : i32
    %c0_i32_1 = arith.constant 0 : i32
    return %c0_i32, %c0_i32_0 : i32, i32
  }
}

module attributes {stable_mosaic.version = 11 : i64} {
  func.func @_mlp_kernel(%arg0: i32, %arg1: memref<2x4096xf32, #tpu.memory_space<vmem>>, %arg2: memref<4096x128xf32, #tpu.memory_space<vmem>>, %arg3: memref<1x128xf32, #tpu.memory_space<vmem>>, %arg4: memref<128x128xf32, #tpu.memory_space<vmem>>, %arg5: memref<1x128xf32, #tpu.memory_space<vmem>>, %arg6: memref<128x128xf32, #tpu.memory_space<vmem>>, %arg7: memref<1x128xf32, #tpu.memory_space<vmem>>, %arg8: memref<2x128xf32, #tpu.memory_space<vmem>>) attributes {dimension_semantics = [#tpu.dimension_semantics<arbitrary>], iteration_bounds = array<i64: 1>, scalar_prefetch = 0 : i64, scratch_operands = 0 : i64, tpu.core_type = #tpu.core_type<tc>, window_params = [{pipeline_mode = #tpu.pipeline_mode<synchronous>, transform_indices = @transform_0, window_bounds = array<i64: 2, 4096>}, {pipeline_mode = #tpu.pipeline_mode<synchronous>, transform_indices = @transform_1, window_bounds = array<i64: 4096, 128>}, {pipeline_mode = #tpu.pipeline_mode<synchronous>, transform_indices = @transform_2, window_bounds = array<i64: 1, 128>}, {pipeline_mode = #tpu.pipeline_mode<synchronous>, transform_indices = @transform_3, window_bounds = array<i64: 128, 128>}, {pipeline_mode = #tpu.pipeline_mode<synchronous>, transform_indices = @transform_4, window_bounds = array<i64: 1, 128>}, {pipeline_mode = #tpu.pipeline_mode<synchronous>, transform_indices = @transform_5, window_bounds = array<i64: 128, 128>}, {pipeline_mode = #tpu.pipeline_mode<synchronous>, transform_indices = @transform_6, window_bounds = array<i64: 1, 128>}, {pipeline_mode = #tpu.pipeline_mode<synchronous>, transform_indices = @transform_7, window_bounds = array<i64: 2, 128>}]} {
    %c0 = arith.constant 0 : index
    %c0_0 = arith.constant 0 : index
    %0 = vector.load %arg1[%c0, %c0_0] : memref<2x4096xf32, #tpu.memory_space<vmem>>, vector<2x4096xf32>
    %c0_1 = arith.constant 0 : index
    %c0_2 = arith.constant 0 : index
    %1 = vector.load %arg2[%c0_1, %c0_2] : memref<4096x128xf32, #tpu.memory_space<vmem>>, vector<4096x128xf32>
    %cst = arith.constant dense<0.000000e+00> : vector<2x128xf32>
    %2 = tpu.matmul %0, %1, %cst {dimension_numbers = #tpu.dot_dimension_numbers<[1], [0], [0], [1], [0, 0, 1, 1], [], []>} : vector<2x4096xf32>, vector<4096x128xf32>, vector<2x128xf32> -> vector<2x128xf32>
    %c0_3 = arith.constant 0 : index
    %c0_4 = arith.constant 0 : index
    %3 = vector.load %arg3[%c0_3, %c0_4] : memref<1x128xf32, #tpu.memory_space<vmem>>, vector<1x128xf32>
    %4 = vector.broadcast %3 : vector<1x128xf32> to vector<2x128xf32>
    %5 = arith.addf %2, %4 : vector<2x128xf32>
    %cst_5 = arith.constant 0.000000e+00 : f32
    %6 = vector.broadcast %cst_5 : f32 to vector<2x128xf32>
    %7 = arith.maximumf %5, %6 : vector<2x128xf32>
    %c0_6 = arith.constant 0 : index
    %c0_7 = arith.constant 0 : index
    %8 = vector.load %arg4[%c0_6, %c0_7] : memref<128x128xf32, #tpu.memory_space<vmem>>, vector<128x128xf32>
    %cst_8 = arith.constant dense<0.000000e+00> : vector<2x128xf32>
    %9 = tpu.matmul %7, %8, %cst_8 {dimension_numbers = #tpu.dot_dimension_numbers<[1], [0], [0], [1], [0, 0, 1, 1], [], []>} : vector<2x128xf32>, vector<128x128xf32>, vector<2x128xf32> -> vector<2x128xf32>
    %c0_9 = arith.constant 0 : index
    %c0_10 = arith.constant 0 : index
    %10 = vector.load %arg5[%c0_9, %c0_10] : memref<1x128xf32, #tpu.memory_space<vmem>>, vector<1x128xf32>
    %11 = vector.broadcast %10 : vector<1x128xf32> to vector<2x128xf32>
    %12 = arith.addf %9, %11 : vector<2x128xf32>
    %cst_11 = arith.constant 0.000000e+00 : f32
    %13 = vector.broadcast %cst_11 : f32 to vector<2x128xf32>
    %14 = arith.maximumf %12, %13 : vector<2x128xf32>
    %c0_12 = arith.constant 0 : index
    %c0_13 = arith.constant 0 : index
    %15 = vector.load %arg6[%c0_12, %c0_13] : memref<128x128xf32, #tpu.memory_space<vmem>>, vector<128x128xf32>
    %cst_14 = arith.constant dense<0.000000e+00> : vector<2x128xf32>
    %16 = tpu.matmul %14, %15, %cst_14 {dimension_numbers = #tpu.dot_dimension_numbers<[1], [0], [0], [1], [0, 0, 1, 1], [], []>} : vector<2x128xf32>, vector<128x128xf32>, vector<2x128xf32> -> vector<2x128xf32>
    %c0_15 = arith.constant 0 : index
    %c0_16 = arith.constant 0 : index
    %17 = vector.load %arg7[%c0_15, %c0_16] : memref<1x128xf32, #tpu.memory_space<vmem>>, vector<1x128xf32>
    %18 = vector.broadcast %17 : vector<1x128xf32> to vector<2x128xf32>
    %19 = arith.addf %16, %18 : vector<2x128xf32>
    %c0_17 = arith.constant 0 : index
    %c0_18 = arith.constant 0 : index
    %20 = vector.load %arg8[%c0_17, %c0_18] : memref<2x128xf32, #tpu.memory_space<vmem>>, vector<2x128xf32>
    tpu.vector_store %arg8[%c0_17, %c0_18], %19 {strides = array<i32>} : memref<2x128xf32, #tpu.memory_space<vmem>>, vector<2x128xf32>,
    return
  }
  func.func @transform_0(%arg0: i32) -> (i32, i32) {
    %c0_i32 = arith.constant 0 : i32
    %c0_i32_0 = arith.constant 0 : i32
    %c0_i32_1 = arith.constant 0 : i32
    return %c0_i32, %c0_i32_0 : i32, i32
  }
  func.func @transform_1(%arg0: i32) -> (i32, i32) {
    %c0_i32 = arith.constant 0 : i32
    %c0_i32_0 = arith.constant 0 : i32
    %c0_i32_1 = arith.constant 0 : i32
    return %c0_i32, %c0_i32_0 : i32, i32
  }
  func.func @transform_2(%arg0: i32) -> (i32, i32) {
    %c0_i32 = arith.constant 0 : i32
    %c0_i32_0 = arith.constant 0 : i32
    %c0_i32_1 = arith.constant 0 : i32
    return %c0_i32, %c0_i32_0 : i32, i32
  }
  func.func @transform_3(%arg0: i32) -> (i32, i32) {
    %c0_i32 = arith.constant 0 : i32
    %c0_i32_0 = arith.constant 0 : i32
    %c0_i32_1 = arith.constant 0 : i32
    return %c0_i32, %c0_i32_0 : i32, i32
  }
  func.func @transform_4(%arg0: i32) -> (i32, i32) {
    %c0_i32 = arith.constant 0 : i32
    %c0_i32_0 = arith.constant 0 : i32
    %c0_i32_1 = arith.constant 0 : i32
    return %c0_i32, %c0_i32_0 : i32, i32
  }
  func.func @transform_5(%arg0: i32) -> (i32, i32) {
    %c0_i32 = arith.constant 0 : i32
    %c0_i32_0 = arith.constant 0 : i32
    %c0_i32_1 = arith.constant 0 : i32
    return %c0_i32, %c0_i32_0 : i32, i32
  }
  func.func @transform_6(%arg0: i32) -> (i32, i32) {
    %c0_i32 = arith.constant 0 : i32
    %c0_i32_0 = arith.constant 0 : i32
    %c0_i32_1 = arith.constant 0 : i32
    return %c0_i32, %c0_i32_0 : i32, i32
  }
  func.func @transform_7(%arg0: i32) -> (i32, i32) {
    %c0_i32 = arith.constant 0 : i32
    %c0_i32_0 = arith.constant 0 : i32
    %c0_i32_1 = arith.constant 0 : i32
    return %c0_i32, %c0_i32_0 : i32, i32
  }
}

</mosaic_0001>

<llo_original>
// kernel: _lambda_.3
$region0: #{_lambda_.3}
  #allocation0 [shape = 'u32[]', space=smem, size = 0x4, offset = 0x4, fixed_abs, tag = 'smem constant byte address 0x4 - core index']
  #allocation1 [shape = 'u32[72,128]{1,0:T(1,128)}', space=vmem, size = 0x9000, scoped, tag = 'internal scratch']
  %s0 = inlined_call_operand.vmem [shape: f32[1568,32], index: 0, kind: input, shape index: {}]
  %s1 = inlined_call_operand.vmem [shape: f32[32,128], index: 1, kind: input, shape index: {}]
  %s2 = inlined_call_operand.vmem [shape: f32[1,128], index: 2, kind: input, shape index: {}]
  %s3 = inlined_call_operand.vmem [shape: f32[392,128], index: 3, kind: output, shape index: {}]
  %s4 = sld [smem:[#allocation0]]
  $region22: #{_lambda_.3} parent=0
    _
  %s6 = ssub.s32 1, %s4
  %s7 = scalar_select 0, %s6, %s4
  // Predicated region
  $region2: #{_lambda_.3} parent=0 // pred_check
    _
  $region3: #{_lambda_.3} parent=0 // pred_check_branch
    %9 = sbr.rel (0) target = $region5
  $region4: #{_lambda_.3} parent=0 // pred_region
    _
  $region5: #{_lambda_.3} parent=0 // pred_fallthru
    _
  // Predicated region
  $region6: #{_lambda_.3} parent=0 // pred_check
    _
  $region7: #{_lambda_.3} parent=0 // pred_check_branch
    %11 = sbr.rel (0) target = $region9
  $region8: #{_lambda_.3} parent=0 // pred_region
    _
  $region9: #{_lambda_.3} parent=0 // pred_fallthru
    _
  // Predicated region
  $region10: #{_lambda_.3} parent=0 // pred_check
    _
  $region11: #{_lambda_.3} parent=0 // pred_check_branch
    %13 = sbr.rel (0) target = $region13
  $region12: #{_lambda_.3} parent=0 // pred_region
    _
  $region13: #{_lambda_.3} parent=0 // pred_fallthru
    _
  %v14 = vld [vmem:[%s0] sm:$0xff]
  %v15 = vld [vmem:[%s0 + $0x8] sm:$0xff]
  %v16 = vld [vmem:[%s0 + $0x10] sm:$0xff]
  %v17 = vld [vmem:[%s0 + $0x18] sm:$0xff]
  %v18 = vld [vmem:[%s0 + $0x20] sm:$0xff]
  %v19 = vld [vmem:[%s0 + $0x28] sm:$0xff]
  %v20 = vld [vmem:[%s0 + $0x30] sm:$0xff]
  %v21 = vld [vmem:[%s0 + $0x38] sm:$0xff]
  %v22 = vld [vmem:[%s0 + $0x40] sm:$0xff]
  %v23 = vld [vmem:[%s0 + $0x48] sm:$0xff]
  %v24 = vld [vmem:[%s0 + $0x50] sm:$0xff]
  %v25 = vld [vmem:[%s0 + $0x58] sm:$0xff]
  %v26 = vld [vmem:[%s0 + $0x60] sm:$0xff]
  %v27 = vld [vmem:[%s0 + $0x68] sm:$0xff]
  %v28 = vld [vmem:[%s0 + $0x70] sm:$0xff]
  %v29 = vld [vmem:[%s0 + $0x78] sm:$0xff]
  %v30 = vld [vmem:[%s0 + $0x80] sm:$0xff]
  %v31 = vld [vmem:[%s0 + $0x88] sm:$0xff]
  %v32 = vld [vmem:[%s0 + $0x90] sm:$0xff]
  %v33 = vld [vmem:[%s0 + $0x98] sm:$0xff]
  %v34 = vld [vmem:[%s0 + $0xa0] sm:$0xff]
  %v35 = vld [vmem:[%s0 + $0xa8] sm:$0xff]
  %v36 = vld [vmem:[%s0 + $0xb0] sm:$0xff]
  %v37 = vld [vmem:[%s0 + $0xb8] sm:$0xff]
  %v38 = vld [vmem:[%s0 + $0xc0] sm:$0xff]
  %v39 = vld [vmem:[%s0 + $0xc8] sm:$0xff]
  %v40 = vld [vmem:[%s0 + $0xd0] sm:$0xff]
  %v41 = vld [vmem:[%s0 + $0xd8] sm:$0xff]
  %v42 = vld [vmem:[%s0 + $0xe0] sm:$0xff]
  %v43 = vld [vmem:[%s0 + $0xe8] sm:$0xff]
  %v44 = vld [vmem:[%s0 + $0xf0] sm:$0xff]
  %v45 = vld [vmem:[%s0 + $0xf8] sm:$0xff]
  %v46 = vld [vmem:[%s0 + $0x100] sm:$0xff]
  %v47 = vld [vmem:[%s0 + $0x108] sm:$0xff]
  %v48 = vld [vmem:[%s0 + $0x110] sm:$0xff]
  %v49 = vld [vmem:[%s0 + $0x118] sm:$0xff]
  %v50 = vld [vmem:[%s0 + $0x120] sm:$0xff]
  %v51 = vld [vmem:[%s0 + $0x128] sm:$0xff]
  %v52 = vld [vmem:[%s0 + $0x130] sm:$0xff]
  %v53 = vld [vmem:[%s0 + $0x138] sm:$0xff]
  %v54 = vld [vmem:[%s0 + $0x140] sm:$0xff]
  %v55 = vld [vmem:[%s0 + $0x148] sm:$0xff]
  %v56 = vld [vmem:[%s0 + $0x150] sm:$0xff]
  %v57 = vld [vmem:[%s0 + $0x158] sm:$0xff]
  %v58 = vld [vmem:[%s0 + $0x160] sm:$0xff]
  %v59 = vld [vmem:[%s0 + $0x168] sm:$0xff]
  %v60 = vld [vmem:[%s0 + $0x170] sm:$0xff]
  %v61 = vld [vmem:[%s0 + $0x178] sm:$0xff]
  %v62 = vld [vmem:[%s0 + $0x180] sm:$0xff]
  %v63 = vld [vmem:[%s0 + $0x188] sm:$0xff]
  %v64 = vld [vmem:[%s0 + $0x190] sm:$0xff]
  %v65 = vld [vmem:[%s0 + $0x198] sm:$0xff]
  %v66 = vld [vmem:[%s0 + $0x1a0] sm:$0xff]
  %v67 = vld [vmem:[%s0 + $0x1a8] sm:$0xff]
  %v68 = vld [vmem:[%s0 + $0x1b0] sm:$0xff]
  %v69 = vld [vmem:[%s0 + $0x1b8] sm:$0xff]
  %v70 = vld [vmem:[%s0 + $0x1c0] sm:$0xff]
  %v71 = vld [vmem:[%s0 + $0x1c8] sm:$0xff]
  %v72 = vld [vmem:[%s0 + $0x1d0] sm:$0xff]
  %v73 = vld [vmem:[%s0 + $0x1d8] sm:$0xff]
  %v74 = vld [vmem:[%s0 + $0x1e0] sm:$0xff]
  %v75 = vld [vmem:[%s0 + $0x1e8] sm:$0xff]
  %v76 = vld [vmem:[%s0 + $0x1f0] sm:$0xff]
  %v77 = vld [vmem:[%s0 + $0x1f8] sm:$0xff]
  %v78 = vld [vmem:[%s0 + $0x200] sm:$0xff]
  %v79 = vld [vmem:[%s0 + $0x208] sm:$0xff]
  %v80 = vld [vmem:[%s0 + $0x210] sm:$0xff]
  %v81 = vld [vmem:[%s0 + $0x218] sm:$0xff]
  %v82 = vld [vmem:[%s0 + $0x220] sm:$0xff]
  %v83 = vld [vmem:[%s0 + $0x228] sm:$0xff]
  %v84 = vld [vmem:[%s0 + $0x230] sm:$0xff]
  %v85 = vld [vmem:[%s0 + $0x238] sm:$0xff]
  %v86 = vld [vmem:[%s0 + $0x240] sm:$0xff]
  %v87 = vld [vmem:[%s0 + $0x248] sm:$0xff]
  %v88 = vld [vmem:[%s0 + $0x250] sm:$0xff]
  %v89 = vld [vmem:[%s0 + $0x258] sm:$0xff]
  %v90 = vld [vmem:[%s0 + $0x260] sm:$0xff]
  %v91 = vld [vmem:[%s0 + $0x268] sm:$0xff]
  %v92 = vld [vmem:[%s0 + $0x270] sm:$0xff]
  %v93 = vld [vmem:[%s0 + $0x278] sm:$0xff]
  %v94 = vld [vmem:[%s0 + $0x280] sm:$0xff]
  %v95 = vld [vmem:[%s0 + $0x288] sm:$0xff]
  %v96 = vld [vmem:[%s0 + $0x290] sm:$0xff]
  %v97 = vld [vmem:[%s0 + $0x298] sm:$0xff]
  %v98 = vld [vmem:[%s0 + $0x2a0] sm:$0xff]
  %v99 = vld [vmem:[%s0 + $0x2a8] sm:$0xff]
  %v100 = vld [vmem:[%s0 + $0x2b0] sm:$0xff]
  %v101 = vld [vmem:[%s0 + $0x2b8] sm:$0xff]
  %v102 = vld [vmem:[%s0 + $0x2c0] sm:$0xff]
  %v103 = vld [vmem:[%s0 + $0x2c8] sm:$0xff]
  %v104 = vld [vmem:[%s0 + $0x2d0] sm:$0xff]
  %v105 = vld [vmem:[%s0 + $0x2d8] sm:$0xff]
  %v106 = vld [vmem:[%s0 + $0x2e0] sm:$0xff]
  %v107 = vld [vmem:[%s0 + $0x2e8] sm:$0xff]
  %v108 = vld [vmem:[%s0 + $0x2f0] sm:$0xff]
  %v109 = vld [vmem:[%s0 + $0x2f8] sm:$0xff]
  %v110 = vld [vmem:[%s0 + $0x300] sm:$0xff]
  %v111 = vld [vmem:[%s0 + $0x308] sm:$0xff]
  %v112 = vld [vmem:[%s0 + $0x310] sm:$0xff]
  %v113 = vld [vmem:[%s0 + $0x318] sm:$0xff]
  %v114 = vld [vmem:[%s0 + $0x320] sm:$0xff]
  %v115 = vld [vmem:[%s0 + $0x328] sm:$0xff]
  %v116 = vld [vmem:[%s0 + $0x330] sm:$0xff]
  %v117 = vld [vmem:[%s0 + $0x338] sm:$0xff]
  %v118 = vld [vmem:[%s0 + $0x340] sm:$0xff]
  %v119 = vld [vmem:[%s0 + $0x348] sm:$0xff]
  %v120 = vld [vmem:[%s0 + $0x350] sm:$0xff]
  %v121 = vld [vmem:[%s0 + $0x358] sm:$0xff]
  %v122 = vld [vmem:[%s0 + $0x360] sm:$0xff]
  %v123 = vld [vmem:[%s0 + $0x368] sm:$0xff]
  %v124 = vld [vmem:[%s0 + $0x370] sm:$0xff]
  %v125 = vld [vmem:[%s0 + $0x378] sm:$0xff]
  %v126 = vld [vmem:[%s0 + $0x380] sm:$0xff]
  %v127 = vld [vmem:[%s0 + $0x388] sm:$0xff]
  %v128 = vld [vmem:[%s0 + $0x390] sm:$0xff]
  %v129 = vld [vmem:[%s0 + $0x398] sm:$0xff]
  %v130 = vld [vmem:[%s0 + $0x3a0] sm:$0xff]
  %v131 = vld [vmem:[%s0 + $0x3a8] sm:$0xff]
  %v132 = vld [vmem:[%s0 + $0x3b0] sm:$0xff]
  %v133 = vld [vmem:[%s0 + $0x3b8] sm:$0xff]
  %v134 = vld [vmem:[%s0 + $0x3c0] sm:$0xff]
  %v135 = vld [vmem:[%s0 + $0x3c8] sm:$0xff]
  %v136 = vld [vmem:[%s0 + $0x3d0] sm:$0xff]
  %v137 = vld [vmem:[%s0 + $0x3d8] sm:$0xff]
  %v138 = vld [vmem:[%s0 + $0x3e0] sm:$0xff]
  %v139 = vld [vmem:[%s0 + $0x3e8] sm:$0xff]
  %v140 = vld [vmem:[%s0 + $0x3f0] sm:$0xff]
  %v141 = vld [vmem:[%s0 + $0x3f8] sm:$0xff]
  %v142 = vld [vmem:[%s0 + $0x400] sm:$0xff]
  %v143 = vld [vmem:[%s0 + $0x408] sm:$0xff]
  %v144 = vld [vmem:[%s0 + $0x410] sm:$0xff]
  %v145 = vld [vmem:[%s0 + $0x418] sm:$0xff]
  %v146 = vld [vmem:[%s0 + $0x420] sm:$0xff]
  %v147 = vld [vmem:[%s0 + $0x428] sm:$0xff]
  %v148 = vld [vmem:[%s0 + $0x430] sm:$0xff]
  %v149 = vld [vmem:[%s0 + $0x438] sm:$0xff]
  %v150 = vld [vmem:[%s0 + $0x440] sm:$0xff]
  %v151 = vld [vmem:[%s0 + $0x448] sm:$0xff]
  %v152 = vld [vmem:[%s0 + $0x450] sm:$0xff]
  %v153 = vld [vmem:[%s0 + $0x458] sm:$0xff]
  %v154 = vld [vmem:[%s0 + $0x460] sm:$0xff]
  %v155 = vld [vmem:[%s0 + $0x468] sm:$0xff]
  %v156 = vld [vmem:[%s0 + $0x470] sm:$0xff]
  %v157 = vld [vmem:[%s0 + $0x478] sm:$0xff]
  %v158 = vld [vmem:[%s0 + $0x480] sm:$0xff]
  %v159 = vld [vmem:[%s0 + $0x488] sm:$0xff]
  %v160 = vld [vmem:[%s0 + $0x490] sm:$0xff]
  %v161 = vld [vmem:[%s0 + $0x498] sm:$0xff]
  %v162 = vld [vmem:[%s0 + $0x4a0] sm:$0xff]
  %v163 = vld [vmem:[%s0 + $0x4a8] sm:$0xff]
  %v164 = vld [vmem:[%s0 + $0x4b0] sm:$0xff]
  %v165 = vld [vmem:[%s0 + $0x4b8] sm:$0xff]
  %v166 = vld [vmem:[%s0 + $0x4c0] sm:$0xff]
  %v167 = vld [vmem:[%s0 + $0x4c8] sm:$0xff]
  %v168 = vld [vmem:[%s0 + $0x4d0] sm:$0xff]
  %v169 = vld [vmem:[%s0 + $0x4d8] sm:$0xff]
  %v170 = vld [vmem:[%s0 + $0x4e0] sm:$0xff]
  %v171 = vld [vmem:[%s0 + $0x4e8] sm:$0xff]
  %v172 = vld [vmem:[%s0 + $0x4f0] sm:$0xff]
  %v173 = vld [vmem:[%s0 + $0x4f8] sm:$0xff]
  %v174 = vld [vmem:[%s0 + $0x500] sm:$0xff]
  %v175 = vld [vmem:[%s0 + $0x508] sm:$0xff]
  %v176 = vld [vmem:[%s0 + $0x510] sm:$0xff]
  %v177 = vld [vmem:[%s0 + $0x518] sm:$0xff]
  %v178 = vld [vmem:[%s0 + $0x520] sm:$0xff]
  %v179 = vld [vmem:[%s0 + $0x528] sm:$0xff]
  %v180 = vld [vmem:[%s0 + $0x530] sm:$0xff]
  %v181 = vld [vmem:[%s0 + $0x538] sm:$0xff]
  %v182 = vld [vmem:[%s0 + $0x540] sm:$0xff]
  %v183 = vld [vmem:[%s0 + $0x548] sm:$0xff]
  %v184 = vld [vmem:[%s0 + $0x550] sm:$0xff]
  %v185 = vld [vmem:[%s0 + $0x558] sm:$0xff]
  %v186 = vld [vmem:[%s0 + $0x560] sm:$0xff]
  %v187 = vld [vmem:[%s0 + $0x568] sm:$0xff]
  %v188 = vld [vmem:[%s0 + $0x570] sm:$0xff]
  %v189 = vld [vmem:[%s0 + $0x578] sm:$0xff]
  %v190 = vld [vmem:[%s0 + $0x580] sm:$0xff]
  %v191 = vld [vmem:[%s0 + $0x588] sm:$0xff]
  %v192 = vld [vmem:[%s0 + $0x590] sm:$0xff]
  %v193 = vld [vmem:[%s0 + $0x598] sm:$0xff]
  %v194 = vld [vmem:[%s0 + $0x5a0] sm:$0xff]
  %v195 = vld [vmem:[%s0 + $0x5a8] sm:$0xff]
  %v196 = vld [vmem:[%s0 + $0x5b0] sm:$0xff]
  %v197 = vld [vmem:[%s0 + $0x5b8] sm:$0xff]
  %v198 = vld [vmem:[%s0 + $0x5c0] sm:$0xff]
  %v199 = vld [vmem:[%s0 + $0x5c8] sm:$0xff]
  %v200 = vld [vmem:[%s0 + $0x5d0] sm:$0xff]
  %v201 = vld [vmem:[%s0 + $0x5d8] sm:$0xff]
  %v202 = vld [vmem:[%s0 + $0x5e0] sm:$0xff]
  %v203 = vld [vmem:[%s0 + $0x5e8] sm:$0xff]
  %v204 = vld [vmem:[%s0 + $0x5f0] sm:$0xff]
  %v205 = vld [vmem:[%s0 + $0x5f8] sm:$0xff]
  %v206 = vld [vmem:[%s0 + $0x600] sm:$0xff]
  %v207 = vld [vmem:[%s0 + $0x608] sm:$0xff]
  %v208 = vld [vmem:[%s0 + $0x610] sm:$0xff]
  %v209 = vld [vmem:[%s0 + $0x618] sm:$0xff]
  %v210 = vld [vmem:[%s1] sm:$0xff]
  %v211 = vld [vmem:[%s1 + $0x8] sm:$0xff]
  %v212 = vld [vmem:[%s1 + $0x10] sm:$0xff]
  %v213 = vld [vmem:[%s1 + $0x18] sm:$0xff]
  %vm214 = vcmask 261120
  %v216 = vsel %vm214, %v14, 0
  %v219 = vsel %vm214, %v15, 0
  %v222 = vsel %vm214, %v16, 0
  %v225 = vsel %vm214, %v17, 0
  %v228 = vsel %vm214, %v18, 0
  %v231 = vsel %vm214, %v19, 0
  %v234 = vsel %vm214, %v20, 0
  %v237 = vsel %vm214, %v21, 0
  %v240 = vsel %vm214, %v22, 0
  %v243 = vsel %vm214, %v23, 0
  %v246 = vsel %vm214, %v24, 0
  %v249 = vsel %vm214, %v25, 0
  %v252 = vsel %vm214, %v26, 0
  %v255 = vsel %vm214, %v27, 0
  %v258 = vsel %vm214, %v28, 0
  %v261 = vsel %vm214, %v29, 0
  %v264 = vsel %vm214, %v30, 0
  %v267 = vsel %vm214, %v31, 0
  %v270 = vsel %vm214, %v32, 0
  %v273 = vsel %vm214, %v33, 0
  %v276 = vsel %vm214, %v34, 0
  %v279 = vsel %vm214, %v35, 0
  %v282 = vsel %vm214, %v36, 0
  %v285 = vsel %vm214, %v37, 0
  %v288 = vsel %vm214, %v38, 0
  %v291 = vsel %vm214, %v39, 0
  %v294 = vsel %vm214, %v40, 0
  %v297 = vsel %vm214, %v41, 0
  %v300 = vsel %vm214, %v42, 0
  %v303 = vsel %vm214, %v43, 0
  %v306 = vsel %vm214, %v44, 0
  %v309 = vsel %vm214, %v45, 0
  %v312 = vsel %vm214, %v46, 0
  %v315 = vsel %vm214, %v47, 0
  %v318 = vsel %vm214, %v48, 0
  %v321 = vsel %vm214, %v49, 0
  %v324 = vsel %vm214, %v50, 0
  %v327 = vsel %vm214, %v51, 0
  %v330 = vsel %vm214, %v52, 0
  %v333 = vsel %vm214, %v53, 0
  %v336 = vsel %vm214, %v54, 0
  %v339 = vsel %vm214, %v55, 0
  %v342 = vsel %vm214, %v56, 0
  %v345 = vsel %vm214, %v57, 0
  %v348 = vsel %vm214, %v58, 0
  %v351 = vsel %vm214, %v59, 0
  %v354 = vsel %vm214, %v60, 0
  %v357 = vsel %vm214, %v61, 0
  %v360 = vsel %vm214, %v62, 0
  %v363 = vsel %vm214, %v63, 0
  %v366 = vsel %vm214, %v64, 0
  %v369 = vsel %vm214, %v65, 0
  %v372 = vsel %vm214, %v66, 0
  %v375 = vsel %vm214, %v67, 0
  %v378 = vsel %vm214, %v68, 0
  %v381 = vsel %vm214, %v69, 0
  %v384 = vsel %vm214, %v70, 0
  %v387 = vsel %vm214, %v71, 0
  %v390 = vsel %vm214, %v72, 0
  %v393 = vsel %vm214, %v73, 0
  %v396 = vsel %vm214, %v74, 0
  %v399 = vsel %vm214, %v75, 0
  %v402 = vsel %vm214, %v76, 0
  %v405 = vsel %vm214, %v77, 0
  %v408 = vsel %vm214, %v78, 0
  %v411 = vsel %vm214, %v79, 0
  %v414 = vsel %vm214, %v80, 0
  %v417 = vsel %vm214, %v81, 0
  %v420 = vsel %vm214, %v82, 0
  %v423 = vsel %vm214, %v83, 0
  %v426 = vsel %vm214, %v84, 0
  %v429 = vsel %vm214, %v85, 0
  %v432 = vsel %vm214, %v86, 0
  %v435 = vsel %vm214, %v87, 0
  %v438 = vsel %vm214, %v88, 0
  %v441 = vsel %vm214, %v89, 0
  %v444 = vsel %vm214, %v90, 0
  %v447 = vsel %vm214, %v91, 0
  %v450 = vsel %vm214, %v92, 0
  %v453 = vsel %vm214, %v93, 0
  %v456 = vsel %vm214, %v94, 0
  %v459 = vsel %vm214, %v95, 0
  %v462 = vsel %vm214, %v96, 0
  %v465 = vsel %vm214, %v97, 0
  %v468 = vsel %vm214, %v98, 0
  %v471 = vsel %vm214, %v99, 0
  %v474 = vsel %vm214, %v100, 0
  %v477 = vsel %vm214, %v101, 0
  %v480 = vsel %vm214, %v102, 0
  %v483 = vsel %vm214, %v103, 0
  %v486 = vsel %vm214, %v104, 0
  %v489 = vsel %vm214, %v105, 0
  %v492 = vsel %vm214, %v106, 0
  %v495 = vsel %vm214, %v107, 0
  %v498 = vsel %vm214, %v108, 0
  %v501 = vsel %vm214, %v109, 0
  %v504 = vsel %vm214, %v110, 0
  %v507 = vsel %vm214, %v111, 0
  %v510 = vsel %vm214, %v112, 0
  %v513 = vsel %vm214, %v113, 0
  %v516 = vsel %vm214, %v114, 0
  %v519 = vsel %vm214, %v115, 0
  %v522 = vsel %vm214, %v116, 0
  %v525 = vsel %vm214, %v117, 0
  %v528 = vsel %vm214, %v118, 0
  %v531 = vsel %vm214, %v119, 0
  %v534 = vsel %vm214, %v120, 0
  %v537 = vsel %vm214, %v121, 0
  %v540 = vsel %vm214, %v122, 0
  %v543 = vsel %vm214, %v123, 0
  %v546 = vsel %vm214, %v124, 0
  %v549 = vsel %vm214, %v125, 0
  %v552 = vsel %vm214, %v126, 0
  %v555 = vsel %vm214, %v127, 0
  %v558 = vsel %vm214, %v128, 0
  %v561 = vsel %vm214, %v129, 0
  %v564 = vsel %vm214, %v130, 0
  %v567 = vsel %vm214, %v131, 0
  %v570 = vsel %vm214, %v132, 0
  %v573 = vsel %vm214, %v133, 0
  %v576 = vsel %vm214, %v134, 0
  %v579 = vsel %vm214, %v135, 0
  %v582 = vsel %vm214, %v136, 0
  %v585 = vsel %vm214, %v137, 0
  %v588 = vsel %vm214, %v138, 0
  %v591 = vsel %vm214, %v139, 0
  %v594 = vsel %vm214, %v140, 0
  %v597 = vsel %vm214, %v141, 0
  %v600 = vsel %vm214, %v142, 0
  %v603 = vsel %vm214, %v143, 0
  %v606 = vsel %vm214, %v144, 0
  %v609 = vsel %vm214, %v145, 0
  %v612 = vsel %vm214, %v146, 0
  %v615 = vsel %vm214, %v147, 0
  %v618 = vsel %vm214, %v148, 0
  %v621 = vsel %vm214, %v149, 0
  %v624 = vsel %vm214, %v150, 0
  %v627 = vsel %vm214, %v151, 0
  %v630 = vsel %vm214, %v152, 0
  %v633 = vsel %vm214, %v153, 0
  %v636 = vsel %vm214, %v154, 0
  %v639 = vsel %vm214, %v155, 0
  %v642 = vsel %vm214, %v156, 0
  %v645 = vsel %vm214, %v157, 0
  %v648 = vsel %vm214, %v158, 0
  %v651 = vsel %vm214, %v159, 0
  %v654 = vsel %vm214, %v160, 0
  %v657 = vsel %vm214, %v161, 0
  %v660 = vsel %vm214, %v162, 0
  %v663 = vsel %vm214, %v163, 0
  %v666 = vsel %vm214, %v164, 0
  %v669 = vsel %vm214, %v165, 0
  %v672 = vsel %vm214, %v166, 0
  %v675 = vsel %vm214, %v167, 0
  %v678 = vsel %vm214, %v168, 0
  %v681 = vsel %vm214, %v169, 0
  %v684 = vsel %vm214, %v170, 0
  %v687 = vsel %vm214, %v171, 0
  %v690 = vsel %vm214, %v172, 0
  %v693 = vsel %vm214, %v173, 0
  %v696 = vsel %vm214, %v174, 0
  %v699 = vsel %vm214, %v175, 0
  %v702 = vsel %vm214, %v176, 0
  %v705 = vsel %vm214, %v177, 0
  %v708 = vsel %vm214, %v178, 0
  %v711 = vsel %vm214, %v179, 0
  %v714 = vsel %vm214, %v180, 0
  %v717 = vsel %vm214, %v181, 0
  %v720 = vsel %vm214, %v182, 0
  %v723 = vsel %vm214, %v183, 0
  %v726 = vsel %vm214, %v184, 0
  %v729 = vsel %vm214, %v185, 0
  %v732 = vsel %vm214, %v186, 0
  %v735 = vsel %vm214, %v187, 0
  %v738 = vsel %vm214, %v188, 0
  %v741 = vsel %vm214, %v189, 0
  %v744 = vsel %vm214, %v190, 0
  %v747 = vsel %vm214, %v191, 0
  %v750 = vsel %vm214, %v192, 0
  %v753 = vsel %vm214, %v193, 0
  %v756 = vsel %vm214, %v194, 0
  %v759 = vsel %vm214, %v195, 0
  %v762 = vsel %vm214, %v196, 0
  %v765 = vsel %vm214, %v197, 0
  %v768 = vsel %vm214, %v198, 0
  %v771 = vsel %vm214, %v199, 0
  %v774 = vsel %vm214, %v200, 0
  %v777 = vsel %vm214, %v201, 0
  %v780 = vsel %vm214, %v202, 0
  %v783 = vsel %vm214, %v203, 0
  %v786 = vsel %vm214, %v204, 0
  %v789 = vsel %vm214, %v205, 0
  %v792 = vsel %vm214, %v206, 0
  %v795 = vsel %vm214, %v207, 0
  %v798 = vsel %vm214, %v208, 0
  %v801 = vsel %vm214, %v209, 0
  %803 = vmatpush.msra.mxu0 0.0
  %804 = vmatpush.msra.mxu0 0.0
  %805 = vmatpush.msra.mxu0 0.0
  %806 = vmatpush.msra.mxu0 0.0
  %807 = vmatpush.msra.mxu0 0.0
  %808 = vmatpush.msra.mxu0 0.0
  %809 = vmatpush.msra.mxu0 0.0
  %810 = vmatpush.msra.mxu0 0.0
  %811 = vmatpush.msra.mxu0 0.0
  %812 = vmatpush.msra.mxu0 0.0
  %813 = vmatpush.msra.mxu0 0.0
  %814 = vmatpush.msra.mxu0 0.0
  %815 = vmatpush.msra.mxu0 %v213
  %816 = vmatpush.msra.mxu0 %v212
  %817 = vmatpush.msra.mxu0 %v211
  %818 = vmatpush.msra.mxu0 %v210
  %819 = vmatmul.f32.gmra.mxu0 %v216
  %v820 = vpop.f32.mrf.mxu0
  %v821 = vadd.f32 0.0, %v820
  %822 = vmatmul.f32.gmra.mxu0 %v219
  %v823 = vpop.f32.mrf.mxu0
  %v824 = vadd.f32 0.0, %v823
  %825 = vmatmul.f32.gmra.mxu0 %v222
  %v826 = vpop.f32.mrf.mxu0
  %v827 = vadd.f32 0.0, %v826
  %828 = vmatmul.f32.gmra.mxu0 %v225
  %v829 = vpop.f32.mrf.mxu0
  %v830 = vadd.f32 0.0, %v829
  %831 = vmatmul.f32.gmra.mxu0 %v228
  %v832 = vpop.f32.mrf.mxu0
  %v833 = vadd.f32 0.0, %v832
  %834 = vmatmul.f32.gmra.mxu0 %v231
  %v835 = vpop.f32.mrf.mxu0
  %v836 = vadd.f32 0.0, %v835
  %837 = vmatmul.f32.gmra.mxu0 %v234
  %v838 = vpop.f32.mrf.mxu0
  %v839 = vadd.f32 0.0, %v838
  %840 = vmatmul.f32.gmra.mxu0 %v237
  %v841 = vpop.f32.mrf.mxu0
  %v842 = vadd.f32 0.0, %v841
  %843 = vmatmul.f32.gmra.mxu0 %v240
  %v844 = vpop.f32.mrf.mxu0
  %v845 = vadd.f32 0.0, %v844
  %846 = vmatmul.f32.gmra.mxu0 %v243
  %v847 = vpop.f32.mrf.mxu0
  %v848 = vadd.f32 0.0, %v847
  %849 = vmatmul.f32.gmra.mxu0 %v246
  %v850 = vpop.f32.mrf.mxu0
  %v851 = vadd.f32 0.0, %v850
  %852 = vmatmul.f32.gmra.mxu0 %v249
  %v853 = vpop.f32.mrf.mxu0
  %v854 = vadd.f32 0.0, %v853
  %855 = vmatmul.f32.gmra.mxu0 %v252
  %v856 = vpop.f32.mrf.mxu0
  %v857 = vadd.f32 0.0, %v856
  %858 = vmatmul.f32.gmra.mxu0 %v255
  %v859 = vpop.f32.mrf.mxu0
  %v860 = vadd.f32 0.0, %v859
  %861 = vmatmul.f32.gmra.mxu0 %v258
  %v862 = vpop.f32.mrf.mxu0
  %v863 = vadd.f32 0.0, %v862
  %864 = vmatmul.f32.gmra.mxu0 %v261
  %v865 = vpop.f32.mrf.mxu0
  %v866 = vadd.f32 0.0, %v865
  %867 = vmatmul.f32.gmra.mxu0 %v264
  %v868 = vpop.f32.mrf.mxu0
  %v869 = vadd.f32 0.0, %v868
  %870 = vmatmul.f32.gmra.mxu0 %v267
  %v871 = vpop.f32.mrf.mxu0
  %v872 = vadd.f32 0.0, %v871
  %873 = vmatmul.f32.gmra.mxu0 %v270
  %v874 = vpop.f32.mrf.mxu0
  %v875 = vadd.f32 0.0, %v874
  %876 = vmatmul.f32.gmra.mxu0 %v273
  %v877 = vpop.f32.mrf.mxu0
  %v878 = vadd.f32 0.0, %v877
  %879 = vmatmul.f32.gmra.mxu0 %v276
  %v880 = vpop.f32.mrf.mxu0
  %v881 = vadd.f32 0.0, %v880
  %882 = vmatmul.f32.gmra.mxu0 %v279
  %v883 = vpop.f32.mrf.mxu0
  %v884 = vadd.f32 0.0, %v883
  %885 = vmatmul.f32.gmra.mxu0 %v282
  %v886 = vpop.f32.mrf.mxu0
  %v887 = vadd.f32 0.0, %v886
  %888 = vmatmul.f32.gmra.mxu0 %v285
  %v889 = vpop.f32.mrf.mxu0
  %v890 = vadd.f32 0.0, %v889
  %891 = vmatmul.f32.gmra.mxu0 %v288
  %v892 = vpop.f32.mrf.mxu0
  %v893 = vadd.f32 0.0, %v892
  %894 = vmatmul.f32.gmra.mxu0 %v291
  %v895 = vpop.f32.mrf.mxu0
  %v896 = vadd.f32 0.0, %v895
  %897 = vmatmul.f32.gmra.mxu0 %v294
  %v898 = vpop.f32.mrf.mxu0
  %v899 = vadd.f32 0.0, %v898
  %900 = vmatmul.f32.gmra.mxu0 %v297
  %v901 = vpop.f32.mrf.mxu0
  %v902 = vadd.f32 0.0, %v901
  %903 = vmatmul.f32.gmra.mxu0 %v300
  %v904 = vpop.f32.mrf.mxu0
  %v905 = vadd.f32 0.0, %v904
  %906 = vmatmul.f32.gmra.mxu0 %v303
  %v907 = vpop.f32.mrf.mxu0
  %v908 = vadd.f32 0.0, %v907
  %909 = vmatmul.f32.gmra.mxu0 %v306
  %v910 = vpop.f32.mrf.mxu0
  %v911 = vadd.f32 0.0, %v910
  %912 = vmatmul.f32.gmra.mxu0 %v309
  %v913 = vpop.f32.mrf.mxu0
  %v914 = vadd.f32 0.0, %v913
  %915 = vmatmul.f32.gmra.mxu0 %v312
  %v916 = vpop.f32.mrf.mxu0
  %v917 = vadd.f32 0.0, %v916
  %918 = vmatmul.f32.gmra.mxu0 %v315
  %v919 = vpop.f32.mrf.mxu0
  %v920 = vadd.f32 0.0, %v919
  %921 = vmatmul.f32.gmra.mxu0 %v318
  %v922 = vpop.f32.mrf.mxu0
  %v923 = vadd.f32 0.0, %v922
  %924 = vmatmul.f32.gmra.mxu0 %v321
  %v925 = vpop.f32.mrf.mxu0
  %v926 = vadd.f32 0.0, %v925
  %927 = vmatmul.f32.gmra.mxu0 %v324
  %v928 = vpop.f32.mrf.mxu0
  %v929 = vadd.f32 0.0, %v928
  %930 = vmatmul.f32.gmra.mxu0 %v327
  %v931 = vpop.f32.mrf.mxu0
  %v932 = vadd.f32 0.0, %v931
  %933 = vmatmul.f32.gmra.mxu0 %v330
  %v934 = vpop.f32.mrf.mxu0
  %v935 = vadd.f32 0.0, %v934
  %936 = vmatmul.f32.gmra.mxu0 %v333
  %v937 = vpop.f32.mrf.mxu0
  %v938 = vadd.f32 0.0, %v937
  %939 = vmatmul.f32.gmra.mxu0 %v336
  %v940 = vpop.f32.mrf.mxu0
  %v941 = vadd.f32 0.0, %v940
  %942 = vmatmul.f32.gmra.mxu0 %v339
  %v943 = vpop.f32.mrf.mxu0
  %v944 = vadd.f32 0.0, %v943
  %945 = vmatmul.f32.gmra.mxu0 %v342
  %v946 = vpop.f32.mrf.mxu0
  %v947 = vadd.f32 0.0, %v946
  %948 = vmatmul.f32.gmra.mxu0 %v345
  %v949 = vpop.f32.mrf.mxu0
  %v950 = vadd.f32 0.0, %v949
  %951 = vmatmul.f32.gmra.mxu0 %v348
  %v952 = vpop.f32.mrf.mxu0
  %v953 = vadd.f32 0.0, %v952
  %954 = vmatmul.f32.gmra.mxu0 %v351
  %v955 = vpop.f32.mrf.mxu0
  %v956 = vadd.f32 0.0, %v955
  %957 = vmatmul.f32.gmra.mxu0 %v354
  %v958 = vpop.f32.mrf.mxu0
  %v959 = vadd.f32 0.0, %v958
  %960 = vmatmul.f32.gmra.mxu0 %v357
  %v961 = vpop.f32.mrf.mxu0
  %v962 = vadd.f32 0.0, %v961
  %963 = vmatmul.f32.gmra.mxu0 %v360
  %v964 = vpop.f32.mrf.mxu0
  %v965 = vadd.f32 0.0, %v964
  %966 = vmatmul.f32.gmra.mxu0 %v363
  %v967 = vpop.f32.mrf.mxu0
  %v968 = vadd.f32 0.0, %v967
  %969 = vmatmul.f32.gmra.mxu0 %v366
  %v970 = vpop.f32.mrf.mxu0
  %v971 = vadd.f32 0.0, %v970
  %972 = vmatmul.f32.gmra.mxu0 %v369
  %v973 = vpop.f32.mrf.mxu0
  %v974 = vadd.f32 0.0, %v973
  %975 = vmatmul.f32.gmra.mxu0 %v372
  %v976 = vpop.f32.mrf.mxu0
  %v977 = vadd.f32 0.0, %v976
  %978 = vmatmul.f32.gmra.mxu0 %v375
  %v979 = vpop.f32.mrf.mxu0
  %v980 = vadd.f32 0.0, %v979
  %981 = vmatmul.f32.gmra.mxu0 %v378
  %v982 = vpop.f32.mrf.mxu0
  %v983 = vadd.f32 0.0, %v982
  %984 = vmatmul.f32.gmra.mxu0 %v381
  %v985 = vpop.f32.mrf.mxu0
  %v986 = vadd.f32 0.0, %v985
  %987 = vmatmul.f32.gmra.mxu0 %v384
  %v988 = vpop.f32.mrf.mxu0
  %v989 = vadd.f32 0.0, %v988
  %990 = vmatmul.f32.gmra.mxu0 %v387
  %v991 = vpop.f32.mrf.mxu0
  %v992 = vadd.f32 0.0, %v991
  %993 = vmatmul.f32.gmra.mxu0 %v390
  %v994 = vpop.f32.mrf.mxu0
  %v995 = vadd.f32 0.0, %v994
  %996 = vmatmul.f32.gmra.mxu0 %v393
  %v997 = vpop.f32.mrf.mxu0
  %v998 = vadd.f32 0.0, %v997
  %999 = vmatmul.f32.gmra.mxu0 %v396
  %v1000 = vpop.f32.mrf.mxu0
  %v1001 = vadd.f32 0.0, %v1000
  %1002 = vmatmul.f32.gmra.mxu0 %v399
  %v1003 = vpop.f32.mrf.mxu0
  %v1004 = vadd.f32 0.0, %v1003
  %1005 = vmatmul.f32.gmra.mxu0 %v402
  %v1006 = vpop.f32.mrf.mxu0
  %v1007 = vadd.f32 0.0, %v1006
  %1008 = vmatmul.f32.gmra.mxu0 %v405
  %v1009 = vpop.f32.mrf.mxu0
  %v1010 = vadd.f32 0.0, %v1009
  %1011 = vmatmul.f32.gmra.mxu0 %v408
  %v1012 = vpop.f32.mrf.mxu0
  %v1013 = vadd.f32 0.0, %v1012
  %1014 = vmatmul.f32.gmra.mxu0 %v411
  %v1015 = vpop.f32.mrf.mxu0
  %v1016 = vadd.f32 0.0, %v1015
  %1017 = vmatmul.f32.gmra.mxu0 %v414
  %v1018 = vpop.f32.mrf.mxu0
  %v1019 = vadd.f32 0.0, %v1018
  %1020 = vmatmul.f32.gmra.mxu0 %v417
  %v1021 = vpop.f32.mrf.mxu0
  %v1022 = vadd.f32 0.0, %v1021
  %1023 = vmatmul.f32.gmra.mxu0 %v420
  %v1024 = vpop.f32.mrf.mxu0
  %v1025 = vadd.f32 0.0, %v1024
  %1026 = vmatmul.f32.gmra.mxu0 %v423
  %v1027 = vpop.f32.mrf.mxu0
  %v1028 = vadd.f32 0.0, %v1027
  %1029 = vmatmul.f32.gmra.mxu0 %v426
  %v1030 = vpop.f32.mrf.mxu0
  %v1031 = vadd.f32 0.0, %v1030
  %1032 = vmatmul.f32.gmra.mxu0 %v429
  %v1033 = vpop.f32.mrf.mxu0
  %v1034 = vadd.f32 0.0, %v1033
  %1035 = vmatmul.f32.gmra.mxu0 %v432
  %v1036 = vpop.f32.mrf.mxu0
  %v1037 = vadd.f32 0.0, %v1036
  %1038 = vmatmul.f32.gmra.mxu0 %v435
  %v1039 = vpop.f32.mrf.mxu0
  %v1040 = vadd.f32 0.0, %v1039
  %1041 = vmatmul.f32.gmra.mxu0 %v438
  %v1042 = vpop.f32.mrf.mxu0
  %v1043 = vadd.f32 0.0, %v1042
  %1044 = vmatmul.f32.gmra.mxu0 %v441
  %v1045 = vpop.f32.mrf.mxu0
  %v1046 = vadd.f32 0.0, %v1045
  %1047 = vmatmul.f32.gmra.mxu0 %v444
  %v1048 = vpop.f32.mrf.mxu0
  %v1049 = vadd.f32 0.0, %v1048
  %1050 = vmatmul.f32.gmra.mxu0 %v447
  %v1051 = vpop.f32.mrf.mxu0
  %v1052 = vadd.f32 0.0, %v1051
  %1053 = vmatmul.f32.gmra.mxu0 %v450
  %v1054 = vpop.f32.mrf.mxu0
  %v1055 = vadd.f32 0.0, %v1054
  %1056 = vmatmul.f32.gmra.mxu0 %v453
  %v1057 = vpop.f32.mrf.mxu0
  %v1058 = vadd.f32 0.0, %v1057
  %1059 = vmatmul.f32.gmra.mxu0 %v456
  %v1060 = vpop.f32.mrf.mxu0
  %v1061 = vadd.f32 0.0, %v1060
  %1062 = vmatmul.f32.gmra.mxu0 %v459
  %v1063 = vpop.f32.mrf.mxu0
  %v1064 = vadd.f32 0.0, %v1063
  %1065 = vmatmul.f32.gmra.mxu0 %v462
  %v1066 = vpop.f32.mrf.mxu0
  %v1067 = vadd.f32 0.0, %v1066
  %1068 = vmatmul.f32.gmra.mxu0 %v465
  %v1069 = vpop.f32.mrf.mxu0
  %v1070 = vadd.f32 0.0, %v1069
  %1071 = vmatmul.f32.gmra.mxu0 %v468
  %v1072 = vpop.f32.mrf.mxu0
  %v1073 = vadd.f32 0.0, %v1072
  %1074 = vmatmul.f32.gmra.mxu0 %v471
  %v1075 = vpop.f32.mrf.mxu0
  %v1076 = vadd.f32 0.0, %v1075
  %1077 = vmatmul.f32.gmra.mxu0 %v474
  %v1078 = vpop.f32.mrf.mxu0
  %v1079 = vadd.f32 0.0, %v1078
  %1080 = vmatmul.f32.gmra.mxu0 %v477
  %v1081 = vpop.f32.mrf.mxu0
  %v1082 = vadd.f32 0.0, %v1081
  %1083 = vmatmul.f32.gmra.mxu0 %v480
  %v1084 = vpop.f32.mrf.mxu0
  %v1085 = vadd.f32 0.0, %v1084
  %1086 = vmatmul.f32.gmra.mxu0 %v483
  %v1087 = vpop.f32.mrf.mxu0
  %v1088 = vadd.f32 0.0, %v1087
  %1089 = vmatmul.f32.gmra.mxu0 %v486
  %v1090 = vpop.f32.mrf.mxu0
  %v1091 = vadd.f32 0.0, %v1090
  %1092 = vmatmul.f32.gmra.mxu0 %v489
  %v1093 = vpop.f32.mrf.mxu0
  %v1094 = vadd.f32 0.0, %v1093
  %1095 = vmatmul.f32.gmra.mxu0 %v492
  %v1096 = vpop.f32.mrf.mxu0
  %v1097 = vadd.f32 0.0, %v1096
  %1098 = vmatmul.f32.gmra.mxu0 %v495
  %v1099 = vpop.f32.mrf.mxu0
  %v1100 = vadd.f32 0.0, %v1099
  %1101 = vmatmul.f32.gmra.mxu0 %v498
  %v1102 = vpop.f32.mrf.mxu0
  %v1103 = vadd.f32 0.0, %v1102
  %1104 = vmatmul.f32.gmra.mxu0 %v501
  %v1105 = vpop.f32.mrf.mxu0
  %v1106 = vadd.f32 0.0, %v1105
  %1107 = vmatmul.f32.gmra.mxu0 %v504
  %v1108 = vpop.f32.mrf.mxu0
  %v1109 = vadd.f32 0.0, %v1108
  %1110 = vmatmul.f32.gmra.mxu0 %v507
  %v1111 = vpop.f32.mrf.mxu0
  %v1112 = vadd.f32 0.0, %v1111
  %1113 = vmatmul.f32.gmra.mxu0 %v510
  %v1114 = vpop.f32.mrf.mxu0
  %v1115 = vadd.f32 0.0, %v1114
  %1116 = vmatmul.f32.gmra.mxu0 %v513
  %v1117 = vpop.f32.mrf.mxu0
  %v1118 = vadd.f32 0.0, %v1117
  %1119 = vmatmul.f32.gmra.mxu0 %v516
  %v1120 = vpop.f32.mrf.mxu0
  %v1121 = vadd.f32 0.0, %v1120
  %1122 = vmatmul.f32.gmra.mxu0 %v519
  %v1123 = vpop.f32.mrf.mxu0
  %v1124 = vadd.f32 0.0, %v1123
  %1125 = vmatmul.f32.gmra.mxu0 %v522
  %v1126 = vpop.f32.mrf.mxu0
  %v1127 = vadd.f32 0.0, %v1126
  %1128 = vmatmul.f32.gmra.mxu0 %v525
  %v1129 = vpop.f32.mrf.mxu0
  %v1130 = vadd.f32 0.0, %v1129
  %1131 = vmatmul.f32.gmra.mxu0 %v528
  %v1132 = vpop.f32.mrf.mxu0
  %v1133 = vadd.f32 0.0, %v1132
  %1134 = vmatmul.f32.gmra.mxu0 %v531
  %v1135 = vpop.f32.mrf.mxu0
  %v1136 = vadd.f32 0.0, %v1135
  %1137 = vmatmul.f32.gmra.mxu0 %v534
  %v1138 = vpop.f32.mrf.mxu0
  %v1139 = vadd.f32 0.0, %v1138
  %1140 = vmatmul.f32.gmra.mxu0 %v537
  %v1141 = vpop.f32.mrf.mxu0
  %v1142 = vadd.f32 0.0, %v1141
  %1143 = vmatmul.f32.gmra.mxu0 %v540
  %v1144 = vpop.f32.mrf.mxu0
  %v1145 = vadd.f32 0.0, %v1144
  %1146 = vmatmul.f32.gmra.mxu0 %v543
  %v1147 = vpop.f32.mrf.mxu0
  %v1148 = vadd.f32 0.0, %v1147
  %1149 = vmatmul.f32.gmra.mxu0 %v546
  %v1150 = vpop.f32.mrf.mxu0
  %v1151 = vadd.f32 0.0, %v1150
  %1152 = vmatmul.f32.gmra.mxu0 %v549
  %v1153 = vpop.f32.mrf.mxu0
  %v1154 = vadd.f32 0.0, %v1153
  %1155 = vmatmul.f32.gmra.mxu0 %v552
  %v1156 = vpop.f32.mrf.mxu0
  %v1157 = vadd.f32 0.0, %v1156
  %1158 = vmatmul.f32.gmra.mxu0 %v555
  %v1159 = vpop.f32.mrf.mxu0
  %v1160 = vadd.f32 0.0, %v1159
  %1161 = vmatmul.f32.gmra.mxu0 %v558
  %v1162 = vpop.f32.mrf.mxu0
  %v1163 = vadd.f32 0.0, %v1162
  %1164 = vmatmul.f32.gmra.mxu0 %v561
  %v1165 = vpop.f32.mrf.mxu0
  %v1166 = vadd.f32 0.0, %v1165
  %1167 = vmatmul.f32.gmra.mxu0 %v564
  %v1168 = vpop.f32.mrf.mxu0
  %v1169 = vadd.f32 0.0, %v1168
  %1170 = vmatmul.f32.gmra.mxu0 %v567
  %v1171 = vpop.f32.mrf.mxu0
  %v1172 = vadd.f32 0.0, %v1171
  %1173 = vmatmul.f32.gmra.mxu0 %v570
  %v1174 = vpop.f32.mrf.mxu0
  %v1175 = vadd.f32 0.0, %v1174
  %1176 = vmatmul.f32.gmra.mxu0 %v573
  %v1177 = vpop.f32.mrf.mxu0
  %v1178 = vadd.f32 0.0, %v1177
  %1179 = vmatmul.f32.gmra.mxu0 %v576
  %v1180 = vpop.f32.mrf.mxu0
  %v1181 = vadd.f32 0.0, %v1180
  %1182 = vmatmul.f32.gmra.mxu0 %v579
  %v1183 = vpop.f32.mrf.mxu0
  %v1184 = vadd.f32 0.0, %v1183
  %1185 = vmatmul.f32.gmra.mxu0 %v582
  %v1186 = vpop.f32.mrf.mxu0
  %v1187 = vadd.f32 0.0, %v1186
  %1188 = vmatmul.f32.gmra.mxu0 %v585
  %v1189 = vpop.f32.mrf.mxu0
  %v1190 = vadd.f32 0.0, %v1189
  %1191 = vmatmul.f32.gmra.mxu0 %v588
  %v1192 = vpop.f32.mrf.mxu0
  %v1193 = vadd.f32 0.0, %v1192
  %1194 = vmatmul.f32.gmra.mxu0 %v591
  %v1195 = vpop.f32.mrf.mxu0
  %v1196 = vadd.f32 0.0, %v1195
  %1197 = vmatmul.f32.gmra.mxu0 %v594
  %v1198 = vpop.f32.mrf.mxu0
  %v1199 = vadd.f32 0.0, %v1198
  %1200 = vmatmul.f32.gmra.mxu0 %v597
  %v1201 = vpop.f32.mrf.mxu0
  %v1202 = vadd.f32 0.0, %v1201
  %1203 = vmatmul.f32.gmra.mxu0 %v600
  %v1204 = vpop.f32.mrf.mxu0
  %v1205 = vadd.f32 0.0, %v1204
  %1206 = vmatmul.f32.gmra.mxu0 %v603
  %v1207 = vpop.f32.mrf.mxu0
  %v1208 = vadd.f32 0.0, %v1207
  %1209 = vmatmul.f32.gmra.mxu0 %v606
  %v1210 = vpop.f32.mrf.mxu0
  %v1211 = vadd.f32 0.0, %v1210
  %1212 = vmatmul.f32.gmra.mxu0 %v609
  %v1213 = vpop.f32.mrf.mxu0
  %v1214 = vadd.f32 0.0, %v1213
  %1215 = vmatmul.f32.gmra.mxu0 %v612
  %v1216 = vpop.f32.mrf.mxu0
  %v1217 = vadd.f32 0.0, %v1216
  %1218 = vmatmul.f32.gmra.mxu0 %v615
  %v1219 = vpop.f32.mrf.mxu0
  %v1220 = vadd.f32 0.0, %v1219
  %1221 = vmatmul.f32.gmra.mxu0 %v618
  %v1222 = vpop.f32.mrf.mxu0
  %v1223 = vadd.f32 0.0, %v1222
  %1224 = vmatmul.f32.gmra.mxu0 %v621
  %v1225 = vpop.f32.mrf.mxu0
  %v1226 = vadd.f32 0.0, %v1225
  %1227 = vmatmul.f32.gmra.mxu0 %v624
  %v1228 = vpop.f32.mrf.mxu0
  %v1229 = vadd.f32 0.0, %v1228
  %1230 = vmatmul.f32.gmra.mxu0 %v627
  %v1231 = vpop.f32.mrf.mxu0
  %v1232 = vadd.f32 0.0, %v1231
  %1233 = vmatmul.f32.gmra.mxu0 %v630
  %v1234 = vpop.f32.mrf.mxu0
  %v1235 = vadd.f32 0.0, %v1234
  %1236 = vmatmul.f32.gmra.mxu0 %v633
  %v1237 = vpop.f32.mrf.mxu0
  %v1238 = vadd.f32 0.0, %v1237
  %1239 = vmatmul.f32.gmra.mxu0 %v636
  %v1240 = vpop.f32.mrf.mxu0
  %v1241 = vadd.f32 0.0, %v1240
  %1242 = vmatmul.f32.gmra.mxu0 %v639
  %v1243 = vpop.f32.mrf.mxu0
  %v1244 = vadd.f32 0.0, %v1243
  %1245 = vmatmul.f32.gmra.mxu0 %v642
  %v1246 = vpop.f32.mrf.mxu0
  %v1247 = vadd.f32 0.0, %v1246
  %1248 = vmatmul.f32.gmra.mxu0 %v645
  %v1249 = vpop.f32.mrf.mxu0
  %v1250 = vadd.f32 0.0, %v1249
  %1251 = vmatmul.f32.gmra.mxu0 %v648
  %v1252 = vpop.f32.mrf.mxu0
  %v1253 = vadd.f32 0.0, %v1252
  %1254 = vmatmul.f32.gmra.mxu0 %v651
  %v1255 = vpop.f32.mrf.mxu0
  %v1256 = vadd.f32 0.0, %v1255
  %1257 = vmatmul.f32.gmra.mxu0 %v654
  %v1258 = vpop.f32.mrf.mxu0
  %v1259 = vadd.f32 0.0, %v1258
  %1260 = vmatmul.f32.gmra.mxu0 %v657
  %v1261 = vpop.f32.mrf.mxu0
  %v1262 = vadd.f32 0.0, %v1261
  %1263 = vmatmul.f32.gmra.mxu0 %v660
  %v1264 = vpop.f32.mrf.mxu0
  %v1265 = vadd.f32 0.0, %v1264
  %1266 = vmatmul.f32.gmra.mxu0 %v663
  %v1267 = vpop.f32.mrf.mxu0
  %v1268 = vadd.f32 0.0, %v1267
  %1269 = vmatmul.f32.gmra.mxu0 %v666
  %v1270 = vpop.f32.mrf.mxu0
  %v1271 = vadd.f32 0.0, %v1270
  %1272 = vmatmul.f32.gmra.mxu0 %v669
  %v1273 = vpop.f32.mrf.mxu0
  %v1274 = vadd.f32 0.0, %v1273
  %1275 = vmatmul.f32.gmra.mxu0 %v672
  %v1276 = vpop.f32.mrf.mxu0
  %v1277 = vadd.f32 0.0, %v1276
  %1278 = vmatmul.f32.gmra.mxu0 %v675
  %v1279 = vpop.f32.mrf.mxu0
  %v1280 = vadd.f32 0.0, %v1279
  %1281 = vmatmul.f32.gmra.mxu0 %v678
  %v1282 = vpop.f32.mrf.mxu0
  %v1283 = vadd.f32 0.0, %v1282
  %1284 = vmatmul.f32.gmra.mxu0 %v681
  %v1285 = vpop.f32.mrf.mxu0
  %v1286 = vadd.f32 0.0, %v1285
  %1287 = vmatmul.f32.gmra.mxu0 %v684
  %v1288 = vpop.f32.mrf.mxu0
  %v1289 = vadd.f32 0.0, %v1288
  %1290 = vmatmul.f32.gmra.mxu0 %v687
  %v1291 = vpop.f32.mrf.mxu0
  %v1292 = vadd.f32 0.0, %v1291
  %1293 = vmatmul.f32.gmra.mxu0 %v690
  %v1294 = vpop.f32.mrf.mxu0
  %v1295 = vadd.f32 0.0, %v1294
  %1296 = vmatmul.f32.gmra.mxu0 %v693
  %v1297 = vpop.f32.mrf.mxu0
  %v1298 = vadd.f32 0.0, %v1297
  %1299 = vmatmul.f32.gmra.mxu0 %v696
  %v1300 = vpop.f32.mrf.mxu0
  %v1301 = vadd.f32 0.0, %v1300
  %1302 = vmatmul.f32.gmra.mxu0 %v699
  %v1303 = vpop.f32.mrf.mxu0
  %v1304 = vadd.f32 0.0, %v1303
  %1305 = vmatmul.f32.gmra.mxu0 %v702
  %v1306 = vpop.f32.mrf.mxu0
  %v1307 = vadd.f32 0.0, %v1306
  %1308 = vmatmul.f32.gmra.mxu0 %v705
  %v1309 = vpop.f32.mrf.mxu0
  %v1310 = vadd.f32 0.0, %v1309
  %1311 = vmatmul.f32.gmra.mxu0 %v708
  %v1312 = vpop.f32.mrf.mxu0
  %v1313 = vadd.f32 0.0, %v1312
  %1314 = vmatmul.f32.gmra.mxu0 %v711
  %v1315 = vpop.f32.mrf.mxu0
  %v1316 = vadd.f32 0.0, %v1315
  %1317 = vmatmul.f32.gmra.mxu0 %v714
  %v1318 = vpop.f32.mrf.mxu0
  %v1319 = vadd.f32 0.0, %v1318
  %1320 = vmatmul.f32.gmra.mxu0 %v717
  %v1321 = vpop.f32.mrf.mxu0
  %v1322 = vadd.f32 0.0, %v1321
  %1323 = vmatmul.f32.gmra.mxu0 %v720
  %v1324 = vpop.f32.mrf.mxu0
  %v1325 = vadd.f32 0.0, %v1324
  %1326 = vmatmul.f32.gmra.mxu0 %v723
  %v1327 = vpop.f32.mrf.mxu0
  %v1328 = vadd.f32 0.0, %v1327
  %1329 = vmatmul.f32.gmra.mxu0 %v726
  %v1330 = vpop.f32.mrf.mxu0
  %v1331 = vadd.f32 0.0, %v1330
  %1332 = vmatmul.f32.gmra.mxu0 %v729
  %v1333 = vpop.f32.mrf.mxu0
  %v1334 = vadd.f32 0.0, %v1333
  %1335 = vmatmul.f32.gmra.mxu0 %v732
  %v1336 = vpop.f32.mrf.mxu0
  %v1337 = vadd.f32 0.0, %v1336
  %1338 = vmatmul.f32.gmra.mxu0 %v735
  %v1339 = vpop.f32.mrf.mxu0
  %v1340 = vadd.f32 0.0, %v1339
  %1341 = vmatmul.f32.gmra.mxu0 %v738
  %v1342 = vpop.f32.mrf.mxu0
  %v1343 = vadd.f32 0.0, %v1342
  %1344 = vmatmul.f32.gmra.mxu0 %v741
  %v1345 = vpop.f32.mrf.mxu0
  %v1346 = vadd.f32 0.0, %v1345
  %1347 = vmatmul.f32.gmra.mxu0 %v744
  %v1348 = vpop.f32.mrf.mxu0
  %v1349 = vadd.f32 0.0, %v1348
  %1350 = vmatmul.f32.gmra.mxu0 %v747
  %v1351 = vpop.f32.mrf.mxu0
  %v1352 = vadd.f32 0.0, %v1351
  %1353 = vmatmul.f32.gmra.mxu0 %v750
  %v1354 = vpop.f32.mrf.mxu0
  %v1355 = vadd.f32 0.0, %v1354
  %1356 = vmatmul.f32.gmra.mxu0 %v753
  %v1357 = vpop.f32.mrf.mxu0
  %v1358 = vadd.f32 0.0, %v1357
  %1359 = vmatmul.f32.gmra.mxu0 %v756
  %v1360 = vpop.f32.mrf.mxu0
  %v1361 = vadd.f32 0.0, %v1360
  %1362 = vmatmul.f32.gmra.mxu0 %v759
  %v1363 = vpop.f32.mrf.mxu0
  %v1364 = vadd.f32 0.0, %v1363
  %1365 = vmatmul.f32.gmra.mxu0 %v762
  %v1366 = vpop.f32.mrf.mxu0
  %v1367 = vadd.f32 0.0, %v1366
  %1368 = vmatmul.f32.gmra.mxu0 %v765
  %v1369 = vpop.f32.mrf.mxu0
  %v1370 = vadd.f32 0.0, %v1369
  %1371 = vmatmul.f32.gmra.mxu0 %v768
  %v1372 = vpop.f32.mrf.mxu0
  %v1373 = vadd.f32 0.0, %v1372
  %1374 = vmatmul.f32.gmra.mxu0 %v771
  %v1375 = vpop.f32.mrf.mxu0
  %v1376 = vadd.f32 0.0, %v1375
  %1377 = vmatmul.f32.gmra.mxu0 %v774
  %v1378 = vpop.f32.mrf.mxu0
  %v1379 = vadd.f32 0.0, %v1378
  %1380 = vmatmul.f32.gmra.mxu0 %v777
  %v1381 = vpop.f32.mrf.mxu0
  %v1382 = vadd.f32 0.0, %v1381
  %1383 = vmatmul.f32.gmra.mxu0 %v780
  %v1384 = vpop.f32.mrf.mxu0
  %v1385 = vadd.f32 0.0, %v1384
  %1386 = vmatmul.f32.gmra.mxu0 %v783
  %v1387 = vpop.f32.mrf.mxu0
  %v1388 = vadd.f32 0.0, %v1387
  %1389 = vmatmul.f32.gmra.mxu0 %v786
  %v1390 = vpop.f32.mrf.mxu0
  %v1391 = vadd.f32 0.0, %v1390
  %1392 = vmatmul.f32.gmra.mxu0 %v789
  %v1393 = vpop.f32.mrf.mxu0
  %v1394 = vadd.f32 0.0, %v1393
  %1395 = vmatmul.f32.gmra.mxu0 %v792
  %v1396 = vpop.f32.mrf.mxu0
  %v1397 = vadd.f32 0.0, %v1396
  %1398 = vmatmul.f32.gmra.mxu0 %v795
  %v1399 = vpop.f32.mrf.mxu0
  %v1400 = vadd.f32 0.0, %v1399
  %1401 = vmatmul.f32.gmra.mxu0 %v798
  %v1402 = vpop.f32.mrf.mxu0
  %v1403 = vadd.f32 0.0, %v1402
  %1404 = vmatmul.f32.gmra.mxu0 %v801
  %v1405 = vpop.f32.mrf.mxu0
  %v1406 = vadd.f32 0.0, %v1405
  %1407 = vdwg.mxu0
  %v1408 = vmax.f32 %v821, %v968
  %v1409 = vmax.f32 %v824, %v971
  %v1410 = vmax.f32 %v827, %v974
  %v1411 = vmax.f32 %v830, %v977
  %v1412 = vmax.f32 %v833, %v980
  %v1413 = vmax.f32 %v836, %v983
  %v1414 = vmax.f32 %v839, %v986
  %v1415 = vmax.f32 %v842, %v989
  %v1416 = vmax.f32 %v845, %v992
  %v1417 = vmax.f32 %v848, %v995
  %v1418 = vmax.f32 %v851, %v998
  %v1419 = vmax.f32 %v854, %v1001
  %v1420 = vmax.f32 %v857, %v1004
  %v1421 = vmax.f32 %v860, %v1007
  %v1422 = vmax.f32 %v863, %v1010
  %v1423 = vmax.f32 %v866, %v1013
  %v1424 = vmax.f32 %v869, %v1016
  %v1425 = vmax.f32 %v872, %v1019
  %v1426 = vmax.f32 %v875, %v1022
  %v1427 = vmax.f32 %v878, %v1025
  %v1428 = vmax.f32 %v881, %v1028
  %v1429 = vmax.f32 %v884, %v1031
  %v1430 = vmax.f32 %v887, %v1034
  %v1431 = vmax.f32 %v890, %v1037
  %v1432 = vmax.f32 %v893, %v1040
  %v1433 = vmax.f32 %v896, %v1043
  %v1434 = vmax.f32 %v899, %v1046
  %v1435 = vmax.f32 %v902, %v1049
  %v1436 = vmax.f32 %v905, %v1052
  %v1437 = vmax.f32 %v908, %v1055
  %v1438 = vmax.f32 %v911, %v1058
  %v1439 = vmax.f32 %v914, %v1061
  %v1440 = vmax.f32 %v917, %v1064
  %v1441 = vmax.f32 %v920, %v1067
  %v1442 = vmax.f32 %v923, %v1070
  %v1443 = vmax.f32 %v926, %v1073
  %v1444 = vmax.f32 %v929, %v1076
  %v1445 = vmax.f32 %v932, %v1079
  %v1446 = vmax.f32 %v935, %v1082
  %v1447 = vmax.f32 %v938, %v1085
  %v1448 = vmax.f32 %v941, %v1088
  %v1449 = vmax.f32 %v944, %v1091
  %v1450 = vmax.f32 %v947, %v1094
  %v1451 = vmax.f32 %v950, %v1097
  %v1452 = vmax.f32 %v953, %v1100
  %v1453 = vmax.f32 %v956, %v1103
  %v1454 = vmax.f32 %v959, %v1106
  %v1455 = vmax.f32 %v962, %v1109
  %v1456 = vmax.f32 %v965, %v1112
  %v1457 = vmax.f32 %v1115, %v1262
  %v1458 = vmax.f32 %v1118, %v1265
  %v1459 = vmax.f32 %v1121, %v1268
  %v1460 = vmax.f32 %v1124, %v1271
  %v1461 = vmax.f32 %v1127, %v1274
  %v1462 = vmax.f32 %v1130, %v1277
  %v1463 = vmax.f32 %v1133, %v1280
  %v1464 = vmax.f32 %v1136, %v1283
  %v1465 = vmax.f32 %v1139, %v1286
  %v1466 = vmax.f32 %v1142, %v1289
  %v1467 = vmax.f32 %v1145, %v1292
  %v1468 = vmax.f32 %v1148, %v1295
  %v1469 = vmax.f32 %v1151, %v1298
  %v1470 = vmax.f32 %v1154, %v1301
  %v1471 = vmax.f32 %v1157, %v1304
  %v1472 = vmax.f32 %v1160, %v1307
  %v1473 = vmax.f32 %v1163, %v1310
  %v1474 = vmax.f32 %v1166, %v1313
  %v1475 = vmax.f32 %v1169, %v1316
  %v1476 = vmax.f32 %v1172, %v1319
  %v1477 = vmax.f32 %v1175, %v1322
  %v1478 = vmax.f32 %v1178, %v1325
  %v1479 = vmax.f32 %v1181, %v1328
  %v1480 = vmax.f32 %v1184, %v1331
  %v1481 = vmax.f32 %v1187, %v1334
  %v1482 = vmax.f32 %v1190, %v1337
  %v1483 = vmax.f32 %v1193, %v1340
  %v1484 = vmax.f32 %v1196, %v1343
  %v1485 = vmax.f32 %v1199, %v1346
  %v1486 = vmax.f32 %v1202, %v1349
  %v1487 = vmax.f32 %v1205, %v1352
  %v1488 = vmax.f32 %v1208, %v1355
  %v1489 = vmax.f32 %v1211, %v1358
  %v1490 = vmax.f32 %v1214, %v1361
  %v1491 = vmax.f32 %v1217, %v1364
  %v1492 = vmax.f32 %v1220, %v1367
  %v1493 = vmax.f32 %v1223, %v1370
  %v1494 = vmax.f32 %v1226, %v1373
  %v1495 = vmax.f32 %v1229, %v1376
  %v1496 = vmax.f32 %v1232, %v1379
  %v1497 = vmax.f32 %v1235, %v1382
  %v1498 = vmax.f32 %v1238, %v1385
  %v1499 = vmax.f32 %v1241, %v1388
  %v1500 = vmax.f32 %v1244, %v1391
  %v1501 = vmax.f32 %v1247, %v1394
  %v1502 = vmax.f32 %v1250, %v1397
  %v1503 = vmax.f32 %v1253, %v1400
  %v1504 = vmax.f32 %v1256, %v1403
  %v1505 = vmax.f32 %v1259, %v1406
  %v1506 = vmax.f32 %v1408, %v1457
  %v1507 = vmax.f32 %v1409, %v1458
  %v1508 = vmax.f32 %v1410, %v1459
  %v1509 = vmax.f32 %v1411, %v1460
  %v1510 = vmax.f32 %v1412, %v1461
  %v1511 = vmax.f32 %v1413, %v1462
  %v1512 = vmax.f32 %v1414, %v1463
  %v1513 = vmax.f32 %v1415, %v1464
  %v1514 = vmax.f32 %v1416, %v1465
  %v1515 = vmax.f32 %v1417, %v1466
  %v1516 = vmax.f32 %v1418, %v1467
  %v1517 = vmax.f32 %v1419, %v1468
  %v1518 = vmax.f32 %v1420, %v1469
  %v1519 = vmax.f32 %v1421, %v1470
  %v1520 = vmax.f32 %v1422, %v1471
  %v1521 = vmax.f32 %v1423, %v1472
  %v1522 = vmax.f32 %v1424, %v1473
  %v1523 = vmax.f32 %v1425, %v1474
  %v1524 = vmax.f32 %v1426, %v1475
  %v1525 = vmax.f32 %v1427, %v1476
  %v1526 = vmax.f32 %v1428, %v1477
  %v1527 = vmax.f32 %v1429, %v1478
  %v1528 = vmax.f32 %v1430, %v1479
  %v1529 = vmax.f32 %v1431, %v1480
  %v1530 = vmax.f32 %v1432, %v1481
  %v1531 = vmax.f32 %v1433, %v1482
  %v1532 = vmax.f32 %v1434, %v1483
  %v1533 = vmax.f32 %v1435, %v1484
  %v1534 = vmax.f32 %v1436, %v1485
  %v1535 = vmax.f32 %v1437, %v1486
  %v1536 = vmax.f32 %v1438, %v1487
  %v1537 = vmax.f32 %v1439, %v1488
  %v1538 = vmax.f32 %v1440, %v1489
  %v1539 = vmax.f32 %v1441, %v1490
  %v1540 = vmax.f32 %v1442, %v1491
  %v1541 = vmax.f32 %v1443, %v1492
  %v1542 = vmax.f32 %v1444, %v1493
  %v1543 = vmax.f32 %v1445, %v1494
  %v1544 = vmax.f32 %v1446, %v1495
  %v1545 = vmax.f32 %v1447, %v1496
  %v1546 = vmax.f32 %v1448, %v1497
  %v1547 = vmax.f32 %v1449, %v1498
  %v1548 = vmax.f32 %v1450, %v1499
  %v1549 = vmax.f32 %v1451, %v1500
  %v1550 = vmax.f32 %v1452, %v1501
  %v1551 = vmax.f32 %v1453, %v1502
  %v1552 = vmax.f32 %v1454, %v1503
  %v1553 = vmax.f32 %v1455, %v1504
  %v1554 = vmax.f32 %v1456, %v1505
  %v1555 = vld [vmem:[%s2] sm:$0x1]
  %v1557 = vperm.slane %v1555, 0
  %v1559 = vadd.f32 %v1506, %v1557
  %v1560 = vadd.f32 %v1507, %v1557
  %v1561 = vadd.f32 %v1508, %v1557
  %v1562 = vadd.f32 %v1509, %v1557
  %v1563 = vadd.f32 %v1510, %v1557
  %v1564 = vadd.f32 %v1511, %v1557
  %v1565 = vadd.f32 %v1512, %v1557
  %v1566 = vadd.f32 %v1513, %v1557
  %v1567 = vadd.f32 %v1514, %v1557
  %v1568 = vadd.f32 %v1515, %v1557
  %v1569 = vadd.f32 %v1516, %v1557
  %v1570 = vadd.f32 %v1517, %v1557
  %v1571 = vadd.f32 %v1518, %v1557
  %v1572 = vadd.f32 %v1519, %v1557
  %v1573 = vadd.f32 %v1520, %v1557
  %v1574 = vadd.f32 %v1521, %v1557
  %v1575 = vadd.f32 %v1522, %v1557
  %v1576 = vadd.f32 %v1523, %v1557
  %v1577 = vadd.f32 %v1524, %v1557
  %v1578 = vadd.f32 %v1525, %v1557
  %v1579 = vadd.f32 %v1526, %v1557
  %v1580 = vadd.f32 %v1527, %v1557
  %v1581 = vadd.f32 %v1528, %v1557
  %v1582 = vadd.f32 %v1529, %v1557
  %v1583 = vadd.f32 %v1530, %v1557
  %v1584 = vadd.f32 %v1531, %v1557
  %v1585 = vadd.f32 %v1532, %v1557
  %v1586 = vadd.f32 %v1533, %v1557
  %v1587 = vadd.f32 %v1534, %v1557
  %v1588 = vadd.f32 %v1535, %v1557
  %v1589 = vadd.f32 %v1536, %v1557
  %v1590 = vadd.f32 %v1537, %v1557
  %v1591 = vadd.f32 %v1538, %v1557
  %v1592 = vadd.f32 %v1539, %v1557
  %v1593 = vadd.f32 %v1540, %v1557
  %v1594 = vadd.f32 %v1541, %v1557
  %v1595 = vadd.f32 %v1542, %v1557
  %v1596 = vadd.f32 %v1543, %v1557
  %v1597 = vadd.f32 %v1544, %v1557
  %v1598 = vadd.f32 %v1545, %v1557
  %v1599 = vadd.f32 %v1546, %v1557
  %v1600 = vadd.f32 %v1547, %v1557
  %v1601 = vadd.f32 %v1548, %v1557
  %v1602 = vadd.f32 %v1549, %v1557
  %v1603 = vadd.f32 %v1550, %v1557
  %v1604 = vadd.f32 %v1551, %v1557
  %v1605 = vadd.f32 %v1552, %v1557
  %v1606 = vadd.f32 %v1553, %v1557
  %v1607 = vadd.f32 %v1554, %v1557
  %v1608 = vmax.f32 %v1559, 0.0
  %v1609 = vmax.f32 %v1560, 0.0
  %v1610 = vmax.f32 %v1561, 0.0
  %v1611 = vmax.f32 %v1562, 0.0
  %v1612 = vmax.f32 %v1563, 0.0
  %v1613 = vmax.f32 %v1564, 0.0
  %v1614 = vmax.f32 %v1565, 0.0
  %v1615 = vmax.f32 %v1566, 0.0
  %v1616 = vmax.f32 %v1567, 0.0
  %v1617 = vmax.f32 %v1568, 0.0
  %v1618 = vmax.f32 %v1569, 0.0
  %v1619 = vmax.f32 %v1570, 0.0
  %v1620 = vmax.f32 %v1571, 0.0
  %v1621 = vmax.f32 %v1572, 0.0
  %v1622 = vmax.f32 %v1573, 0.0
  %v1623 = vmax.f32 %v1574, 0.0
  %v1624 = vmax.f32 %v1575, 0.0
  %v1625 = vmax.f32 %v1576, 0.0
  %v1626 = vmax.f32 %v1577, 0.0
  %v1627 = vmax.f32 %v1578, 0.0
  %v1628 = vmax.f32 %v1579, 0.0
  %v1629 = vmax.f32 %v1580, 0.0
  %v1630 = vmax.f32 %v1581, 0.0
  %v1631 = vmax.f32 %v1582, 0.0
  %v1632 = vmax.f32 %v1583, 0.0
  %v1633 = vmax.f32 %v1584, 0.0
  %v1634 = vmax.f32 %v1585, 0.0
  %v1635 = vmax.f32 %v1586, 0.0
  %v1636 = vmax.f32 %v1587, 0.0
  %v1637 = vmax.f32 %v1588, 0.0
  %v1638 = vmax.f32 %v1589, 0.0
  %v1639 = vmax.f32 %v1590, 0.0
  %v1640 = vmax.f32 %v1591, 0.0
  %v1641 = vmax.f32 %v1592, 0.0
  %v1642 = vmax.f32 %v1593, 0.0
  %v1643 = vmax.f32 %v1594, 0.0
  %v1644 = vmax.f32 %v1595, 0.0
  %v1645 = vmax.f32 %v1596, 0.0
  %v1646 = vmax.f32 %v1597, 0.0
  %v1647 = vmax.f32 %v1598, 0.0
  %v1648 = vmax.f32 %v1599, 0.0
  %v1649 = vmax.f32 %v1600, 0.0
  %v1650 = vmax.f32 %v1601, 0.0
  %v1651 = vmax.f32 %v1602, 0.0
  %v1652 = vmax.f32 %v1603, 0.0
  %v1653 = vmax.f32 %v1604, 0.0
  %v1654 = vmax.f32 %v1605, 0.0
  %v1655 = vmax.f32 %v1606, 0.0
  %v1656 = vmax.f32 %v1607, 0.0
  %1657 = vst [vmem:[%s3] sm:$0xff] %v1608
  %1658 = vst [vmem:[%s3 + $0x8] sm:$0xff] %v1609
  %1659 = vst [vmem:[%s3 + $0x10] sm:$0xff] %v1610
  %1660 = vst [vmem:[%s3 + $0x18] sm:$0xff] %v1611
  %1661 = vst [vmem:[%s3 + $0x20] sm:$0xff] %v1612
  %1662 = vst [vmem:[%s3 + $0x28] sm:$0xff] %v1613
  %1663 = vst [vmem:[%s3 + $0x30] sm:$0xff] %v1614
  %1664 = vst [vmem:[%s3 + $0x38] sm:$0xff] %v1615
  %1665 = vst [vmem:[%s3 + $0x40] sm:$0xff] %v1616
  %1666 = vst [vmem:[%s3 + $0x48] sm:$0xff] %v1617
  %1667 = vst [vmem:[%s3 + $0x50] sm:$0xff] %v1618
  %1668 = vst [vmem:[%s3 + $0x58] sm:$0xff] %v1619
  %1669 = vst [vmem:[%s3 + $0x60] sm:$0xff] %v1620
  %1670 = vst [vmem:[%s3 + $0x68] sm:$0xff] %v1621
  %1671 = vst [vmem:[%s3 + $0x70] sm:$0xff] %v1622
  %1672 = vst [vmem:[%s3 + $0x78] sm:$0xff] %v1623
  %1673 = vst [vmem:[%s3 + $0x80] sm:$0xff] %v1624
  %1674 = vst [vmem:[%s3 + $0x88] sm:$0xff] %v1625
  %1675 = vst [vmem:[%s3 + $0x90] sm:$0xff] %v1626
  %1676 = vst [vmem:[%s3 + $0x98] sm:$0xff] %v1627
  %1677 = vst [vmem:[%s3 + $0xa0] sm:$0xff] %v1628
  %1678 = vst [vmem:[%s3 + $0xa8] sm:$0xff] %v1629
  %1679 = vst [vmem:[%s3 + $0xb0] sm:$0xff] %v1630
  %1680 = vst [vmem:[%s3 + $0xb8] sm:$0xff] %v1631
  %1681 = vst [vmem:[%s3 + $0xc0] sm:$0xff] %v1632
  %1682 = vst [vmem:[%s3 + $0xc8] sm:$0xff] %v1633
  %1683 = vst [vmem:[%s3 + $0xd0] sm:$0xff] %v1634
  %1684 = vst [vmem:[%s3 + $0xd8] sm:$0xff] %v1635
  %1685 = vst [vmem:[%s3 + $0xe0] sm:$0xff] %v1636
  %1686 = vst [vmem:[%s3 + $0xe8] sm:$0xff] %v1637
  %1687 = vst [vmem:[%s3 + $0xf0] sm:$0xff] %v1638
  %1688 = vst [vmem:[%s3 + $0xf8] sm:$0xff] %v1639
  %1689 = vst [vmem:[%s3 + $0x100] sm:$0xff] %v1640
  %1690 = vst [vmem:[%s3 + $0x108] sm:$0xff] %v1641
  %1691 = vst [vmem:[%s3 + $0x110] sm:$0xff] %v1642
  %1692 = vst [vmem:[%s3 + $0x118] sm:$0xff] %v1643
  %1693 = vst [vmem:[%s3 + $0x120] sm:$0xff] %v1644
  %1694 = vst [vmem:[%s3 + $0x128] sm:$0xff] %v1645
  %1695 = vst [vmem:[%s3 + $0x130] sm:$0xff] %v1646
  %1696 = vst [vmem:[%s3 + $0x138] sm:$0xff] %v1647
  %1697 = vst [vmem:[%s3 + $0x140] sm:$0xff] %v1648
  %1698 = vst [vmem:[%s3 + $0x148] sm:$0xff] %v1649
  %1699 = vst [vmem:[%s3 + $0x150] sm:$0xff] %v1650
  %1700 = vst [vmem:[%s3 + $0x158] sm:$0xff] %v1651
  %1701 = vst [vmem:[%s3 + $0x160] sm:$0xff] %v1652
  %1702 = vst [vmem:[%s3 + $0x168] sm:$0xff] %v1653
  %1703 = vst [vmem:[%s3 + $0x170] sm:$0xff] %v1654
  %1704 = vst [vmem:[%s3 + $0x178] sm:$0xff] %v1655
  %1705 = vst [vmem:[%s3 + $0x180] sm:$0xff] %v1656
  // Predicated region
  $region14: #{_lambda_.3} parent=0 // pred_check
    _
  $region15: #{_lambda_.3} parent=0 // pred_check_branch
    %1707 = sbr.rel (0) target = $region17
  $region16: #{_lambda_.3} parent=0 // pred_region
    _
  $region17: #{_lambda_.3} parent=0 // pred_fallthru
    _
  // Predicated region
  $region18: #{_lambda_.3} parent=0 // pred_check
    _
  $region19: #{_lambda_.3} parent=0 // pred_check_branch
    %1709 = sbr.rel (0) target = $region21
  $region20: #{_lambda_.3} parent=0 // pred_region
    _
  $region21: #{_lambda_.3} parent=0 // pred_fallthru
    _

// kernel: _lambda_.4
$region0: #{_lambda_.4}
  #allocation0 [shape = 'u32[]', space=smem, size = 0x4, offset = 0x4, fixed_abs, tag = 'smem constant byte address 0x4 - core index']
  #allocation1 [shape = 'u32[72,128]{1,0:T(1,128)}', space=vmem, size = 0x9000, scoped, tag = 'internal scratch']
  %s0 = inlined_call_operand.vmem [shape: f32[256,152], index: 0, kind: input, shape index: {}]
  %s1 = inlined_call_operand.vmem [shape: f32[152,128], index: 1, kind: input, shape index: {}]
  %s2 = inlined_call_operand.vmem [shape: f32[1,128], index: 2, kind: input, shape index: {}]
  %s3 = inlined_call_operand.vmem [shape: f32[64,128], index: 3, kind: output, shape index: {}]
  %s4 = sld [smem:[#allocation0]]
  $region22: #{_lambda_.4} parent=0
    _
  %s6 = ssub.s32 1, %s4
  %s7 = scalar_select 0, %s6, %s4
  // Predicated region
  $region2: #{_lambda_.4} parent=0 // pred_check
    _
  $region3: #{_lambda_.4} parent=0 // pred_check_branch
    %9 = sbr.rel (0) target = $region5
  $region4: #{_lambda_.4} parent=0 // pred_region
    _
  $region5: #{_lambda_.4} parent=0 // pred_fallthru
    _
  // Predicated region
  $region6: #{_lambda_.4} parent=0 // pred_check
    _
  $region7: #{_lambda_.4} parent=0 // pred_check_branch
    %11 = sbr.rel (0) target = $region9
  $region8: #{_lambda_.4} parent=0 // pred_region
    _
  $region9: #{_lambda_.4} parent=0 // pred_fallthru
    _
  // Predicated region
  $region10: #{_lambda_.4} parent=0 // pred_check
    _
  $region11: #{_lambda_.4} parent=0 // pred_check_branch
    %13 = sbr.rel (0) target = $region13
  $region12: #{_lambda_.4} parent=0 // pred_region
    _
  $region13: #{_lambda_.4} parent=0 // pred_fallthru
    _
  %v14 = vld [vmem:[%s0] sm:$0xff]
  %v15 = vld [vmem:[%s0 + $0x8] sm:$0xff]
  %v16 = vld [vmem:[%s0 + $0x10] sm:$0xff]
  %v17 = vld [vmem:[%s0 + $0x18] sm:$0xff]
  %v18 = vld [vmem:[%s0 + $0x20] sm:$0xff]
  %v19 = vld [vmem:[%s0 + $0x28] sm:$0xff]
  %v20 = vld [vmem:[%s0 + $0x30] sm:$0xff]
  %v21 = vld [vmem:[%s0 + $0x38] sm:$0xff]
  %v22 = vld [vmem:[%s0 + $0x40] sm:$0xff]
  %v23 = vld [vmem:[%s0 + $0x48] sm:$0xff]
  %v24 = vld [vmem:[%s0 + $0x50] sm:$0xff]
  %v25 = vld [vmem:[%s0 + $0x58] sm:$0xff]
  %v26 = vld [vmem:[%s0 + $0x60] sm:$0xff]
  %v27 = vld [vmem:[%s0 + $0x68] sm:$0xff]
  %v28 = vld [vmem:[%s0 + $0x70] sm:$0xff]
  %v29 = vld [vmem:[%s0 + $0x78] sm:$0xff]
  %v30 = vld [vmem:[%s0 + $0x80] sm:$0xff]
  %v31 = vld [vmem:[%s0 + $0x88] sm:$0xff]
  %v32 = vld [vmem:[%s0 + $0x90] sm:$0xff]
  %v33 = vld [vmem:[%s0 + $0x98] sm:$0xff]
  %v34 = vld [vmem:[%s0 + $0xa0] sm:$0xff]
  %v35 = vld [vmem:[%s0 + $0xa8] sm:$0xff]
  %v36 = vld [vmem:[%s0 + $0xb0] sm:$0xff]
  %v37 = vld [vmem:[%s0 + $0xb8] sm:$0xff]
  %v38 = vld [vmem:[%s0 + $0xc0] sm:$0xff]
  %v39 = vld [vmem:[%s0 + $0xc8] sm:$0xff]
  %v40 = vld [vmem:[%s0 + $0xd0] sm:$0xff]
  %v41 = vld [vmem:[%s0 + $0xd8] sm:$0xff]
  %v42 = vld [vmem:[%s0 + $0xe0] sm:$0xff]
  %v43 = vld [vmem:[%s0 + $0xe8] sm:$0xff]
  %v44 = vld [vmem:[%s0 + $0xf0] sm:$0xff]
  %v45 = vld [vmem:[%s0 + $0xf8] sm:$0xff]
  %v46 = vld [vmem:[%s0 + $0x100] sm:$0xff]
  %v47 = vld [vmem:[%s0 + $0x108] sm:$0xff]
  %v48 = vld [vmem:[%s0 + $0x110] sm:$0xff]
  %v49 = vld [vmem:[%s0 + $0x118] sm:$0xff]
  %v50 = vld [vmem:[%s0 + $0x120] sm:$0xff]
  %v51 = vld [vmem:[%s0 + $0x128] sm:$0xff]
  %v52 = vld [vmem:[%s0 + $0x130] sm:$0xff]
  %v53 = vld [vmem:[%s0 + $0x138] sm:$0xff]
  %v54 = vld [vmem:[%s0 + $0x140] sm:$0xff]
  %v55 = vld [vmem:[%s0 + $0x148] sm:$0xff]
  %v56 = vld [vmem:[%s0 + $0x150] sm:$0xff]
  %v57 = vld [vmem:[%s0 + $0x158] sm:$0xff]
  %v58 = vld [vmem:[%s0 + $0x160] sm:$0xff]
  %v59 = vld [vmem:[%s0 + $0x168] sm:$0xff]
  %v60 = vld [vmem:[%s0 + $0x170] sm:$0xff]
  %v61 = vld [vmem:[%s0 + $0x178] sm:$0xff]
  %v62 = vld [vmem:[%s0 + $0x180] sm:$0xff]
  %v63 = vld [vmem:[%s0 + $0x188] sm:$0xff]
  %v64 = vld [vmem:[%s0 + $0x190] sm:$0xff]
  %v65 = vld [vmem:[%s0 + $0x198] sm:$0xff]
  %v66 = vld [vmem:[%s0 + $0x1a0] sm:$0xff]
  %v67 = vld [vmem:[%s0 + $0x1a8] sm:$0xff]
  %v68 = vld [vmem:[%s0 + $0x1b0] sm:$0xff]
  %v69 = vld [vmem:[%s0 + $0x1b8] sm:$0xff]
  %v70 = vld [vmem:[%s0 + $0x1c0] sm:$0xff]
  %v71 = vld [vmem:[%s0 + $0x1c8] sm:$0xff]
  %v72 = vld [vmem:[%s0 + $0x1d0] sm:$0xff]
  %v73 = vld [vmem:[%s0 + $0x1d8] sm:$0xff]
  %v74 = vld [vmem:[%s0 + $0x1e0] sm:$0xff]
  %v75 = vld [vmem:[%s0 + $0x1e8] sm:$0xff]
  %v76 = vld [vmem:[%s0 + $0x1f0] sm:$0xff]
  %v77 = vld [vmem:[%s0 + $0x1f8] sm:$0xff]
  %v78 = vld [vmem:[%s1] sm:$0xff]
  %v79 = vld [vmem:[%s1 + $0x8] sm:$0xff]
  %v80 = vld [vmem:[%s1 + $0x10] sm:$0xff]
  %v81 = vld [vmem:[%s1 + $0x18] sm:$0xff]
  %v82 = vld [vmem:[%s1 + $0x20] sm:$0xff]
  %v83 = vld [vmem:[%s1 + $0x28] sm:$0xff]
  %v84 = vld [vmem:[%s1 + $0x30] sm:$0xff]
  %v85 = vld [vmem:[%s1 + $0x38] sm:$0xff]
  %v86 = vld [vmem:[%s1 + $0x40] sm:$0xff]
  %v87 = vld [vmem:[%s1 + $0x48] sm:$0xff]
  %v88 = vld [vmem:[%s1 + $0x50] sm:$0xff]
  %v89 = vld [vmem:[%s1 + $0x58] sm:$0xff]
  %v90 = vld [vmem:[%s1 + $0x60] sm:$0xff]
  %v91 = vld [vmem:[%s1 + $0x68] sm:$0xff]
  %v92 = vld [vmem:[%s1 + $0x70] sm:$0xff]
  %v93 = vld [vmem:[%s1 + $0x78] sm:$0xff]
  %v94 = vld [vmem:[%s1 + $0x80] sm:$0xff]
  %v95 = vld [vmem:[%s1 + $0x88] sm:$0xff]
  %v96 = vld [vmem:[%s1 + $0x90] sm:$0xff]
  %vm97 = vcmask 195584
  %v99 = vsel %vm97, %v15, 0
  %v102 = vsel %vm97, %v17, 0
  %v105 = vsel %vm97, %v19, 0
  %v108 = vsel %vm97, %v21, 0
  %v111 = vsel %vm97, %v23, 0
  %v114 = vsel %vm97, %v25, 0
  %v117 = vsel %vm97, %v27, 0
  %v120 = vsel %vm97, %v29, 0
  %v123 = vsel %vm97, %v31, 0
  %v126 = vsel %vm97, %v33, 0
  %v129 = vsel %vm97, %v35, 0
  %v132 = vsel %vm97, %v37, 0
  %v135 = vsel %vm97, %v39, 0
  %v138 = vsel %vm97, %v41, 0
  %v141 = vsel %vm97, %v43, 0
  %v144 = vsel %vm97, %v45, 0
  %v147 = vsel %vm97, %v47, 0
  %v150 = vsel %vm97, %v49, 0
  %v153 = vsel %vm97, %v51, 0
  %v156 = vsel %vm97, %v53, 0
  %v159 = vsel %vm97, %v55, 0
  %v162 = vsel %vm97, %v57, 0
  %v165 = vsel %vm97, %v59, 0
  %v168 = vsel %vm97, %v61, 0
  %v171 = vsel %vm97, %v63, 0
  %v174 = vsel %vm97, %v65, 0
  %v177 = vsel %vm97, %v67, 0
  %v180 = vsel %vm97, %v69, 0
  %v183 = vsel %vm97, %v71, 0
  %v186 = vsel %vm97, %v73, 0
  %v189 = vsel %vm97, %v75, 0
  %v192 = vsel %vm97, %v77, 0
  %194 = vmatpush.msra.mxu0 %v93
  %195 = vmatpush.msra.mxu0 %v92
  %196 = vmatpush.msra.mxu0 %v91
  %197 = vmatpush.msra.mxu0 %v90
  %198 = vmatpush.msra.mxu0 %v89
  %199 = vmatpush.msra.mxu0 %v88
  %200 = vmatpush.msra.mxu0 %v87
  %201 = vmatpush.msra.mxu0 %v86
  %202 = vmatpush.msra.mxu0 %v85
  %203 = vmatpush.msra.mxu0 %v84
  %204 = vmatpush.msra.mxu0 %v83
  %205 = vmatpush.msra.mxu0 %v82
  %206 = vmatpush.msra.mxu0 %v81
  %207 = vmatpush.msra.mxu0 %v80
  %208 = vmatpush.msra.mxu0 %v79
  %209 = vmatpush.msra.mxu0 %v78
  %210 = vmatmul.f32.gmra.mxu0 %v14
  %v211 = vpop.f32.mrf.mxu0
  %v212 = vadd.f32 0.0, %v211
  %213 = vmatmul.f32.gmra.mxu0 %v16
  %v214 = vpop.f32.mrf.mxu0
  %v215 = vadd.f32 0.0, %v214
  %216 = vmatmul.f32.gmra.mxu0 %v18
  %v217 = vpop.f32.mrf.mxu0
  %v218 = vadd.f32 0.0, %v217
  %219 = vmatmul.f32.gmra.mxu0 %v20
  %v220 = vpop.f32.mrf.mxu0
  %v221 = vadd.f32 0.0, %v220
  %222 = vmatmul.f32.gmra.mxu0 %v22
  %v223 = vpop.f32.mrf.mxu0
  %v224 = vadd.f32 0.0, %v223
  %225 = vmatmul.f32.gmra.mxu0 %v24
  %v226 = vpop.f32.mrf.mxu0
  %v227 = vadd.f32 0.0, %v226
  %228 = vmatmul.f32.gmra.mxu0 %v26
  %v229 = vpop.f32.mrf.mxu0
  %v230 = vadd.f32 0.0, %v229
  %231 = vmatmul.f32.gmra.mxu0 %v28
  %v232 = vpop.f32.mrf.mxu0
  %v233 = vadd.f32 0.0, %v232
  %234 = vmatmul.f32.gmra.mxu0 %v30
  %v235 = vpop.f32.mrf.mxu0
  %v236 = vadd.f32 0.0, %v235
  %237 = vmatmul.f32.gmra.mxu0 %v32
  %v238 = vpop.f32.mrf.mxu0
  %v239 = vadd.f32 0.0, %v238
  %240 = vmatmul.f32.gmra.mxu0 %v34
  %v241 = vpop.f32.mrf.mxu0
  %v242 = vadd.f32 0.0, %v241
  %243 = vmatmul.f32.gmra.mxu0 %v36
  %v244 = vpop.f32.mrf.mxu0
  %v245 = vadd.f32 0.0, %v244
  %246 = vmatmul.f32.gmra.mxu0 %v38
  %v247 = vpop.f32.mrf.mxu0
  %v248 = vadd.f32 0.0, %v247
  %249 = vmatmul.f32.gmra.mxu0 %v40
  %v250 = vpop.f32.mrf.mxu0
  %v251 = vadd.f32 0.0, %v250
  %252 = vmatmul.f32.gmra.mxu0 %v42
  %v253 = vpop.f32.mrf.mxu0
  %v254 = vadd.f32 0.0, %v253
  %255 = vmatmul.f32.gmra.mxu0 %v44
  %v256 = vpop.f32.mrf.mxu0
  %v257 = vadd.f32 0.0, %v256
  %258 = vmatmul.f32.gmra.mxu0 %v46
  %v259 = vpop.f32.mrf.mxu0
  %v260 = vadd.f32 0.0, %v259
  %261 = vmatmul.f32.gmra.mxu0 %v48
  %v262 = vpop.f32.mrf.mxu0
  %v263 = vadd.f32 0.0, %v262
  %264 = vmatmul.f32.gmra.mxu0 %v50
  %v265 = vpop.f32.mrf.mxu0
  %v266 = vadd.f32 0.0, %v265
  %267 = vmatmul.f32.gmra.mxu0 %v52
  %v268 = vpop.f32.mrf.mxu0
  %v269 = vadd.f32 0.0, %v268
  %270 = vmatmul.f32.gmra.mxu0 %v54
  %v271 = vpop.f32.mrf.mxu0
  %v272 = vadd.f32 0.0, %v271
  %273 = vmatmul.f32.gmra.mxu0 %v56
  %v274 = vpop.f32.mrf.mxu0
  %v275 = vadd.f32 0.0, %v274
  %276 = vmatmul.f32.gmra.mxu0 %v58
  %v277 = vpop.f32.mrf.mxu0
  %v278 = vadd.f32 0.0, %v277
  %279 = vmatmul.f32.gmra.mxu0 %v60
  %v280 = vpop.f32.mrf.mxu0
  %v281 = vadd.f32 0.0, %v280
  %282 = vmatmul.f32.gmra.mxu0 %v62
  %v283 = vpop.f32.mrf.mxu0
  %v284 = vadd.f32 0.0, %v283
  %285 = vmatmul.f32.gmra.mxu0 %v64
  %v286 = vpop.f32.mrf.mxu0
  %v287 = vadd.f32 0.0, %v286
  %288 = vmatmul.f32.gmra.mxu0 %v66
  %v289 = vpop.f32.mrf.mxu0
  %v290 = vadd.f32 0.0, %v289
  %291 = vmatmul.f32.gmra.mxu0 %v68
  %v292 = vpop.f32.mrf.mxu0
  %v293 = vadd.f32 0.0, %v292
  %294 = vmatmul.f32.gmra.mxu0 %v70
  %v295 = vpop.f32.mrf.mxu0
  %v296 = vadd.f32 0.0, %v295
  %297 = vmatmul.f32.gmra.mxu0 %v72
  %v298 = vpop.f32.mrf.mxu0
  %v299 = vadd.f32 0.0, %v298
  %300 = vmatmul.f32.gmra.mxu0 %v74
  %v301 = vpop.f32.mrf.mxu0
  %v302 = vadd.f32 0.0, %v301
  %303 = vmatmul.f32.gmra.mxu0 %v76
  %v304 = vpop.f32.mrf.mxu0
  %v305 = vadd.f32 0.0, %v304
  %306 = vdwg.mxu0
  %307 = vmatpush.msra.mxu0 0.0
  %308 = vmatpush.msra.mxu0 0.0
  %309 = vmatpush.msra.mxu0 0.0
  %310 = vmatpush.msra.mxu0 0.0
  %311 = vmatpush.msra.mxu0 0.0
  %312 = vmatpush.msra.mxu0 0.0
  %313 = vmatpush.msra.mxu0 0.0
  %314 = vmatpush.msra.mxu0 0.0
  %315 = vmatpush.msra.mxu0 0.0
  %316 = vmatpush.msra.mxu0 0.0
  %317 = vmatpush.msra.mxu0 0.0
  %318 = vmatpush.msra.mxu0 0.0
  %319 = vmatpush.msra.mxu0 0.0
  %320 = vmatpush.msra.mxu0 %v96
  %321 = vmatpush.msra.mxu0 %v95
  %322 = vmatpush.msra.mxu0 %v94
  %323 = vmatmul.f32.gmra.mxu0 %v99
  %v324 = vpop.f32.mrf.mxu0
  %v325 = vadd.f32 %v212, %v324
  %326 = vmatmul.f32.gmra.mxu0 %v102
  %v327 = vpop.f32.mrf.mxu0
  %v328 = vadd.f32 %v215, %v327
  %329 = vmatmul.f32.gmra.mxu0 %v105
  %v330 = vpop.f32.mrf.mxu0
  %v331 = vadd.f32 %v218, %v330
  %332 = vmatmul.f32.gmra.mxu0 %v108
  %v333 = vpop.f32.mrf.mxu0
  %v334 = vadd.f32 %v221, %v333
  %335 = vmatmul.f32.gmra.mxu0 %v111
  %v336 = vpop.f32.mrf.mxu0
  %v337 = vadd.f32 %v224, %v336
  %338 = vmatmul.f32.gmra.mxu0 %v114
  %v339 = vpop.f32.mrf.mxu0
  %v340 = vadd.f32 %v227, %v339
  %341 = vmatmul.f32.gmra.mxu0 %v117
  %v342 = vpop.f32.mrf.mxu0
  %v343 = vadd.f32 %v230, %v342
  %344 = vmatmul.f32.gmra.mxu0 %v120
  %v345 = vpop.f32.mrf.mxu0
  %v346 = vadd.f32 %v233, %v345
  %347 = vmatmul.f32.gmra.mxu0 %v123
  %v348 = vpop.f32.mrf.mxu0
  %v349 = vadd.f32 %v236, %v348
  %350 = vmatmul.f32.gmra.mxu0 %v126
  %v351 = vpop.f32.mrf.mxu0
  %v352 = vadd.f32 %v239, %v351
  %353 = vmatmul.f32.gmra.mxu0 %v129
  %v354 = vpop.f32.mrf.mxu0
  %v355 = vadd.f32 %v242, %v354
  %356 = vmatmul.f32.gmra.mxu0 %v132
  %v357 = vpop.f32.mrf.mxu0
  %v358 = vadd.f32 %v245, %v357
  %359 = vmatmul.f32.gmra.mxu0 %v135
  %v360 = vpop.f32.mrf.mxu0
  %v361 = vadd.f32 %v248, %v360
  %362 = vmatmul.f32.gmra.mxu0 %v138
  %v363 = vpop.f32.mrf.mxu0
  %v364 = vadd.f32 %v251, %v363
  %365 = vmatmul.f32.gmra.mxu0 %v141
  %v366 = vpop.f32.mrf.mxu0
  %v367 = vadd.f32 %v254, %v366
  %368 = vmatmul.f32.gmra.mxu0 %v144
  %v369 = vpop.f32.mrf.mxu0
  %v370 = vadd.f32 %v257, %v369
  %371 = vmatmul.f32.gmra.mxu0 %v147
  %v372 = vpop.f32.mrf.mxu0
  %v373 = vadd.f32 %v260, %v372
  %374 = vmatmul.f32.gmra.mxu0 %v150
  %v375 = vpop.f32.mrf.mxu0
  %v376 = vadd.f32 %v263, %v375
  %377 = vmatmul.f32.gmra.mxu0 %v153
  %v378 = vpop.f32.mrf.mxu0
  %v379 = vadd.f32 %v266, %v378
  %380 = vmatmul.f32.gmra.mxu0 %v156
  %v381 = vpop.f32.mrf.mxu0
  %v382 = vadd.f32 %v269, %v381
  %383 = vmatmul.f32.gmra.mxu0 %v159
  %v384 = vpop.f32.mrf.mxu0
  %v385 = vadd.f32 %v272, %v384
  %386 = vmatmul.f32.gmra.mxu0 %v162
  %v387 = vpop.f32.mrf.mxu0
  %v388 = vadd.f32 %v275, %v387
  %389 = vmatmul.f32.gmra.mxu0 %v165
  %v390 = vpop.f32.mrf.mxu0
  %v391 = vadd.f32 %v278, %v390
  %392 = vmatmul.f32.gmra.mxu0 %v168
  %v393 = vpop.f32.mrf.mxu0
  %v394 = vadd.f32 %v281, %v393
  %395 = vmatmul.f32.gmra.mxu0 %v171
  %v396 = vpop.f32.mrf.mxu0
  %v397 = vadd.f32 %v284, %v396
  %398 = vmatmul.f32.gmra.mxu0 %v174
  %v399 = vpop.f32.mrf.mxu0
  %v400 = vadd.f32 %v287, %v399
  %401 = vmatmul.f32.gmra.mxu0 %v177
  %v402 = vpop.f32.mrf.mxu0
  %v403 = vadd.f32 %v290, %v402
  %404 = vmatmul.f32.gmra.mxu0 %v180
  %v405 = vpop.f32.mrf.mxu0
  %v406 = vadd.f32 %v293, %v405
  %407 = vmatmul.f32.gmra.mxu0 %v183
  %v408 = vpop.f32.mrf.mxu0
  %v409 = vadd.f32 %v296, %v408
  %410 = vmatmul.f32.gmra.mxu0 %v186
  %v411 = vpop.f32.mrf.mxu0
  %v412 = vadd.f32 %v299, %v411
  %413 = vmatmul.f32.gmra.mxu0 %v189
  %v414 = vpop.f32.mrf.mxu0
  %v415 = vadd.f32 %v302, %v414
  %416 = vmatmul.f32.gmra.mxu0 %v192
  %v417 = vpop.f32.mrf.mxu0
  %v418 = vadd.f32 %v305, %v417
  %419 = vdwg.mxu0
  %v420 = vmax.f32 %v325, %v349
  %v421 = vmax.f32 %v328, %v352
  %v422 = vmax.f32 %v331, %v355
  %v423 = vmax.f32 %v334, %v358
  %v424 = vmax.f32 %v337, %v361
  %v425 = vmax.f32 %v340, %v364
  %v426 = vmax.f32 %v343, %v367
  %v427 = vmax.f32 %v346, %v370
  %v428 = vmax.f32 %v373, %v397
  %v429 = vmax.f32 %v376, %v400
  %v430 = vmax.f32 %v379, %v403
  %v431 = vmax.f32 %v382, %v406
  %v432 = vmax.f32 %v385, %v409
  %v433 = vmax.f32 %v388, %v412
  %v434 = vmax.f32 %v391, %v415
  %v435 = vmax.f32 %v394, %v418
  %v436 = vmax.f32 %v420, %v428
  %v437 = vmax.f32 %v421, %v429
  %v438 = vmax.f32 %v422, %v430
  %v439 = vmax.f32 %v423, %v431
  %v440 = vmax.f32 %v424, %v432
  %v441 = vmax.f32 %v425, %v433
  %v442 = vmax.f32 %v426, %v434
  %v443 = vmax.f32 %v427, %v435
  %v444 = vld [vmem:[%s2] sm:$0x1]
  %v446 = vperm.slane %v444, 0
  %v448 = vadd.f32 %v436, %v446
  %v449 = vadd.f32 %v437, %v446
  %v450 = vadd.f32 %v438, %v446
  %v451 = vadd.f32 %v439, %v446
  %v452 = vadd.f32 %v440, %v446
  %v453 = vadd.f32 %v441, %v446
  %v454 = vadd.f32 %v442, %v446
  %v455 = vadd.f32 %v443, %v446
  %v456 = vmax.f32 %v448, 0.0
  %v457 = vmax.f32 %v449, 0.0
  %v458 = vmax.f32 %v450, 0.0
  %v459 = vmax.f32 %v451, 0.0
  %v460 = vmax.f32 %v452, 0.0
  %v461 = vmax.f32 %v453, 0.0
  %v462 = vmax.f32 %v454, 0.0
  %v463 = vmax.f32 %v455, 0.0
  %464 = vst [vmem:[%s3] sm:$0xff] %v456
  %465 = vst [vmem:[%s3 + $0x8] sm:$0xff] %v457
  %466 = vst [vmem:[%s3 + $0x10] sm:$0xff] %v458
  %467 = vst [vmem:[%s3 + $0x18] sm:$0xff] %v459
  %468 = vst [vmem:[%s3 + $0x20] sm:$0xff] %v460
  %469 = vst [vmem:[%s3 + $0x28] sm:$0xff] %v461
  %470 = vst [vmem:[%s3 + $0x30] sm:$0xff] %v462
  %471 = vst [vmem:[%s3 + $0x38] sm:$0xff] %v463
  // Predicated region
  $region14: #{_lambda_.4} parent=0 // pred_check
    _
  $region15: #{_lambda_.4} parent=0 // pred_check_branch
    %473 = sbr.rel (0) target = $region17
  $region16: #{_lambda_.4} parent=0 // pred_region
    _
  $region17: #{_lambda_.4} parent=0 // pred_fallthru
    _
  // Predicated region
  $region18: #{_lambda_.4} parent=0 // pred_check
    _
  $region19: #{_lambda_.4} parent=0 // pred_check_branch
    %475 = sbr.rel (0) target = $region21
  $region20: #{_lambda_.4} parent=0 // pred_region
    _
  $region21: #{_lambda_.4} parent=0 // pred_fallthru
    _

// kernel: _lambda_.5
$region0: #{_lambda_.5}
  #allocation0 [shape = 'u32[]', space=smem, size = 0x4, offset = 0x4, fixed_abs, tag = 'smem constant byte address 0x4 - core index']
  #allocation1 [shape = 'u32[72,128]{1,0:T(1,128)}', space=vmem, size = 0x9000, scoped, tag = 'internal scratch']
  %s0 = inlined_call_operand.vmem [shape: f32[2,4096], index: 0, kind: input, shape index: {}]
  %s1 = inlined_call_operand.vmem [shape: f32[4096,128], index: 1, kind: input, shape index: {}]
  %s2 = inlined_call_operand.vmem [shape: f32[1,128], index: 2, kind: input, shape index: {}]
  %s3 = inlined_call_operand.vmem [shape: f32[128,128], index: 3, kind: input, shape index: {}]
  %s4 = inlined_call_operand.vmem [shape: f32[1,128], index: 4, kind: input, shape index: {}]
  %s5 = inlined_call_operand.vmem [shape: f32[128,128], index: 5, kind: input, shape index: {}]
  %s6 = inlined_call_operand.vmem [shape: f32[1,128], index: 6, kind: input, shape index: {}]
  %s7 = inlined_call_operand.hbm [shape: f32[2,128], index: 7, kind: output, shape index: {}]
  %s8 = sld [smem:[#allocation0]]
  $region38: #{_lambda_.5} parent=0
    _
  %s10 = ssub.s32 1, %s8
  %s11 = scalar_select 0, %s10, %s8
  $region1: #{_lambda_.5} parent=0
    #allocation2 [shape = 'u8[1024]{0}', space=vmem, size = 0x400, scoped, tag = 'output window, operand 0, single buffered']
    #allocation3 [shape = 's32[1]{0}', space=sflag, size = 0x4, scoped, tag = 'scoped memory for _lambda_.5']
    %12 = vsyncpa [#allocation3], 0
    // Predicated region
    $region2: #{_lambda_.5} parent=1 // pred_check
      _
    $region3: #{_lambda_.5} parent=1 // pred_check_branch
      %14 = sbr.rel (0) target = $region5
    $region4: #{_lambda_.5} parent=1 // pred_region
      _
    $region5: #{_lambda_.5} parent=1 // pred_fallthru
      _
    // Predicated region
    $region6: #{_lambda_.5} parent=1 // pred_check
      _
    $region7: #{_lambda_.5} parent=1 // pred_check_branch
      %16 = sbr.rel (0) target = $region9
    $region8: #{_lambda_.5} parent=1 // pred_region
      _
    $region9: #{_lambda_.5} parent=1 // pred_fallthru
      _
    // Predicated region
    $region10: #{_lambda_.5} parent=1 // pred_check
      _
    $region11: #{_lambda_.5} parent=1 // pred_check_branch
      %18 = sbr.rel (0) target = $region13
    $region12: #{_lambda_.5} parent=1 // pred_region
      _
    $region13: #{_lambda_.5} parent=1 // pred_fallthru
      _
    // Predicated region
    $region14: #{_lambda_.5} parent=1 // pred_check
      _
    $region15: #{_lambda_.5} parent=1 // pred_check_branch
      %20 = sbr.rel (0) target = $region17
    $region16: #{_lambda_.5} parent=1 // pred_region
      _
    $region17: #{_lambda_.5} parent=1 // pred_fallthru
      _
    // Predicated region
    $region18: #{_lambda_.5} parent=1 // pred_check
      _
    $region19: #{_lambda_.5} parent=1 // pred_check_branch
      %22 = sbr.rel (0) target = $region21
    $region20: #{_lambda_.5} parent=1 // pred_region
      _
    $region21: #{_lambda_.5} parent=1 // pred_fallthru
      _
    // Predicated region
    $region22: #{_lambda_.5} parent=1 // pred_check
      _
    $region23: #{_lambda_.5} parent=1 // pred_check_branch
      %24 = sbr.rel (0) target = $region25
    $region24: #{_lambda_.5} parent=1 // pred_region
      _
    $region25: #{_lambda_.5} parent=1 // pred_fallthru
      _
    // Predicated region
    $region26: #{_lambda_.5} parent=1 // pred_check
      _
    $region27: #{_lambda_.5} parent=1 // pred_check_branch
      %26 = sbr.rel (0) target = $region29
    $region28: #{_lambda_.5} parent=1 // pred_region
      _
    $region29: #{_lambda_.5} parent=1 // pred_fallthru
      _
    %v27 = vld [vmem:[%s0] sm:$0xff]
    %v28 = vld [vmem:[%s0 + $0x8] sm:$0xff]
    %v29 = vld [vmem:[%s0 + $0x10] sm:$0xff]
    %v30 = vld [vmem:[%s0 + $0x18] sm:$0xff]
    %v31 = vld [vmem:[%s0 + $0x20] sm:$0xff]
    %v32 = vld [vmem:[%s0 + $0x28] sm:$0xff]
    %v33 = vld [vmem:[%s0 + $0x30] sm:$0xff]
    %v34 = vld [vmem:[%s0 + $0x38] sm:$0xff]
    %v35 = vld [vmem:[%s1] sm:$0xff]
    %v36 = vld [vmem:[%s1 + $0x8] sm:$0xff]
    %v37 = vld [vmem:[%s1 + $0x10] sm:$0xff]
    %v38 = vld [vmem:[%s1 + $0x18] sm:$0xff]
    %v39 = vld [vmem:[%s1 + $0x20] sm:$0xff]
    %v40 = vld [vmem:[%s1 + $0x28] sm:$0xff]
    %v41 = vld [vmem:[%s1 + $0x30] sm:$0xff]
    %v42 = vld [vmem:[%s1 + $0x38] sm:$0xff]
    %v43 = vld [vmem:[%s1 + $0x40] sm:$0xff]
    %v44 = vld [vmem:[%s1 + $0x48] sm:$0xff]
    %v45 = vld [vmem:[%s1 + $0x50] sm:$0xff]
    %v46 = vld [vmem:[%s1 + $0x58] sm:$0xff]
    %v47 = vld [vmem:[%s1 + $0x60] sm:$0xff]
    %v48 = vld [vmem:[%s1 + $0x68] sm:$0xff]
    %v49 = vld [vmem:[%s1 + $0x70] sm:$0xff]
    %v50 = vld [vmem:[%s1 + $0x78] sm:$0xff]
    %v51 = vld [vmem:[%s1 + $0x80] sm:$0xff]
    %v52 = vld [vmem:[%s1 + $0x88] sm:$0xff]
    %v53 = vld [vmem:[%s1 + $0x90] sm:$0xff]
    %v54 = vld [vmem:[%s1 + $0x98] sm:$0xff]
    %v55 = vld [vmem:[%s1 + $0xa0] sm:$0xff]
    %v56 = vld [vmem:[%s1 + $0xa8] sm:$0xff]
    %v57 = vld [vmem:[%s1 + $0xb0] sm:$0xff]
    %v58 = vld [vmem:[%s1 + $0xb8] sm:$0xff]
    %v59 = vld [vmem:[%s1 + $0xc0] sm:$0xff]
    %v60 = vld [vmem:[%s1 + $0xc8] sm:$0xff]
    %v61 = vld [vmem:[%s1 + $0xd0] sm:$0xff]
    %v62 = vld [vmem:[%s1 + $0xd8] sm:$0xff]
    %v63 = vld [vmem:[%s1 + $0xe0] sm:$0xff]
    %v64 = vld [vmem:[%s1 + $0xe8] sm:$0xff]
    %v65 = vld [vmem:[%s1 + $0xf0] sm:$0xff]
    %v66 = vld [vmem:[%s1 + $0xf8] sm:$0xff]
    %v67 = vld [vmem:[%s1 + $0x100] sm:$0xff]
    %v68 = vld [vmem:[%s1 + $0x108] sm:$0xff]
    %v69 = vld [vmem:[%s1 + $0x110] sm:$0xff]
    %v70 = vld [vmem:[%s1 + $0x118] sm:$0xff]
    %v71 = vld [vmem:[%s1 + $0x120] sm:$0xff]
    %v72 = vld [vmem:[%s1 + $0x128] sm:$0xff]
    %v73 = vld [vmem:[%s1 + $0x130] sm:$0xff]
    %v74 = vld [vmem:[%s1 + $0x138] sm:$0xff]
    %v75 = vld [vmem:[%s1 + $0x140] sm:$0xff]
    %v76 = vld [vmem:[%s1 + $0x148] sm:$0xff]
    %v77 = vld [vmem:[%s1 + $0x150] sm:$0xff]
    %v78 = vld [vmem:[%s1 + $0x158] sm:$0xff]
    %v79 = vld [vmem:[%s1 + $0x160] sm:$0xff]
    %v80 = vld [vmem:[%s1 + $0x168] sm:$0xff]
    %v81 = vld [vmem:[%s1 + $0x170] sm:$0xff]
    %v82 = vld [vmem:[%s1 + $0x178] sm:$0xff]
    %v83 = vld [vmem:[%s1 + $0x180] sm:$0xff]
    %v84 = vld [vmem:[%s1 + $0x188] sm:$0xff]
    %v85 = vld [vmem:[%s1 + $0x190] sm:$0xff]
    %v86 = vld [vmem:[%s1 + $0x198] sm:$0xff]
    %v87 = vld [vmem:[%s1 + $0x1a0] sm:$0xff]
    %v88 = vld [vmem:[%s1 + $0x1a8] sm:$0xff]
    %v89 = vld [vmem:[%s1 + $0x1b0] sm:$0xff]
    %v90 = vld [vmem:[%s1 + $0x1b8] sm:$0xff]
    %v91 = vld [vmem:[%s1 + $0x1c0] sm:$0xff]
    %v92 = vld [vmem:[%s1 + $0x1c8] sm:$0xff]
    %v93 = vld [vmem:[%s1 + $0x1d0] sm:$0xff]
    %v94 = vld [vmem:[%s1 + $0x1d8] sm:$0xff]
    %v95 = vld [vmem:[%s1 + $0x1e0] sm:$0xff]
    %v96 = vld [vmem:[%s1 + $0x1e8] sm:$0xff]
    %v97 = vld [vmem:[%s1 + $0x1f0] sm:$0xff]
    %v98 = vld [vmem:[%s1 + $0x1f8] sm:$0xff]
    %v99 = vld [vmem:[%s1 + $0x200] sm:$0xff]
    %v100 = vld [vmem:[%s1 + $0x208] sm:$0xff]
    %v101 = vld [vmem:[%s1 + $0x210] sm:$0xff]
    %v102 = vld [vmem:[%s1 + $0x218] sm:$0xff]
    %v103 = vld [vmem:[%s1 + $0x220] sm:$0xff]
    %v104 = vld [vmem:[%s1 + $0x228] sm:$0xff]
    %v105 = vld [vmem:[%s1 + $0x230] sm:$0xff]
    %v106 = vld [vmem:[%s1 + $0x238] sm:$0xff]
    %v107 = vld [vmem:[%s1 + $0x240] sm:$0xff]
    %v108 = vld [vmem:[%s1 + $0x248] sm:$0xff]
    %v109 = vld [vmem:[%s1 + $0x250] sm:$0xff]
    %v110 = vld [vmem:[%s1 + $0x258] sm:$0xff]
    %v111 = vld [vmem:[%s1 + $0x260] sm:$0xff]
    %v112 = vld [vmem:[%s1 + $0x268] sm:$0xff]
    %v113 = vld [vmem:[%s1 + $0x270] sm:$0xff]
    %v114 = vld [vmem:[%s1 + $0x278] sm:$0xff]
    %v115 = vld [vmem:[%s1 + $0x280] sm:$0xff]
    %v116 = vld [vmem:[%s1 + $0x288] sm:$0xff]
    %v117 = vld [vmem:[%s1 + $0x290] sm:$0xff]
    %v118 = vld [vmem:[%s1 + $0x298] sm:$0xff]
    %v119 = vld [vmem:[%s1 + $0x2a0] sm:$0xff]
    %v120 = vld [vmem:[%s1 + $0x2a8] sm:$0xff]
    %v121 = vld [vmem:[%s1 + $0x2b0] sm:$0xff]
    %v122 = vld [vmem:[%s1 + $0x2b8] sm:$0xff]
    %v123 = vld [vmem:[%s1 + $0x2c0] sm:$0xff]
    %v124 = vld [vmem:[%s1 + $0x2c8] sm:$0xff]
    %v125 = vld [vmem:[%s1 + $0x2d0] sm:$0xff]
    %v126 = vld [vmem:[%s1 + $0x2d8] sm:$0xff]
    %v127 = vld [vmem:[%s1 + $0x2e0] sm:$0xff]
    %v128 = vld [vmem:[%s1 + $0x2e8] sm:$0xff]
    %v129 = vld [vmem:[%s1 + $0x2f0] sm:$0xff]
    %v130 = vld [vmem:[%s1 + $0x2f8] sm:$0xff]
    %v131 = vld [vmem:[%s1 + $0x300] sm:$0xff]
    %v132 = vld [vmem:[%s1 + $0x308] sm:$0xff]
    %v133 = vld [vmem:[%s1 + $0x310] sm:$0xff]
    %v134 = vld [vmem:[%s1 + $0x318] sm:$0xff]
    %v135 = vld [vmem:[%s1 + $0x320] sm:$0xff]
    %v136 = vld [vmem:[%s1 + $0x328] sm:$0xff]
    %v137 = vld [vmem:[%s1 + $0x330] sm:$0xff]
    %v138 = vld [vmem:[%s1 + $0x338] sm:$0xff]
    %v139 = vld [vmem:[%s1 + $0x340] sm:$0xff]
    %v140 = vld [vmem:[%s1 + $0x348] sm:$0xff]
    %v141 = vld [vmem:[%s1 + $0x350] sm:$0xff]
    %v142 = vld [vmem:[%s1 + $0x358] sm:$0xff]
    %v143 = vld [vmem:[%s1 + $0x360] sm:$0xff]
    %v144 = vld [vmem:[%s1 + $0x368] sm:$0xff]
    %v145 = vld [vmem:[%s1 + $0x370] sm:$0xff]
    %v146 = vld [vmem:[%s1 + $0x378] sm:$0xff]
    %v147 = vld [vmem:[%s1 + $0x380] sm:$0xff]
    %v148 = vld [vmem:[%s1 + $0x388] sm:$0xff]
    %v149 = vld [vmem:[%s1 + $0x390] sm:$0xff]
    %v150 = vld [vmem:[%s1 + $0x398] sm:$0xff]
    %v151 = vld [vmem:[%s1 + $0x3a0] sm:$0xff]
    %v152 = vld [vmem:[%s1 + $0x3a8] sm:$0xff]
    %v153 = vld [vmem:[%s1 + $0x3b0] sm:$0xff]
    %v154 = vld [vmem:[%s1 + $0x3b8] sm:$0xff]
    %v155 = vld [vmem:[%s1 + $0x3c0] sm:$0xff]
    %v156 = vld [vmem:[%s1 + $0x3c8] sm:$0xff]
    %v157 = vld [vmem:[%s1 + $0x3d0] sm:$0xff]
    %v158 = vld [vmem:[%s1 + $0x3d8] sm:$0xff]
    %v159 = vld [vmem:[%s1 + $0x3e0] sm:$0xff]
    %v160 = vld [vmem:[%s1 + $0x3e8] sm:$0xff]
    %v161 = vld [vmem:[%s1 + $0x3f0] sm:$0xff]
    %v162 = vld [vmem:[%s1 + $0x3f8] sm:$0xff]
    %v163 = vld [vmem:[%s1 + $0x400] sm:$0xff]
    %v164 = vld [vmem:[%s1 + $0x408] sm:$0xff]
    %v165 = vld [vmem:[%s1 + $0x410] sm:$0xff]
    %v166 = vld [vmem:[%s1 + $0x418] sm:$0xff]
    %v167 = vld [vmem:[%s1 + $0x420] sm:$0xff]
    %v168 = vld [vmem:[%s1 + $0x428] sm:$0xff]
    %v169 = vld [vmem:[%s1 + $0x430] sm:$0xff]
    %v170 = vld [vmem:[%s1 + $0x438] sm:$0xff]
    %v171 = vld [vmem:[%s1 + $0x440] sm:$0xff]
    %v172 = vld [vmem:[%s1 + $0x448] sm:$0xff]
    %v173 = vld [vmem:[%s1 + $0x450] sm:$0xff]
    %v174 = vld [vmem:[%s1 + $0x458] sm:$0xff]
    %v175 = vld [vmem:[%s1 + $0x460] sm:$0xff]
    %v176 = vld [vmem:[%s1 + $0x468] sm:$0xff]
    %v177 = vld [vmem:[%s1 + $0x470] sm:$0xff]
    %v178 = vld [vmem:[%s1 + $0x478] sm:$0xff]
    %v179 = vld [vmem:[%s1 + $0x480] sm:$0xff]
    %v180 = vld [vmem:[%s1 + $0x488] sm:$0xff]
    %v181 = vld [vmem:[%s1 + $0x490] sm:$0xff]
    %v182 = vld [vmem:[%s1 + $0x498] sm:$0xff]
    %v183 = vld [vmem:[%s1 + $0x4a0] sm:$0xff]
    %v184 = vld [vmem:[%s1 + $0x4a8] sm:$0xff]
    %v185 = vld [vmem:[%s1 + $0x4b0] sm:$0xff]
    %v186 = vld [vmem:[%s1 + $0x4b8] sm:$0xff]
    %v187 = vld [vmem:[%s1 + $0x4c0] sm:$0xff]
    %v188 = vld [vmem:[%s1 + $0x4c8] sm:$0xff]
    %v189 = vld [vmem:[%s1 + $0x4d0] sm:$0xff]
    %v190 = vld [vmem:[%s1 + $0x4d8] sm:$0xff]
    %v191 = vld [vmem:[%s1 + $0x4e0] sm:$0xff]
    %v192 = vld [vmem:[%s1 + $0x4e8] sm:$0xff]
    %v193 = vld [vmem:[%s1 + $0x4f0] sm:$0xff]
    %v194 = vld [vmem:[%s1 + $0x4f8] sm:$0xff]
    %v195 = vld [vmem:[%s1 + $0x500] sm:$0xff]
    %v196 = vld [vmem:[%s1 + $0x508] sm:$0xff]
    %v197 = vld [vmem:[%s1 + $0x510] sm:$0xff]
    %v198 = vld [vmem:[%s1 + $0x518] sm:$0xff]
    %v199 = vld [vmem:[%s1 + $0x520] sm:$0xff]
    %v200 = vld [vmem:[%s1 + $0x528] sm:$0xff]
    %v201 = vld [vmem:[%s1 + $0x530] sm:$0xff]
    %v202 = vld [vmem:[%s1 + $0x538] sm:$0xff]
    %v203 = vld [vmem:[%s1 + $0x540] sm:$0xff]
    %v204 = vld [vmem:[%s1 + $0x548] sm:$0xff]
    %v205 = vld [vmem:[%s1 + $0x550] sm:$0xff]
    %v206 = vld [vmem:[%s1 + $0x558] sm:$0xff]
    %v207 = vld [vmem:[%s1 + $0x560] sm:$0xff]
    %v208 = vld [vmem:[%s1 + $0x568] sm:$0xff]
    %v209 = vld [vmem:[%s1 + $0x570] sm:$0xff]
    %v210 = vld [vmem:[%s1 + $0x578] sm:$0xff]
    %v211 = vld [vmem:[%s1 + $0x580] sm:$0xff]
    %v212 = vld [vmem:[%s1 + $0x588] sm:$0xff]
    %v213 = vld [vmem:[%s1 + $0x590] sm:$0xff]
    %v214 = vld [vmem:[%s1 + $0x598] sm:$0xff]
    %v215 = vld [vmem:[%s1 + $0x5a0] sm:$0xff]
    %v216 = vld [vmem:[%s1 + $0x5a8] sm:$0xff]
    %v217 = vld [vmem:[%s1 + $0x5b0] sm:$0xff]
    %v218 = vld [vmem:[%s1 + $0x5b8] sm:$0xff]
    %v219 = vld [vmem:[%s1 + $0x5c0] sm:$0xff]
    %v220 = vld [vmem:[%s1 + $0x5c8] sm:$0xff]
    %v221 = vld [vmem:[%s1 + $0x5d0] sm:$0xff]
    %v222 = vld [vmem:[%s1 + $0x5d8] sm:$0xff]
    %v223 = vld [vmem:[%s1 + $0x5e0] sm:$0xff]
    %v224 = vld [vmem:[%s1 + $0x5e8] sm:$0xff]
    %v225 = vld [vmem:[%s1 + $0x5f0] sm:$0xff]
    %v226 = vld [vmem:[%s1 + $0x5f8] sm:$0xff]
    %v227 = vld [vmem:[%s1 + $0x600] sm:$0xff]
    %v228 = vld [vmem:[%s1 + $0x608] sm:$0xff]
    %v229 = vld [vmem:[%s1 + $0x610] sm:$0xff]
    %v230 = vld [vmem:[%s1 + $0x618] sm:$0xff]
    %v231 = vld [vmem:[%s1 + $0x620] sm:$0xff]
    %v232 = vld [vmem:[%s1 + $0x628] sm:$0xff]
    %v233 = vld [vmem:[%s1 + $0x630] sm:$0xff]
    %v234 = vld [vmem:[%s1 + $0x638] sm:$0xff]
    %v235 = vld [vmem:[%s1 + $0x640] sm:$0xff]
    %v236 = vld [vmem:[%s1 + $0x648] sm:$0xff]
    %v237 = vld [vmem:[%s1 + $0x650] sm:$0xff]
    %v238 = vld [vmem:[%s1 + $0x658] sm:$0xff]
    %v239 = vld [vmem:[%s1 + $0x660] sm:$0xff]
    %v240 = vld [vmem:[%s1 + $0x668] sm:$0xff]
    %v241 = vld [vmem:[%s1 + $0x670] sm:$0xff]
    %v242 = vld [vmem:[%s1 + $0x678] sm:$0xff]
    %v243 = vld [vmem:[%s1 + $0x680] sm:$0xff]
    %v244 = vld [vmem:[%s1 + $0x688] sm:$0xff]
    %v245 = vld [vmem:[%s1 + $0x690] sm:$0xff]
    %v246 = vld [vmem:[%s1 + $0x698] sm:$0xff]
    %v247 = vld [vmem:[%s1 + $0x6a0] sm:$0xff]
    %v248 = vld [vmem:[%s1 + $0x6a8] sm:$0xff]
    %v249 = vld [vmem:[%s1 + $0x6b0] sm:$0xff]
    %v250 = vld [vmem:[%s1 + $0x6b8] sm:$0xff]
    %v251 = vld [vmem:[%s1 + $0x6c0] sm:$0xff]
    %v252 = vld [vmem:[%s1 + $0x6c8] sm:$0xff]
    %v253 = vld [vmem:[%s1 + $0x6d0] sm:$0xff]
    %v254 = vld [vmem:[%s1 + $0x6d8] sm:$0xff]
    %v255 = vld [vmem:[%s1 + $0x6e0] sm:$0xff]
    %v256 = vld [vmem:[%s1 + $0x6e8] sm:$0xff]
    %v257 = vld [vmem:[%s1 + $0x6f0] sm:$0xff]
    %v258 = vld [vmem:[%s1 + $0x6f8] sm:$0xff]
    %v259 = vld [vmem:[%s1 + $0x700] sm:$0xff]
    %v260 = vld [vmem:[%s1 + $0x708] sm:$0xff]
    %v261 = vld [vmem:[%s1 + $0x710] sm:$0xff]
    %v262 = vld [vmem:[%s1 + $0x718] sm:$0xff]
    %v263 = vld [vmem:[%s1 + $0x720] sm:$0xff]
    %v264 = vld [vmem:[%s1 + $0x728] sm:$0xff]
    %v265 = vld [vmem:[%s1 + $0x730] sm:$0xff]
    %v266 = vld [vmem:[%s1 + $0x738] sm:$0xff]
    %v267 = vld [vmem:[%s1 + $0x740] sm:$0xff]
    %v268 = vld [vmem:[%s1 + $0x748] sm:$0xff]
    %v269 = vld [vmem:[%s1 + $0x750] sm:$0xff]
    %v270 = vld [vmem:[%s1 + $0x758] sm:$0xff]
    %v271 = vld [vmem:[%s1 + $0x760] sm:$0xff]
    %v272 = vld [vmem:[%s1 + $0x768] sm:$0xff]
    %v273 = vld [vmem:[%s1 + $0x770] sm:$0xff]
    %v274 = vld [vmem:[%s1 + $0x778] sm:$0xff]
    %v275 = vld [vmem:[%s1 + $0x780] sm:$0xff]
    %v276 = vld [vmem:[%s1 + $0x788] sm:$0xff]
    %v277 = vld [vmem:[%s1 + $0x790] sm:$0xff]
    %v278 = vld [vmem:[%s1 + $0x798] sm:$0xff]
    %v279 = vld [vmem:[%s1 + $0x7a0] sm:$0xff]
    %v280 = vld [vmem:[%s1 + $0x7a8] sm:$0xff]
    %v281 = vld [vmem:[%s1 + $0x7b0] sm:$0xff]
    %v282 = vld [vmem:[%s1 + $0x7b8] sm:$0xff]
    %v283 = vld [vmem:[%s1 + $0x7c0] sm:$0xff]
    %v284 = vld [vmem:[%s1 + $0x7c8] sm:$0xff]
    %v285 = vld [vmem:[%s1 + $0x7d0] sm:$0xff]
    %v286 = vld [vmem:[%s1 + $0x7d8] sm:$0xff]
    %v287 = vld [vmem:[%s1 + $0x7e0] sm:$0xff]
    %v288 = vld [vmem:[%s1 + $0x7e8] sm:$0xff]
    %v289 = vld [vmem:[%s1 + $0x7f0] sm:$0xff]
    %v290 = vld [vmem:[%s1 + $0x7f8] sm:$0xff]
    %v291 = vld [vmem:[%s1 + $0x800] sm:$0xff]
    %v292 = vld [vmem:[%s1 + $0x808] sm:$0xff]
    %v293 = vld [vmem:[%s1 + $0x810] sm:$0xff]
    %v294 = vld [vmem:[%s1 + $0x818] sm:$0xff]
    %v295 = vld [vmem:[%s1 + $0x820] sm:$0xff]
    %v296 = vld [vmem:[%s1 + $0x828] sm:$0xff]
    %v297 = vld [vmem:[%s1 + $0x830] sm:$0xff]
    %v298 = vld [vmem:[%s1 + $0x838] sm:$0xff]
    %v299 = vld [vmem:[%s1 + $0x840] sm:$0xff]
    %v300 = vld [vmem:[%s1 + $0x848] sm:$0xff]
    %v301 = vld [vmem:[%s1 + $0x850] sm:$0xff]
    %v302 = vld [vmem:[%s1 + $0x858] sm:$0xff]
    %v303 = vld [vmem:[%s1 + $0x860] sm:$0xff]
    %v304 = vld [vmem:[%s1 + $0x868] sm:$0xff]
    %v305 = vld [vmem:[%s1 + $0x870] sm:$0xff]
    %v306 = vld [vmem:[%s1 + $0x878] sm:$0xff]
    %v307 = vld [vmem:[%s1 + $0x880] sm:$0xff]
    %v308 = vld [vmem:[%s1 + $0x888] sm:$0xff]
    %v309 = vld [vmem:[%s1 + $0x890] sm:$0xff]
    %v310 = vld [vmem:[%s1 + $0x898] sm:$0xff]
    %v311 = vld [vmem:[%s1 + $0x8a0] sm:$0xff]
    %v312 = vld [vmem:[%s1 + $0x8a8] sm:$0xff]
    %v313 = vld [vmem:[%s1 + $0x8b0] sm:$0xff]
    %v314 = vld [vmem:[%s1 + $0x8b8] sm:$0xff]
    %v315 = vld [vmem:[%s1 + $0x8c0] sm:$0xff]
    %v316 = vld [vmem:[%s1 + $0x8c8] sm:$0xff]
    %v317 = vld [vmem:[%s1 + $0x8d0] sm:$0xff]
    %v318 = vld [vmem:[%s1 + $0x8d8] sm:$0xff]
    %v319 = vld [vmem:[%s1 + $0x8e0] sm:$0xff]
    %v320 = vld [vmem:[%s1 + $0x8e8] sm:$0xff]
    %v321 = vld [vmem:[%s1 + $0x8f0] sm:$0xff]
    %v322 = vld [vmem:[%s1 + $0x8f8] sm:$0xff]
    %v323 = vld [vmem:[%s1 + $0x900] sm:$0xff]
    %v324 = vld [vmem:[%s1 + $0x908] sm:$0xff]
    %v325 = vld [vmem:[%s1 + $0x910] sm:$0xff]
    %v326 = vld [vmem:[%s1 + $0x918] sm:$0xff]
    %v327 = vld [vmem:[%s1 + $0x920] sm:$0xff]
    %v328 = vld [vmem:[%s1 + $0x928] sm:$0xff]
    %v329 = vld [vmem:[%s1 + $0x930] sm:$0xff]
    %v330 = vld [vmem:[%s1 + $0x938] sm:$0xff]
    %v331 = vld [vmem:[%s1 + $0x940] sm:$0xff]
    %v332 = vld [vmem:[%s1 + $0x948] sm:$0xff]
    %v333 = vld [vmem:[%s1 + $0x950] sm:$0xff]
    %v334 = vld [vmem:[%s1 + $0x958] sm:$0xff]
    %v335 = vld [vmem:[%s1 + $0x960] sm:$0xff]
    %v336 = vld [vmem:[%s1 + $0x968] sm:$0xff]
    %v337 = vld [vmem:[%s1 + $0x970] sm:$0xff]
    %v338 = vld [vmem:[%s1 + $0x978] sm:$0xff]
    %v339 = vld [vmem:[%s1 + $0x980] sm:$0xff]
    %v340 = vld [vmem:[%s1 + $0x988] sm:$0xff]
    %v341 = vld [vmem:[%s1 + $0x990] sm:$0xff]
    %v342 = vld [vmem:[%s1 + $0x998] sm:$0xff]
    %v343 = vld [vmem:[%s1 + $0x9a0] sm:$0xff]
    %v344 = vld [vmem:[%s1 + $0x9a8] sm:$0xff]
    %v345 = vld [vmem:[%s1 + $0x9b0] sm:$0xff]
    %v346 = vld [vmem:[%s1 + $0x9b8] sm:$0xff]
    %v347 = vld [vmem:[%s1 + $0x9c0] sm:$0xff]
    %v348 = vld [vmem:[%s1 + $0x9c8] sm:$0xff]
    %v349 = vld [vmem:[%s1 + $0x9d0] sm:$0xff]
    %v350 = vld [vmem:[%s1 + $0x9d8] sm:$0xff]
    %v351 = vld [vmem:[%s1 + $0x9e0] sm:$0xff]
    %v352 = vld [vmem:[%s1 + $0x9e8] sm:$0xff]
    %v353 = vld [vmem:[%s1 + $0x9f0] sm:$0xff]
    %v354 = vld [vmem:[%s1 + $0x9f8] sm:$0xff]
    %v355 = vld [vmem:[%s1 + $0xa00] sm:$0xff]
    %v356 = vld [vmem:[%s1 + $0xa08] sm:$0xff]
    %v357 = vld [vmem:[%s1 + $0xa10] sm:$0xff]
    %v358 = vld [vmem:[%s1 + $0xa18] sm:$0xff]
    %v359 = vld [vmem:[%s1 + $0xa20] sm:$0xff]
    %v360 = vld [vmem:[%s1 + $0xa28] sm:$0xff]
    %v361 = vld [vmem:[%s1 + $0xa30] sm:$0xff]
    %v362 = vld [vmem:[%s1 + $0xa38] sm:$0xff]
    %v363 = vld [vmem:[%s1 + $0xa40] sm:$0xff]
    %v364 = vld [vmem:[%s1 + $0xa48] sm:$0xff]
    %v365 = vld [vmem:[%s1 + $0xa50] sm:$0xff]
    %v366 = vld [vmem:[%s1 + $0xa58] sm:$0xff]
    %v367 = vld [vmem:[%s1 + $0xa60] sm:$0xff]
    %v368 = vld [vmem:[%s1 + $0xa68] sm:$0xff]
    %v369 = vld [vmem:[%s1 + $0xa70] sm:$0xff]
    %v370 = vld [vmem:[%s1 + $0xa78] sm:$0xff]
    %v371 = vld [vmem:[%s1 + $0xa80] sm:$0xff]
    %v372 = vld [vmem:[%s1 + $0xa88] sm:$0xff]
    %v373 = vld [vmem:[%s1 + $0xa90] sm:$0xff]
    %v374 = vld [vmem:[%s1 + $0xa98] sm:$0xff]
    %v375 = vld [vmem:[%s1 + $0xaa0] sm:$0xff]
    %v376 = vld [vmem:[%s1 + $0xaa8] sm:$0xff]
    %v377 = vld [vmem:[%s1 + $0xab0] sm:$0xff]
    %v378 = vld [vmem:[%s1 + $0xab8] sm:$0xff]
    %v379 = vld [vmem:[%s1 + $0xac0] sm:$0xff]
    %v380 = vld [vmem:[%s1 + $0xac8] sm:$0xff]
    %v381 = vld [vmem:[%s1 + $0xad0] sm:$0xff]
    %v382 = vld [vmem:[%s1 + $0xad8] sm:$0xff]
    %v383 = vld [vmem:[%s1 + $0xae0] sm:$0xff]
    %v384 = vld [vmem:[%s1 + $0xae8] sm:$0xff]
    %v385 = vld [vmem:[%s1 + $0xaf0] sm:$0xff]
    %v386 = vld [vmem:[%s1 + $0xaf8] sm:$0xff]
    %v387 = vld [vmem:[%s1 + $0xb00] sm:$0xff]
    %v388 = vld [vmem:[%s1 + $0xb08] sm:$0xff]
    %v389 = vld [vmem:[%s1 + $0xb10] sm:$0xff]
    %v390 = vld [vmem:[%s1 + $0xb18] sm:$0xff]
    %v391 = vld [vmem:[%s1 + $0xb20] sm:$0xff]
    %v392 = vld [vmem:[%s1 + $0xb28] sm:$0xff]
    %v393 = vld [vmem:[%s1 + $0xb30] sm:$0xff]
    %v394 = vld [vmem:[%s1 + $0xb38] sm:$0xff]
    %v395 = vld [vmem:[%s1 + $0xb40] sm:$0xff]
    %v396 = vld [vmem:[%s1 + $0xb48] sm:$0xff]
    %v397 = vld [vmem:[%s1 + $0xb50] sm:$0xff]
    %v398 = vld [vmem:[%s1 + $0xb58] sm:$0xff]
    %v399 = vld [vmem:[%s1 + $0xb60] sm:$0xff]
    %v400 = vld [vmem:[%s1 + $0xb68] sm:$0xff]
    %v401 = vld [vmem:[%s1 + $0xb70] sm:$0xff]
    %v402 = vld [vmem:[%s1 + $0xb78] sm:$0xff]
    %v403 = vld [vmem:[%s1 + $0xb80] sm:$0xff]
    %v404 = vld [vmem:[%s1 + $0xb88] sm:$0xff]
    %v405 = vld [vmem:[%s1 + $0xb90] sm:$0xff]
    %v406 = vld [vmem:[%s1 + $0xb98] sm:$0xff]
    %v407 = vld [vmem:[%s1 + $0xba0] sm:$0xff]
    %v408 = vld [vmem:[%s1 + $0xba8] sm:$0xff]
    %v409 = vld [vmem:[%s1 + $0xbb0] sm:$0xff]
    %v410 = vld [vmem:[%s1 + $0xbb8] sm:$0xff]
    %v411 = vld [vmem:[%s1 + $0xbc0] sm:$0xff]
    %v412 = vld [vmem:[%s1 + $0xbc8] sm:$0xff]
    %v413 = vld [vmem:[%s1 + $0xbd0] sm:$0xff]
    %v414 = vld [vmem:[%s1 + $0xbd8] sm:$0xff]
    %v415 = vld [vmem:[%s1 + $0xbe0] sm:$0xff]
    %v416 = vld [vmem:[%s1 + $0xbe8] sm:$0xff]
    %v417 = vld [vmem:[%s1 + $0xbf0] sm:$0xff]
    %v418 = vld [vmem:[%s1 + $0xbf8] sm:$0xff]
    %v419 = vld [vmem:[%s1 + $0xc00] sm:$0xff]
    %v420 = vld [vmem:[%s1 + $0xc08] sm:$0xff]
    %v421 = vld [vmem:[%s1 + $0xc10] sm:$0xff]
    %v422 = vld [vmem:[%s1 + $0xc18] sm:$0xff]
    %v423 = vld [vmem:[%s1 + $0xc20] sm:$0xff]
    %v424 = vld [vmem:[%s1 + $0xc28] sm:$0xff]
    %v425 = vld [vmem:[%s1 + $0xc30] sm:$0xff]
    %v426 = vld [vmem:[%s1 + $0xc38] sm:$0xff]
    %v427 = vld [vmem:[%s1 + $0xc40] sm:$0xff]
    %v428 = vld [vmem:[%s1 + $0xc48] sm:$0xff]
    %v429 = vld [vmem:[%s1 + $0xc50] sm:$0xff]
    %v430 = vld [vmem:[%s1 + $0xc58] sm:$0xff]
    %v431 = vld [vmem:[%s1 + $0xc60] sm:$0xff]
    %v432 = vld [vmem:[%s1 + $0xc68] sm:$0xff]
    %v433 = vld [vmem:[%s1 + $0xc70] sm:$0xff]
    %v434 = vld [vmem:[%s1 + $0xc78] sm:$0xff]
    %v435 = vld [vmem:[%s1 + $0xc80] sm:$0xff]
    %v436 = vld [vmem:[%s1 + $0xc88] sm:$0xff]
    %v437 = vld [vmem:[%s1 + $0xc90] sm:$0xff]
    %v438 = vld [vmem:[%s1 + $0xc98] sm:$0xff]
    %v439 = vld [vmem:[%s1 + $0xca0] sm:$0xff]
    %v440 = vld [vmem:[%s1 + $0xca8] sm:$0xff]
    %v441 = vld [vmem:[%s1 + $0xcb0] sm:$0xff]
    %v442 = vld [vmem:[%s1 + $0xcb8] sm:$0xff]
    %v443 = vld [vmem:[%s1 + $0xcc0] sm:$0xff]
    %v444 = vld [vmem:[%s1 + $0xcc8] sm:$0xff]
    %v445 = vld [vmem:[%s1 + $0xcd0] sm:$0xff]
    %v446 = vld [vmem:[%s1 + $0xcd8] sm:$0xff]
    %v447 = vld [vmem:[%s1 + $0xce0] sm:$0xff]
    %v448 = vld [vmem:[%s1 + $0xce8] sm:$0xff]
    %v449 = vld [vmem:[%s1 + $0xcf0] sm:$0xff]
    %v450 = vld [vmem:[%s1 + $0xcf8] sm:$0xff]
    %v451 = vld [vmem:[%s1 + $0xd00] sm:$0xff]
    %v452 = vld [vmem:[%s1 + $0xd08] sm:$0xff]
    %v453 = vld [vmem:[%s1 + $0xd10] sm:$0xff]
    %v454 = vld [vmem:[%s1 + $0xd18] sm:$0xff]
    %v455 = vld [vmem:[%s1 + $0xd20] sm:$0xff]
    %v456 = vld [vmem:[%s1 + $0xd28] sm:$0xff]
    %v457 = vld [vmem:[%s1 + $0xd30] sm:$0xff]
    %v458 = vld [vmem:[%s1 + $0xd38] sm:$0xff]
    %v459 = vld [vmem:[%s1 + $0xd40] sm:$0xff]
    %v460 = vld [vmem:[%s1 + $0xd48] sm:$0xff]
    %v461 = vld [vmem:[%s1 + $0xd50] sm:$0xff]
    %v462 = vld [vmem:[%s1 + $0xd58] sm:$0xff]
    %v463 = vld [vmem:[%s1 + $0xd60] sm:$0xff]
    %v464 = vld [vmem:[%s1 + $0xd68] sm:$0xff]
    %v465 = vld [vmem:[%s1 + $0xd70] sm:$0xff]
    %v466 = vld [vmem:[%s1 + $0xd78] sm:$0xff]
    %v467 = vld [vmem:[%s1 + $0xd80] sm:$0xff]
    %v468 = vld [vmem:[%s1 + $0xd88] sm:$0xff]
    %v469 = vld [vmem:[%s1 + $0xd90] sm:$0xff]
    %v470 = vld [vmem:[%s1 + $0xd98] sm:$0xff]
    %v471 = vld [vmem:[%s1 + $0xda0] sm:$0xff]
    %v472 = vld [vmem:[%s1 + $0xda8] sm:$0xff]
    %v473 = vld [vmem:[%s1 + $0xdb0] sm:$0xff]
    %v474 = vld [vmem:[%s1 + $0xdb8] sm:$0xff]
    %v475 = vld [vmem:[%s1 + $0xdc0] sm:$0xff]
    %v476 = vld [vmem:[%s1 + $0xdc8] sm:$0xff]
    %v477 = vld [vmem:[%s1 + $0xdd0] sm:$0xff]
    %v478 = vld [vmem:[%s1 + $0xdd8] sm:$0xff]
    %v479 = vld [vmem:[%s1 + $0xde0] sm:$0xff]
    %v480 = vld [vmem:[%s1 + $0xde8] sm:$0xff]
    %v481 = vld [vmem:[%s1 + $0xdf0] sm:$0xff]
    %v482 = vld [vmem:[%s1 + $0xdf8] sm:$0xff]
    %v483 = vld [vmem:[%s1 + $0xe00] sm:$0xff]
    %v484 = vld [vmem:[%s1 + $0xe08] sm:$0xff]
    %v485 = vld [vmem:[%s1 + $0xe10] sm:$0xff]
    %v486 = vld [vmem:[%s1 + $0xe18] sm:$0xff]
    %v487 = vld [vmem:[%s1 + $0xe20] sm:$0xff]
    %v488 = vld [vmem:[%s1 + $0xe28] sm:$0xff]
    %v489 = vld [vmem:[%s1 + $0xe30] sm:$0xff]
    %v490 = vld [vmem:[%s1 + $0xe38] sm:$0xff]
    %v491 = vld [vmem:[%s1 + $0xe40] sm:$0xff]
    %v492 = vld [vmem:[%s1 + $0xe48] sm:$0xff]
    %v493 = vld [vmem:[%s1 + $0xe50] sm:$0xff]
    %v494 = vld [vmem:[%s1 + $0xe58] sm:$0xff]
    %v495 = vld [vmem:[%s1 + $0xe60] sm:$0xff]
    %v496 = vld [vmem:[%s1 + $0xe68] sm:$0xff]
    %v497 = vld [vmem:[%s1 + $0xe70] sm:$0xff]
    %v498 = vld [vmem:[%s1 + $0xe78] sm:$0xff]
    %v499 = vld [vmem:[%s1 + $0xe80] sm:$0xff]
    %v500 = vld [vmem:[%s1 + $0xe88] sm:$0xff]
    %v501 = vld [vmem:[%s1 + $0xe90] sm:$0xff]
    %v502 = vld [vmem:[%s1 + $0xe98] sm:$0xff]
    %v503 = vld [vmem:[%s1 + $0xea0] sm:$0xff]
    %v504 = vld [vmem:[%s1 + $0xea8] sm:$0xff]
    %v505 = vld [vmem:[%s1 + $0xeb0] sm:$0xff]
    %v506 = vld [vmem:[%s1 + $0xeb8] sm:$0xff]
    %v507 = vld [vmem:[%s1 + $0xec0] sm:$0xff]
    %v508 = vld [vmem:[%s1 + $0xec8] sm:$0xff]
    %v509 = vld [vmem:[%s1 + $0xed0] sm:$0xff]
    %v510 = vld [vmem:[%s1 + $0xed8] sm:$0xff]
    %v511 = vld [vmem:[%s1 + $0xee0] sm:$0xff]
    %v512 = vld [vmem:[%s1 + $0xee8] sm:$0xff]
    %v513 = vld [vmem:[%s1 + $0xef0] sm:$0xff]
    %v514 = vld [vmem:[%s1 + $0xef8] sm:$0xff]
    %v515 = vld [vmem:[%s1 + $0xf00] sm:$0xff]
    %v516 = vld [vmem:[%s1 + $0xf08] sm:$0xff]
    %v517 = vld [vmem:[%s1 + $0xf10] sm:$0xff]
    %v518 = vld [vmem:[%s1 + $0xf18] sm:$0xff]
    %v519 = vld [vmem:[%s1 + $0xf20] sm:$0xff]
    %v520 = vld [vmem:[%s1 + $0xf28] sm:$0xff]
    %v521 = vld [vmem:[%s1 + $0xf30] sm:$0xff]
    %v522 = vld [vmem:[%s1 + $0xf38] sm:$0xff]
    %v523 = vld [vmem:[%s1 + $0xf40] sm:$0xff]
    %v524 = vld [vmem:[%s1 + $0xf48] sm:$0xff]
    %v525 = vld [vmem:[%s1 + $0xf50] sm:$0xff]
    %v526 = vld [vmem:[%s1 + $0xf58] sm:$0xff]
    %v527 = vld [vmem:[%s1 + $0xf60] sm:$0xff]
    %v528 = vld [vmem:[%s1 + $0xf68] sm:$0xff]
    %v529 = vld [vmem:[%s1 + $0xf70] sm:$0xff]
    %v530 = vld [vmem:[%s1 + $0xf78] sm:$0xff]
    %v531 = vld [vmem:[%s1 + $0xf80] sm:$0xff]
    %v532 = vld [vmem:[%s1 + $0xf88] sm:$0xff]
    %v533 = vld [vmem:[%s1 + $0xf90] sm:$0xff]
    %v534 = vld [vmem:[%s1 + $0xf98] sm:$0xff]
    %v535 = vld [vmem:[%s1 + $0xfa0] sm:$0xff]
    %v536 = vld [vmem:[%s1 + $0xfa8] sm:$0xff]
    %v537 = vld [vmem:[%s1 + $0xfb0] sm:$0xff]
    %v538 = vld [vmem:[%s1 + $0xfb8] sm:$0xff]
    %v539 = vld [vmem:[%s1 + $0xfc0] sm:$0xff]
    %v540 = vld [vmem:[%s1 + $0xfc8] sm:$0xff]
    %v541 = vld [vmem:[%s1 + $0xfd0] sm:$0xff]
    %v542 = vld [vmem:[%s1 + $0xfd8] sm:$0xff]
    %v543 = vld [vmem:[%s1 + $0xfe0] sm:$0xff]
    %v544 = vld [vmem:[%s1 + $0xfe8] sm:$0xff]
    %v545 = vld [vmem:[%s1 + $0xff0] sm:$0xff]
    %v546 = vld [vmem:[%s1 + $0xff8] sm:$0xff]
    %v547 = vld [vmem:[%s2] sm:$0x1]
    %v549 = vperm.slane %v547, 0
    %559 = vst [vmem:[#allocation1] ss:$4 sm:$0xff] %v27
    %s560 = scalar_lea.vmem [#allocation1], 32
    %561 = vst [vmem:[%s560] ss:$4 sm:$0xff] %v28
    %v562 = vld.sshfl [vmem:[#allocation1] sm:$0xff pattern:$0x73625140]
    %v563 = vld.sshfl [vmem:[#allocation1 + $0x8] sm:$0xff pattern:$0x73625140]
    %v564 = vld.sshfl [vmem:[#allocation1 + $0x10] sm:$0xff pattern:$0x73625140]
    %v565 = vld.sshfl [vmem:[#allocation1 + $0x18] sm:$0xff pattern:$0x73625140]
    %v566 = vld.sshfl [vmem:[#allocation1 + $0x20] sm:$0xff pattern:$0x73625140]
    %v567 = vld.sshfl [vmem:[#allocation1 + $0x28] sm:$0xff pattern:$0x73625140]
    %v568 = vld.sshfl [vmem:[#allocation1 + $0x30] sm:$0xff pattern:$0x73625140]
    %v569 = vld.sshfl [vmem:[#allocation1 + $0x38] sm:$0xff pattern:$0x73625140]
    %570 = vst [vmem:[#allocation1] ss:$4 sm:$0xff] %v29
    %571 = vst [vmem:[%s560] ss:$4 sm:$0xff] %v30
    %v572 = vld.sshfl [vmem:[#allocation1] sm:$0xff pattern:$0x73625140]
    %v573 = vld.sshfl [vmem:[#allocation1 + $0x8] sm:$0xff pattern:$0x73625140]
    %v574 = vld.sshfl [vmem:[#allocation1 + $0x10] sm:$0xff pattern:$0x73625140]
    %v575 = vld.sshfl [vmem:[#allocation1 + $0x18] sm:$0xff pattern:$0x73625140]
    %v576 = vld.sshfl [vmem:[#allocation1 + $0x20] sm:$0xff pattern:$0x73625140]
    %v577 = vld.sshfl [vmem:[#allocation1 + $0x28] sm:$0xff pattern:$0x73625140]
    %v578 = vld.sshfl [vmem:[#allocation1 + $0x30] sm:$0xff pattern:$0x73625140]
    %v579 = vld.sshfl [vmem:[#allocation1 + $0x38] sm:$0xff pattern:$0x73625140]
    %580 = vst [vmem:[#allocation1] ss:$4 sm:$0xff] %v31
    %581 = vst [vmem:[%s560] ss:$4 sm:$0xff] %v32
    %v582 = vld.sshfl [vmem:[#allocation1] sm:$0xff pattern:$0x73625140]
    %v583 = vld.sshfl [vmem:[#allocation1 + $0x8] sm:$0xff pattern:$0x73625140]
    %v584 = vld.sshfl [vmem:[#allocation1 + $0x10] sm:$0xff pattern:$0x73625140]
    %v585 = vld.sshfl [vmem:[#allocation1 + $0x18] sm:$0xff pattern:$0x73625140]
    %v586 = vld.sshfl [vmem:[#allocation1 + $0x20] sm:$0xff pattern:$0x73625140]
    %v587 = vld.sshfl [vmem:[#allocation1 + $0x28] sm:$0xff pattern:$0x73625140]
    %v588 = vld.sshfl [vmem:[#allocation1 + $0x30] sm:$0xff pattern:$0x73625140]
    %v589 = vld.sshfl [vmem:[#allocation1 + $0x38] sm:$0xff pattern:$0x73625140]
    %590 = vst [vmem:[#allocation1] ss:$4 sm:$0xff] %v33
    %591 = vst [vmem:[%s560] ss:$4 sm:$0xff] %v34
    %v592 = vld.sshfl [vmem:[#allocation1] sm:$0xff pattern:$0x73625140]
    %v593 = vld.sshfl [vmem:[#allocation1 + $0x8] sm:$0xff pattern:$0x73625140]
    %v594 = vld.sshfl [vmem:[#allocation1 + $0x10] sm:$0xff pattern:$0x73625140]
    %v595 = vld.sshfl [vmem:[#allocation1 + $0x18] sm:$0xff pattern:$0x73625140]
    %v596 = vld.sshfl [vmem:[#allocation1 + $0x20] sm:$0xff pattern:$0x73625140]
    %v597 = vld.sshfl [vmem:[#allocation1 + $0x28] sm:$0xff pattern:$0x73625140]
    %v598 = vld.sshfl [vmem:[#allocation1 + $0x30] sm:$0xff pattern:$0x73625140]
    %v599 = vld.sshfl [vmem:[#allocation1 + $0x38] sm:$0xff pattern:$0x73625140]
    %632 = vmatpush.msra.mxu0 %v50
    %633 = vmatpush.msra.mxu0 %v49
    %634 = vmatpush.msra.mxu0 %v48
    %635 = vmatpush.msra.mxu0 %v47
    %636 = vmatpush.msra.mxu0 %v46
    %637 = vmatpush.msra.mxu0 %v45
    %638 = vmatpush.msra.mxu0 %v44
    %639 = vmatpush.msra.mxu0 %v43
    %640 = vmatpush.msra.mxu0 %v42
    %641 = vmatpush.msra.mxu0 %v41
    %642 = vmatpush.msra.mxu0 %v40
    %643 = vmatpush.msra.mxu0 %v39
    %644 = vmatpush.msra.mxu0 %v38
    %645 = vmatpush.msra.mxu0 %v37
    %646 = vmatpush.msra.mxu0 %v36
    %647 = vmatpush.msra.mxu0 %v35
    %648 = vmatmul.f32.gmra.mxu0 %v562
    %v649 = vpop.f32.mrf.mxu0
    %v650 = vadd.f32 %v549, %v649
    %651 = vdwg.mxu0
    %652 = vmatpush.msra.mxu0 %v66
    %653 = vmatpush.msra.mxu0 %v65
    %654 = vmatpush.msra.mxu0 %v64
    %655 = vmatpush.msra.mxu0 %v63
    %656 = vmatpush.msra.mxu0 %v62
    %657 = vmatpush.msra.mxu0 %v61
    %658 = vmatpush.msra.mxu0 %v60
    %659 = vmatpush.msra.mxu0 %v59
    %660 = vmatpush.msra.mxu0 %v58
    %661 = vmatpush.msra.mxu0 %v57
    %662 = vmatpush.msra.mxu0 %v56
    %663 = vmatpush.msra.mxu0 %v55
    %664 = vmatpush.msra.mxu0 %v54
    %665 = vmatpush.msra.mxu0 %v53
    %666 = vmatpush.msra.mxu0 %v52
    %667 = vmatpush.msra.mxu0 %v51
    %668 = vmatmul.f32.gmra.mxu0 %v563
    %v669 = vpop.f32.mrf.mxu0
    %v670 = vadd.f32 %v650, %v669
    %671 = vdwg.mxu0
    %672 = vmatpush.msra.mxu0 %v82
    %673 = vmatpush.msra.mxu0 %v81
    %674 = vmatpush.msra.mxu0 %v80
    %675 = vmatpush.msra.mxu0 %v79
    %676 = vmatpush.msra.mxu0 %v78
    %677 = vmatpush.msra.mxu0 %v77
    %678 = vmatpush.msra.mxu0 %v76
    %679 = vmatpush.msra.mxu0 %v75
    %680 = vmatpush.msra.mxu0 %v74
    %681 = vmatpush.msra.mxu0 %v73
    %682 = vmatpush.msra.mxu0 %v72
    %683 = vmatpush.msra.mxu0 %v71
    %684 = vmatpush.msra.mxu0 %v70
    %685 = vmatpush.msra.mxu0 %v69
    %686 = vmatpush.msra.mxu0 %v68
    %687 = vmatpush.msra.mxu0 %v67
    %688 = vmatmul.f32.gmra.mxu0 %v564
    %v689 = vpop.f32.mrf.mxu0
    %v690 = vadd.f32 %v670, %v689
    %691 = vdwg.mxu0
    %692 = vmatpush.msra.mxu0 %v98
    %693 = vmatpush.msra.mxu0 %v97
    %694 = vmatpush.msra.mxu0 %v96
    %695 = vmatpush.msra.mxu0 %v95
    %696 = vmatpush.msra.mxu0 %v94
    %697 = vmatpush.msra.mxu0 %v93
    %698 = vmatpush.msra.mxu0 %v92
    %699 = vmatpush.msra.mxu0 %v91
    %700 = vmatpush.msra.mxu0 %v90
    %701 = vmatpush.msra.mxu0 %v89
    %702 = vmatpush.msra.mxu0 %v88
    %703 = vmatpush.msra.mxu0 %v87
    %704 = vmatpush.msra.mxu0 %v86
    %705 = vmatpush.msra.mxu0 %v85
    %706 = vmatpush.msra.mxu0 %v84
    %707 = vmatpush.msra.mxu0 %v83
    %708 = vmatmul.f32.gmra.mxu0 %v565
    %v709 = vpop.f32.mrf.mxu0
    %v710 = vadd.f32 %v690, %v709
    %711 = vdwg.mxu0
    %712 = vmatpush.msra.mxu0 %v114
    %713 = vmatpush.msra.mxu0 %v113
    %714 = vmatpush.msra.mxu0 %v112
    %715 = vmatpush.msra.mxu0 %v111
    %716 = vmatpush.msra.mxu0 %v110
    %717 = vmatpush.msra.mxu0 %v109
    %718 = vmatpush.msra.mxu0 %v108
    %719 = vmatpush.msra.mxu0 %v107
    %720 = vmatpush.msra.mxu0 %v106
    %721 = vmatpush.msra.mxu0 %v105
    %722 = vmatpush.msra.mxu0 %v104
    %723 = vmatpush.msra.mxu0 %v103
    %724 = vmatpush.msra.mxu0 %v102
    %725 = vmatpush.msra.mxu0 %v101
    %726 = vmatpush.msra.mxu0 %v100
    %727 = vmatpush.msra.mxu0 %v99
    %728 = vmatmul.f32.gmra.mxu0 %v566
    %v729 = vpop.f32.mrf.mxu0
    %v730 = vadd.f32 %v710, %v729
    %731 = vdwg.mxu0
    %732 = vmatpush.msra.mxu0 %v130
    %733 = vmatpush.msra.mxu0 %v129
    %734 = vmatpush.msra.mxu0 %v128
    %735 = vmatpush.msra.mxu0 %v127
    %736 = vmatpush.msra.mxu0 %v126
    %737 = vmatpush.msra.mxu0 %v125
    %738 = vmatpush.msra.mxu0 %v124
    %739 = vmatpush.msra.mxu0 %v123
    %740 = vmatpush.msra.mxu0 %v122
    %741 = vmatpush.msra.mxu0 %v121
    %742 = vmatpush.msra.mxu0 %v120
    %743 = vmatpush.msra.mxu0 %v119
    %744 = vmatpush.msra.mxu0 %v118
    %745 = vmatpush.msra.mxu0 %v117
    %746 = vmatpush.msra.mxu0 %v116
    %747 = vmatpush.msra.mxu0 %v115
    %748 = vmatmul.f32.gmra.mxu0 %v567
    %v749 = vpop.f32.mrf.mxu0
    %v750 = vadd.f32 %v730, %v749
    %751 = vdwg.mxu0
    %752 = vmatpush.msra.mxu0 %v146
    %753 = vmatpush.msra.mxu0 %v145
    %754 = vmatpush.msra.mxu0 %v144
    %755 = vmatpush.msra.mxu0 %v143
    %756 = vmatpush.msra.mxu0 %v142
    %757 = vmatpush.msra.mxu0 %v141
    %758 = vmatpush.msra.mxu0 %v140
    %759 = vmatpush.msra.mxu0 %v139
    %760 = vmatpush.msra.mxu0 %v138
    %761 = vmatpush.msra.mxu0 %v137
    %762 = vmatpush.msra.mxu0 %v136
    %763 = vmatpush.msra.mxu0 %v135
    %764 = vmatpush.msra.mxu0 %v134
    %765 = vmatpush.msra.mxu0 %v133
    %766 = vmatpush.msra.mxu0 %v132
    %767 = vmatpush.msra.mxu0 %v131
    %768 = vmatmul.f32.gmra.mxu0 %v568
    %v769 = vpop.f32.mrf.mxu0
    %v770 = vadd.f32 %v750, %v769
    %771 = vdwg.mxu0
    %772 = vmatpush.msra.mxu0 %v162
    %773 = vmatpush.msra.mxu0 %v161
    %774 = vmatpush.msra.mxu0 %v160
    %775 = vmatpush.msra.mxu0 %v159
    %776 = vmatpush.msra.mxu0 %v158
    %777 = vmatpush.msra.mxu0 %v157
    %778 = vmatpush.msra.mxu0 %v156
    %779 = vmatpush.msra.mxu0 %v155
    %780 = vmatpush.msra.mxu0 %v154
    %781 = vmatpush.msra.mxu0 %v153
    %782 = vmatpush.msra.mxu0 %v152
    %783 = vmatpush.msra.mxu0 %v151
    %784 = vmatpush.msra.mxu0 %v150
    %785 = vmatpush.msra.mxu0 %v149
    %786 = vmatpush.msra.mxu0 %v148
    %787 = vmatpush.msra.mxu0 %v147
    %788 = vmatmul.f32.gmra.mxu0 %v569
    %v789 = vpop.f32.mrf.mxu0
    %v790 = vadd.f32 %v770, %v789
    %791 = vdwg.mxu0
    %792 = vmatpush.msra.mxu0 %v178
    %793 = vmatpush.msra.mxu0 %v177
    %794 = vmatpush.msra.mxu0 %v176
    %795 = vmatpush.msra.mxu0 %v175
    %796 = vmatpush.msra.mxu0 %v174
    %797 = vmatpush.msra.mxu0 %v173
    %798 = vmatpush.msra.mxu0 %v172
    %799 = vmatpush.msra.mxu0 %v171
    %800 = vmatpush.msra.mxu0 %v170
    %801 = vmatpush.msra.mxu0 %v169
    %802 = vmatpush.msra.mxu0 %v168
    %803 = vmatpush.msra.mxu0 %v167
    %804 = vmatpush.msra.mxu0 %v166
    %805 = vmatpush.msra.mxu0 %v165
    %806 = vmatpush.msra.mxu0 %v164
    %807 = vmatpush.msra.mxu0 %v163
    %808 = vmatmul.f32.gmra.mxu0 %v572
    %v809 = vpop.f32.mrf.mxu0
    %v810 = vadd.f32 %v790, %v809
    %811 = vdwg.mxu0
    %812 = vmatpush.msra.mxu0 %v194
    %813 = vmatpush.msra.mxu0 %v193
    %814 = vmatpush.msra.mxu0 %v192
    %815 = vmatpush.msra.mxu0 %v191
    %816 = vmatpush.msra.mxu0 %v190
    %817 = vmatpush.msra.mxu0 %v189
    %818 = vmatpush.msra.mxu0 %v188
    %819 = vmatpush.msra.mxu0 %v187
    %820 = vmatpush.msra.mxu0 %v186
    %821 = vmatpush.msra.mxu0 %v185
    %822 = vmatpush.msra.mxu0 %v184
    %823 = vmatpush.msra.mxu0 %v183
    %824 = vmatpush.msra.mxu0 %v182
    %825 = vmatpush.msra.mxu0 %v181
    %826 = vmatpush.msra.mxu0 %v180
    %827 = vmatpush.msra.mxu0 %v179
    %828 = vmatmul.f32.gmra.mxu0 %v573
    %v829 = vpop.f32.mrf.mxu0
    %v830 = vadd.f32 %v810, %v829
    %831 = vdwg.mxu0
    %832 = vmatpush.msra.mxu0 %v210
    %833 = vmatpush.msra.mxu0 %v209
    %834 = vmatpush.msra.mxu0 %v208
    %835 = vmatpush.msra.mxu0 %v207
    %836 = vmatpush.msra.mxu0 %v206
    %837 = vmatpush.msra.mxu0 %v205
    %838 = vmatpush.msra.mxu0 %v204
    %839 = vmatpush.msra.mxu0 %v203
    %840 = vmatpush.msra.mxu0 %v202
    %841 = vmatpush.msra.mxu0 %v201
    %842 = vmatpush.msra.mxu0 %v200
    %843 = vmatpush.msra.mxu0 %v199
    %844 = vmatpush.msra.mxu0 %v198
    %845 = vmatpush.msra.mxu0 %v197
    %846 = vmatpush.msra.mxu0 %v196
    %847 = vmatpush.msra.mxu0 %v195
    %848 = vmatmul.f32.gmra.mxu0 %v574
    %v849 = vpop.f32.mrf.mxu0
    %v850 = vadd.f32 %v830, %v849
    %851 = vdwg.mxu0
    %852 = vmatpush.msra.mxu0 %v226
    %853 = vmatpush.msra.mxu0 %v225
    %854 = vmatpush.msra.mxu0 %v224
    %855 = vmatpush.msra.mxu0 %v223
    %856 = vmatpush.msra.mxu0 %v222
    %857 = vmatpush.msra.mxu0 %v221
    %858 = vmatpush.msra.mxu0 %v220
    %859 = vmatpush.msra.mxu0 %v219
    %860 = vmatpush.msra.mxu0 %v218
    %861 = vmatpush.msra.mxu0 %v217
    %862 = vmatpush.msra.mxu0 %v216
    %863 = vmatpush.msra.mxu0 %v215
    %864 = vmatpush.msra.mxu0 %v214
    %865 = vmatpush.msra.mxu0 %v213
    %866 = vmatpush.msra.mxu0 %v212
    %867 = vmatpush.msra.mxu0 %v211
    %868 = vmatmul.f32.gmra.mxu0 %v575
    %v869 = vpop.f32.mrf.mxu0
    %v870 = vadd.f32 %v850, %v869
    %871 = vdwg.mxu0
    %872 = vmatpush.msra.mxu0 %v242
    %873 = vmatpush.msra.mxu0 %v241
    %874 = vmatpush.msra.mxu0 %v240
    %875 = vmatpush.msra.mxu0 %v239
    %876 = vmatpush.msra.mxu0 %v238
    %877 = vmatpush.msra.mxu0 %v237
    %878 = vmatpush.msra.mxu0 %v236
    %879 = vmatpush.msra.mxu0 %v235
    %880 = vmatpush.msra.mxu0 %v234
    %881 = vmatpush.msra.mxu0 %v233
    %882 = vmatpush.msra.mxu0 %v232
    %883 = vmatpush.msra.mxu0 %v231
    %884 = vmatpush.msra.mxu0 %v230
    %885 = vmatpush.msra.mxu0 %v229
    %886 = vmatpush.msra.mxu0 %v228
    %887 = vmatpush.msra.mxu0 %v227
    %888 = vmatmul.f32.gmra.mxu0 %v576
    %v889 = vpop.f32.mrf.mxu0
    %v890 = vadd.f32 %v870, %v889
    %891 = vdwg.mxu0
    %892 = vmatpush.msra.mxu0 %v258
    %893 = vmatpush.msra.mxu0 %v257
    %894 = vmatpush.msra.mxu0 %v256
    %895 = vmatpush.msra.mxu0 %v255
    %896 = vmatpush.msra.mxu0 %v254
    %897 = vmatpush.msra.mxu0 %v253
    %898 = vmatpush.msra.mxu0 %v252
    %899 = vmatpush.msra.mxu0 %v251
    %900 = vmatpush.msra.mxu0 %v250
    %901 = vmatpush.msra.mxu0 %v249
    %902 = vmatpush.msra.mxu0 %v248
    %903 = vmatpush.msra.mxu0 %v247
    %904 = vmatpush.msra.mxu0 %v246
    %905 = vmatpush.msra.mxu0 %v245
    %906 = vmatpush.msra.mxu0 %v244
    %907 = vmatpush.msra.mxu0 %v243
    %908 = vmatmul.f32.gmra.mxu0 %v577
    %v909 = vpop.f32.mrf.mxu0
    %v910 = vadd.f32 %v890, %v909
    %911 = vdwg.mxu0
    %912 = vmatpush.msra.mxu0 %v274
    %913 = vmatpush.msra.mxu0 %v273
    %914 = vmatpush.msra.mxu0 %v272
    %915 = vmatpush.msra.mxu0 %v271
    %916 = vmatpush.msra.mxu0 %v270
    %917 = vmatpush.msra.mxu0 %v269
    %918 = vmatpush.msra.mxu0 %v268
    %919 = vmatpush.msra.mxu0 %v267
    %920 = vmatpush.msra.mxu0 %v266
    %921 = vmatpush.msra.mxu0 %v265
    %922 = vmatpush.msra.mxu0 %v264
    %923 = vmatpush.msra.mxu0 %v263
    %924 = vmatpush.msra.mxu0 %v262
    %925 = vmatpush.msra.mxu0 %v261
    %926 = vmatpush.msra.mxu0 %v260
    %927 = vmatpush.msra.mxu0 %v259
    %928 = vmatmul.f32.gmra.mxu0 %v578
    %v929 = vpop.f32.mrf.mxu0
    %v930 = vadd.f32 %v910, %v929
    %931 = vdwg.mxu0
    %932 = vmatpush.msra.mxu0 %v290
    %933 = vmatpush.msra.mxu0 %v289
    %934 = vmatpush.msra.mxu0 %v288
    %935 = vmatpush.msra.mxu0 %v287
    %936 = vmatpush.msra.mxu0 %v286
    %937 = vmatpush.msra.mxu0 %v285
    %938 = vmatpush.msra.mxu0 %v284
    %939 = vmatpush.msra.mxu0 %v283
    %940 = vmatpush.msra.mxu0 %v282
    %941 = vmatpush.msra.mxu0 %v281
    %942 = vmatpush.msra.mxu0 %v280
    %943 = vmatpush.msra.mxu0 %v279
    %944 = vmatpush.msra.mxu0 %v278
    %945 = vmatpush.msra.mxu0 %v277
    %946 = vmatpush.msra.mxu0 %v276
    %947 = vmatpush.msra.mxu0 %v275
    %948 = vmatmul.f32.gmra.mxu0 %v579
    %v949 = vpop.f32.mrf.mxu0
    %v950 = vadd.f32 %v930, %v949
    %951 = vdwg.mxu0
    %952 = vmatpush.msra.mxu0 %v306
    %953 = vmatpush.msra.mxu0 %v305
    %954 = vmatpush.msra.mxu0 %v304
    %955 = vmatpush.msra.mxu0 %v303
    %956 = vmatpush.msra.mxu0 %v302
    %957 = vmatpush.msra.mxu0 %v301
    %958 = vmatpush.msra.mxu0 %v300
    %959 = vmatpush.msra.mxu0 %v299
    %960 = vmatpush.msra.mxu0 %v298
    %961 = vmatpush.msra.mxu0 %v297
    %962 = vmatpush.msra.mxu0 %v296
    %963 = vmatpush.msra.mxu0 %v295
    %964 = vmatpush.msra.mxu0 %v294
    %965 = vmatpush.msra.mxu0 %v293
    %966 = vmatpush.msra.mxu0 %v292
    %967 = vmatpush.msra.mxu0 %v291
    %968 = vmatmul.f32.gmra.mxu0 %v582
    %v969 = vpop.f32.mrf.mxu0
    %v970 = vadd.f32 %v950, %v969
    %971 = vdwg.mxu0
    %972 = vmatpush.msra.mxu0 %v322
    %973 = vmatpush.msra.mxu0 %v321
    %974 = vmatpush.msra.mxu0 %v320
    %975 = vmatpush.msra.mxu0 %v319
    %976 = vmatpush.msra.mxu0 %v318
    %977 = vmatpush.msra.mxu0 %v317
    %978 = vmatpush.msra.mxu0 %v316
    %979 = vmatpush.msra.mxu0 %v315
    %980 = vmatpush.msra.mxu0 %v314
    %981 = vmatpush.msra.mxu0 %v313
    %982 = vmatpush.msra.mxu0 %v312
    %983 = vmatpush.msra.mxu0 %v311
    %984 = vmatpush.msra.mxu0 %v310
    %985 = vmatpush.msra.mxu0 %v309
    %986 = vmatpush.msra.mxu0 %v308
    %987 = vmatpush.msra.mxu0 %v307
    %988 = vmatmul.f32.gmra.mxu0 %v583
    %v989 = vpop.f32.mrf.mxu0
    %v990 = vadd.f32 %v970, %v989
    %991 = vdwg.mxu0
    %992 = vmatpush.msra.mxu0 %v338
    %993 = vmatpush.msra.mxu0 %v337
    %994 = vmatpush.msra.mxu0 %v336
    %995 = vmatpush.msra.mxu0 %v335
    %996 = vmatpush.msra.mxu0 %v334
    %997 = vmatpush.msra.mxu0 %v333
    %998 = vmatpush.msra.mxu0 %v332
    %999 = vmatpush.msra.mxu0 %v331
    %1000 = vmatpush.msra.mxu0 %v330
    %1001 = vmatpush.msra.mxu0 %v329
    %1002 = vmatpush.msra.mxu0 %v328
    %1003 = vmatpush.msra.mxu0 %v327
    %1004 = vmatpush.msra.mxu0 %v326
    %1005 = vmatpush.msra.mxu0 %v325
    %1006 = vmatpush.msra.mxu0 %v324
    %1007 = vmatpush.msra.mxu0 %v323
    %1008 = vmatmul.f32.gmra.mxu0 %v584
    %v1009 = vpop.f32.mrf.mxu0
    %v1010 = vadd.f32 %v990, %v1009
    %1011 = vdwg.mxu0
    %1012 = vmatpush.msra.mxu0 %v354
    %1013 = vmatpush.msra.mxu0 %v353
    %1014 = vmatpush.msra.mxu0 %v352
    %1015 = vmatpush.msra.mxu0 %v351
    %1016 = vmatpush.msra.mxu0 %v350
    %1017 = vmatpush.msra.mxu0 %v349
    %1018 = vmatpush.msra.mxu0 %v348
    %1019 = vmatpush.msra.mxu0 %v347
    %1020 = vmatpush.msra.mxu0 %v346
    %1021 = vmatpush.msra.mxu0 %v345
    %1022 = vmatpush.msra.mxu0 %v344
    %1023 = vmatpush.msra.mxu0 %v343
    %1024 = vmatpush.msra.mxu0 %v342
    %1025 = vmatpush.msra.mxu0 %v341
    %1026 = vmatpush.msra.mxu0 %v340
    %1027 = vmatpush.msra.mxu0 %v339
    %1028 = vmatmul.f32.gmra.mxu0 %v585
    %v1029 = vpop.f32.mrf.mxu0
    %v1030 = vadd.f32 %v1010, %v1029
    %1031 = vdwg.mxu0
    %1032 = vmatpush.msra.mxu0 %v370
    %1033 = vmatpush.msra.mxu0 %v369
    %1034 = vmatpush.msra.mxu0 %v368
    %1035 = vmatpush.msra.mxu0 %v367
    %1036 = vmatpush.msra.mxu0 %v366
    %1037 = vmatpush.msra.mxu0 %v365
    %1038 = vmatpush.msra.mxu0 %v364
    %1039 = vmatpush.msra.mxu0 %v363
    %1040 = vmatpush.msra.mxu0 %v362
    %1041 = vmatpush.msra.mxu0 %v361
    %1042 = vmatpush.msra.mxu0 %v360
    %1043 = vmatpush.msra.mxu0 %v359
    %1044 = vmatpush.msra.mxu0 %v358
    %1045 = vmatpush.msra.mxu0 %v357
    %1046 = vmatpush.msra.mxu0 %v356
    %1047 = vmatpush.msra.mxu0 %v355
    %1048 = vmatmul.f32.gmra.mxu0 %v586
    %v1049 = vpop.f32.mrf.mxu0
    %v1050 = vadd.f32 %v1030, %v1049
    %1051 = vdwg.mxu0
    %1052 = vmatpush.msra.mxu0 %v386
    %1053 = vmatpush.msra.mxu0 %v385
    %1054 = vmatpush.msra.mxu0 %v384
    %1055 = vmatpush.msra.mxu0 %v383
    %1056 = vmatpush.msra.mxu0 %v382
    %1057 = vmatpush.msra.mxu0 %v381
    %1058 = vmatpush.msra.mxu0 %v380
    %1059 = vmatpush.msra.mxu0 %v379
    %1060 = vmatpush.msra.mxu0 %v378
    %1061 = vmatpush.msra.mxu0 %v377
    %1062 = vmatpush.msra.mxu0 %v376
    %1063 = vmatpush.msra.mxu0 %v375
    %1064 = vmatpush.msra.mxu0 %v374
    %1065 = vmatpush.msra.mxu0 %v373
    %1066 = vmatpush.msra.mxu0 %v372
    %1067 = vmatpush.msra.mxu0 %v371
    %1068 = vmatmul.f32.gmra.mxu0 %v587
    %v1069 = vpop.f32.mrf.mxu0
    %v1070 = vadd.f32 %v1050, %v1069
    %1071 = vdwg.mxu0
    %1072 = vmatpush.msra.mxu0 %v402
    %1073 = vmatpush.msra.mxu0 %v401
    %1074 = vmatpush.msra.mxu0 %v400
    %1075 = vmatpush.msra.mxu0 %v399
    %1076 = vmatpush.msra.mxu0 %v398
    %1077 = vmatpush.msra.mxu0 %v397
    %1078 = vmatpush.msra.mxu0 %v396
    %1079 = vmatpush.msra.mxu0 %v395
    %1080 = vmatpush.msra.mxu0 %v394
    %1081 = vmatpush.msra.mxu0 %v393
    %1082 = vmatpush.msra.mxu0 %v392
    %1083 = vmatpush.msra.mxu0 %v391
    %1084 = vmatpush.msra.mxu0 %v390
    %1085 = vmatpush.msra.mxu0 %v389
    %1086 = vmatpush.msra.mxu0 %v388
    %1087 = vmatpush.msra.mxu0 %v387
    %1088 = vmatmul.f32.gmra.mxu0 %v588
    %v1089 = vpop.f32.mrf.mxu0
    %v1090 = vadd.f32 %v1070, %v1089
    %1091 = vdwg.mxu0
    %1092 = vmatpush.msra.mxu0 %v418
    %1093 = vmatpush.msra.mxu0 %v417
    %1094 = vmatpush.msra.mxu0 %v416
    %1095 = vmatpush.msra.mxu0 %v415
    %1096 = vmatpush.msra.mxu0 %v414
    %1097 = vmatpush.msra.mxu0 %v413
    %1098 = vmatpush.msra.mxu0 %v412
    %1099 = vmatpush.msra.mxu0 %v411
    %1100 = vmatpush.msra.mxu0 %v410
    %1101 = vmatpush.msra.mxu0 %v409
    %1102 = vmatpush.msra.mxu0 %v408
    %1103 = vmatpush.msra.mxu0 %v407
    %1104 = vmatpush.msra.mxu0 %v406
    %1105 = vmatpush.msra.mxu0 %v405
    %1106 = vmatpush.msra.mxu0 %v404
    %1107 = vmatpush.msra.mxu0 %v403
    %1108 = vmatmul.f32.gmra.mxu0 %v589
    %v1109 = vpop.f32.mrf.mxu0
    %v1110 = vadd.f32 %v1090, %v1109
    %1111 = vdwg.mxu0
    %1112 = vmatpush.msra.mxu0 %v434
    %1113 = vmatpush.msra.mxu0 %v433
    %1114 = vmatpush.msra.mxu0 %v432
    %1115 = vmatpush.msra.mxu0 %v431
    %1116 = vmatpush.msra.mxu0 %v430
    %1117 = vmatpush.msra.mxu0 %v429
    %1118 = vmatpush.msra.mxu0 %v428
    %1119 = vmatpush.msra.mxu0 %v427
    %1120 = vmatpush.msra.mxu0 %v426
    %1121 = vmatpush.msra.mxu0 %v425
    %1122 = vmatpush.msra.mxu0 %v424
    %1123 = vmatpush.msra.mxu0 %v423
    %1124 = vmatpush.msra.mxu0 %v422
    %1125 = vmatpush.msra.mxu0 %v421
    %1126 = vmatpush.msra.mxu0 %v420
    %1127 = vmatpush.msra.mxu0 %v419
    %1128 = vmatmul.f32.gmra.mxu0 %v592
    %v1129 = vpop.f32.mrf.mxu0
    %v1130 = vadd.f32 %v1110, %v1129
    %1131 = vdwg.mxu0
    %1132 = vmatpush.msra.mxu0 %v450
    %1133 = vmatpush.msra.mxu0 %v449
    %1134 = vmatpush.msra.mxu0 %v448
    %1135 = vmatpush.msra.mxu0 %v447
    %1136 = vmatpush.msra.mxu0 %v446
    %1137 = vmatpush.msra.mxu0 %v445
    %1138 = vmatpush.msra.mxu0 %v444
    %1139 = vmatpush.msra.mxu0 %v443
    %1140 = vmatpush.msra.mxu0 %v442
    %1141 = vmatpush.msra.mxu0 %v441
    %1142 = vmatpush.msra.mxu0 %v440
    %1143 = vmatpush.msra.mxu0 %v439
    %1144 = vmatpush.msra.mxu0 %v438
    %1145 = vmatpush.msra.mxu0 %v437
    %1146 = vmatpush.msra.mxu0 %v436
    %1147 = vmatpush.msra.mxu0 %v435
    %1148 = vmatmul.f32.gmra.mxu0 %v593
    %v1149 = vpop.f32.mrf.mxu0
    %v1150 = vadd.f32 %v1130, %v1149
    %1151 = vdwg.mxu0
    %1152 = vmatpush.msra.mxu0 %v466
    %1153 = vmatpush.msra.mxu0 %v465
    %1154 = vmatpush.msra.mxu0 %v464
    %1155 = vmatpush.msra.mxu0 %v463
    %1156 = vmatpush.msra.mxu0 %v462
    %1157 = vmatpush.msra.mxu0 %v461
    %1158 = vmatpush.msra.mxu0 %v460
    %1159 = vmatpush.msra.mxu0 %v459
    %1160 = vmatpush.msra.mxu0 %v458
    %1161 = vmatpush.msra.mxu0 %v457
    %1162 = vmatpush.msra.mxu0 %v456
    %1163 = vmatpush.msra.mxu0 %v455
    %1164 = vmatpush.msra.mxu0 %v454
    %1165 = vmatpush.msra.mxu0 %v453
    %1166 = vmatpush.msra.mxu0 %v452
    %1167 = vmatpush.msra.mxu0 %v451
    %1168 = vmatmul.f32.gmra.mxu0 %v594
    %v1169 = vpop.f32.mrf.mxu0
    %v1170 = vadd.f32 %v1150, %v1169
    %1171 = vdwg.mxu0
    %1172 = vmatpush.msra.mxu0 %v482
    %1173 = vmatpush.msra.mxu0 %v481
    %1174 = vmatpush.msra.mxu0 %v480
    %1175 = vmatpush.msra.mxu0 %v479
    %1176 = vmatpush.msra.mxu0 %v478
    %1177 = vmatpush.msra.mxu0 %v477
    %1178 = vmatpush.msra.mxu0 %v476
    %1179 = vmatpush.msra.mxu0 %v475
    %1180 = vmatpush.msra.mxu0 %v474
    %1181 = vmatpush.msra.mxu0 %v473
    %1182 = vmatpush.msra.mxu0 %v472
    %1183 = vmatpush.msra.mxu0 %v471
    %1184 = vmatpush.msra.mxu0 %v470
    %1185 = vmatpush.msra.mxu0 %v469
    %1186 = vmatpush.msra.mxu0 %v468
    %1187 = vmatpush.msra.mxu0 %v467
    %1188 = vmatmul.f32.gmra.mxu0 %v595
    %v1189 = vpop.f32.mrf.mxu0
    %v1190 = vadd.f32 %v1170, %v1189
    %1191 = vdwg.mxu0
    %1192 = vmatpush.msra.mxu0 %v498
    %1193 = vmatpush.msra.mxu0 %v497
    %1194 = vmatpush.msra.mxu0 %v496
    %1195 = vmatpush.msra.mxu0 %v495
    %1196 = vmatpush.msra.mxu0 %v494
    %1197 = vmatpush.msra.mxu0 %v493
    %1198 = vmatpush.msra.mxu0 %v492
    %1199 = vmatpush.msra.mxu0 %v491
    %1200 = vmatpush.msra.mxu0 %v490
    %1201 = vmatpush.msra.mxu0 %v489
    %1202 = vmatpush.msra.mxu0 %v488
    %1203 = vmatpush.msra.mxu0 %v487
    %1204 = vmatpush.msra.mxu0 %v486
    %1205 = vmatpush.msra.mxu0 %v485
    %1206 = vmatpush.msra.mxu0 %v484
    %1207 = vmatpush.msra.mxu0 %v483
    %1208 = vmatmul.f32.gmra.mxu0 %v596
    %v1209 = vpop.f32.mrf.mxu0
    %v1210 = vadd.f32 %v1190, %v1209
    %1211 = vdwg.mxu0
    %1212 = vmatpush.msra.mxu0 %v514
    %1213 = vmatpush.msra.mxu0 %v513
    %1214 = vmatpush.msra.mxu0 %v512
    %1215 = vmatpush.msra.mxu0 %v511
    %1216 = vmatpush.msra.mxu0 %v510
    %1217 = vmatpush.msra.mxu0 %v509
    %1218 = vmatpush.msra.mxu0 %v508
    %1219 = vmatpush.msra.mxu0 %v507
    %1220 = vmatpush.msra.mxu0 %v506
    %1221 = vmatpush.msra.mxu0 %v505
    %1222 = vmatpush.msra.mxu0 %v504
    %1223 = vmatpush.msra.mxu0 %v503
    %1224 = vmatpush.msra.mxu0 %v502
    %1225 = vmatpush.msra.mxu0 %v501
    %1226 = vmatpush.msra.mxu0 %v500
    %1227 = vmatpush.msra.mxu0 %v499
    %1228 = vmatmul.f32.gmra.mxu0 %v597
    %v1229 = vpop.f32.mrf.mxu0
    %v1230 = vadd.f32 %v1210, %v1229
    %1231 = vdwg.mxu0
    %1232 = vmatpush.msra.mxu0 %v530
    %1233 = vmatpush.msra.mxu0 %v529
    %1234 = vmatpush.msra.mxu0 %v528
    %1235 = vmatpush.msra.mxu0 %v527
    %1236 = vmatpush.msra.mxu0 %v526
    %1237 = vmatpush.msra.mxu0 %v525
    %1238 = vmatpush.msra.mxu0 %v524
    %1239 = vmatpush.msra.mxu0 %v523
    %1240 = vmatpush.msra.mxu0 %v522
    %1241 = vmatpush.msra.mxu0 %v521
    %1242 = vmatpush.msra.mxu0 %v520
    %1243 = vmatpush.msra.mxu0 %v519
    %1244 = vmatpush.msra.mxu0 %v518
    %1245 = vmatpush.msra.mxu0 %v517
    %1246 = vmatpush.msra.mxu0 %v516
    %1247 = vmatpush.msra.mxu0 %v515
    %1248 = vmatmul.f32.gmra.mxu0 %v598
    %v1249 = vpop.f32.mrf.mxu0
    %v1250 = vadd.f32 %v1230, %v1249
    %1251 = vdwg.mxu0
    %1252 = vmatpush.msra.mxu0 %v546
    %1253 = vmatpush.msra.mxu0 %v545
    %1254 = vmatpush.msra.mxu0 %v544
    %1255 = vmatpush.msra.mxu0 %v543
    %1256 = vmatpush.msra.mxu0 %v542
    %1257 = vmatpush.msra.mxu0 %v541
    %1258 = vmatpush.msra.mxu0 %v540
    %1259 = vmatpush.msra.mxu0 %v539
    %1260 = vmatpush.msra.mxu0 %v538
    %1261 = vmatpush.msra.mxu0 %v537
    %1262 = vmatpush.msra.mxu0 %v536
    %1263 = vmatpush.msra.mxu0 %v535
    %1264 = vmatpush.msra.mxu0 %v534
    %1265 = vmatpush.msra.mxu0 %v533
    %1266 = vmatpush.msra.mxu0 %v532
    %1267 = vmatpush.msra.mxu0 %v531
    %1268 = vmatmul.f32.gmra.mxu0 %v599
    %v1269 = vpop.f32.mrf.mxu0
    %v1270 = vadd.f32 %v1250, %v1269
    %1271 = vdwg.mxu0
    %v1272 = vmax.f32 %v1270, 0.0
    %v1273 = vld [vmem:[%s3] sm:$0xff]
    %v1274 = vld [vmem:[%s3 + $0x8] sm:$0xff]
    %v1275 = vld [vmem:[%s3 + $0x10] sm:$0xff]
    %v1276 = vld [vmem:[%s3 + $0x18] sm:$0xff]
    %v1277 = vld [vmem:[%s3 + $0x20] sm:$0xff]
    %v1278 = vld [vmem:[%s3 + $0x28] sm:$0xff]
    %v1279 = vld [vmem:[%s3 + $0x30] sm:$0xff]
    %v1280 = vld [vmem:[%s3 + $0x38] sm:$0xff]
    %v1281 = vld [vmem:[%s3 + $0x40] sm:$0xff]
    %v1282 = vld [vmem:[%s3 + $0x48] sm:$0xff]
    %v1283 = vld [vmem:[%s3 + $0x50] sm:$0xff]
    %v1284 = vld [vmem:[%s3 + $0x58] sm:$0xff]
    %v1285 = vld [vmem:[%s3 + $0x60] sm:$0xff]
    %v1286 = vld [vmem:[%s3 + $0x68] sm:$0xff]
    %v1287 = vld [vmem:[%s3 + $0x70] sm:$0xff]
    %v1288 = vld [vmem:[%s3 + $0x78] sm:$0xff]
    %v1289 = vld [vmem:[%s4] sm:$0x1]
    %v1291 = vperm.slane %v1289, 0
    %1293 = vmatpush.msra.mxu0 %v1288
    %1294 = vmatpush.msra.mxu0 %v1287
    %1295 = vmatpush.msra.mxu0 %v1286
    %1296 = vmatpush.msra.mxu0 %v1285
    %1297 = vmatpush.msra.mxu0 %v1284
    %1298 = vmatpush.msra.mxu0 %v1283
    %1299 = vmatpush.msra.mxu0 %v1282
    %1300 = vmatpush.msra.mxu0 %v1281
    %1301 = vmatpush.msra.mxu0 %v1280
    %1302 = vmatpush.msra.mxu0 %v1279
    %1303 = vmatpush.msra.mxu0 %v1278
    %1304 = vmatpush.msra.mxu0 %v1277
    %1305 = vmatpush.msra.mxu0 %v1276
    %1306 = vmatpush.msra.mxu0 %v1275
    %1307 = vmatpush.msra.mxu0 %v1274
    %1308 = vmatpush.msra.mxu0 %v1273
    %1309 = vmatmul.f32.gmra.mxu0 %v1272
    %v1310 = vpop.f32.mrf.mxu0
    %v1311 = vadd.f32 %v1291, %v1310
    %1312 = vdwg.mxu0
    %v1313 = vmax.f32 %v1311, 0.0
    %v1314 = vld [vmem:[%s5] sm:$0xff]
    %v1315 = vld [vmem:[%s5 + $0x8] sm:$0xff]
    %v1316 = vld [vmem:[%s5 + $0x10] sm:$0xff]
    %v1317 = vld [vmem:[%s5 + $0x18] sm:$0xff]
    %v1318 = vld [vmem:[%s5 + $0x20] sm:$0xff]
    %v1319 = vld [vmem:[%s5 + $0x28] sm:$0xff]
    %v1320 = vld [vmem:[%s5 + $0x30] sm:$0xff]
    %v1321 = vld [vmem:[%s5 + $0x38] sm:$0xff]
    %v1322 = vld [vmem:[%s5 + $0x40] sm:$0xff]
    %v1323 = vld [vmem:[%s5 + $0x48] sm:$0xff]
    %v1324 = vld [vmem:[%s5 + $0x50] sm:$0xff]
    %v1325 = vld [vmem:[%s5 + $0x58] sm:$0xff]
    %v1326 = vld [vmem:[%s5 + $0x60] sm:$0xff]
    %v1327 = vld [vmem:[%s5 + $0x68] sm:$0xff]
    %v1328 = vld [vmem:[%s5 + $0x70] sm:$0xff]
    %v1329 = vld [vmem:[%s5 + $0x78] sm:$0xff]
    %v1330 = vld [vmem:[%s6] sm:$0x1]
    %v1332 = vperm.slane %v1330, 0
    %1334 = vmatpush.msra.mxu0 %v1329
    %1335 = vmatpush.msra.mxu0 %v1328
    %1336 = vmatpush.msra.mxu0 %v1327
    %1337 = vmatpush.msra.mxu0 %v1326
    %1338 = vmatpush.msra.mxu0 %v1325
    %1339 = vmatpush.msra.mxu0 %v1324
    %1340 = vmatpush.msra.mxu0 %v1323
    %1341 = vmatpush.msra.mxu0 %v1322
    %1342 = vmatpush.msra.mxu0 %v1321
    %1343 = vmatpush.msra.mxu0 %v1320
    %1344 = vmatpush.msra.mxu0 %v1319
    %1345 = vmatpush.msra.mxu0 %v1318
    %1346 = vmatpush.msra.mxu0 %v1317
    %1347 = vmatpush.msra.mxu0 %v1316
    %1348 = vmatpush.msra.mxu0 %v1315
    %1349 = vmatpush.msra.mxu0 %v1314
    %1350 = vmatmul.f32.gmra.mxu0 %v1313
    %v1351 = vpop.f32.mrf.mxu0
    %v1352 = vadd.f32 %v1332, %v1351
    %1353 = vdwg.mxu0
    %1354 = vst [vmem:[#allocation2] sm:$0x3] %v1352
    // Predicated region
    $region30: #{_lambda_.5} parent=1 // pred_check
      _
    $region31: #{_lambda_.5} parent=1 // pred_check_branch
      %1356 = sbr.rel (0) target = $region33
    $region32: #{_lambda_.5} parent=1 // pred_region
      %1358 = vsyncadd [#allocation3], 0
      %s1360 = sshll.u32 [#allocation2], 4
      %s1361 = int_to_ptr.vmem [resolvable:$true] %s1360
      %s1362 = sshll.u32 %s7, 4
      %s1363 = int_to_ptr.hbm [resolvable:$true] %s1362
      %1365 = dma.vmem_to_hbm [thread:$0]  %s1361, 32, %s1363, [#allocation3]
    $region33: #{_lambda_.5} parent=1 // pred_fallthru
      _
    // Predicated region
    $region34: #{_lambda_.5} parent=1 // pred_check
      _
    $region35: #{_lambda_.5} parent=1 // pred_check_branch
      %1367 = sbr.rel (0) target = $region37
    $region36: #{_lambda_.5} parent=1 // pred_region
      %1369 = dma.done [#allocation3], 32
    $region37: #{_lambda_.5} parent=1 // pred_fallthru
      _
    %1370 = vsyncpa [#allocation3], 1

</llo_original>
